<compile_context>
chip_gen: v7x
topology: tpu7x:2x2x1
jax: 0.10.0
libtpu: 0.0.40
codegen_flags: <defaults>
</compile_context>

<pallas_src>
import functools
import math

import jax
import jax.numpy as jnp
from jax.experimental import pallas as pl
from jax.experimental.pallas import tpu as pltpu


# ----------------------------------------------------------------------------
# ConcatLinear kernel (t already folded into the bias):  y = x @ W + b_eff
# Grid over row blocks; weight/bias stay resident via constant index_maps.
# ----------------------------------------------------------------------------
def _linear_bias_kernel(x_ref, w_ref, b_ref, o_ref):
    o_ref[...] = (
        jnp.dot(x_ref[...], w_ref[...], preferred_element_type=jnp.float32)
        + b_ref[...]
    )


def linear_bias(x2d, w, b_eff, *, block_rows):
    rows, d_in = x2d.shape
    d_out = w.shape[1]
    return pl.pallas_call(
        _linear_bias_kernel,
        out_shape=jax.ShapeDtypeStruct((rows, d_out), jnp.float32),
        grid=(rows // block_rows,),
        in_specs=[
            pl.BlockSpec((block_rows, d_in), lambda i: (i, 0)),
            pl.BlockSpec((d_in, d_out), lambda i: (0, 0)),
            pl.BlockSpec((1, d_out), lambda i: (0, 0)),
        ],
        out_specs=pl.BlockSpec((block_rows, d_out), lambda i: (i, 0)),
        compiler_params=pltpu.CompilerParams(
            dimension_semantics=("parallel",)),
    )(x2d, w, b_eff)


# ----------------------------------------------------------------------------
# One DiffEqEncoderLayer (L2 multi-head attention + ActNorm + ConcatLinear FF)
# Grid over batch b; one (T, D) block per step, everything in-register.
# ----------------------------------------------------------------------------
def _encoder_layer_kernel(x_ref, A_ref, Wc_ref, ob_ref,
                          n1s_ref, n1b_ref,
                          w1_ref, b1_ref, w2_ref, b2_ref,
                          n2s_ref, n2b_ref, o_ref):
    T, D = x_ref.shape
    H = A_ref.shape[1] // D

    xb = x_ref[...]                                               # (T, D)

    # XA for all heads in one lane-dense matmul: (T, D) @ (D, H*D)
    xa_all = jnp.dot(xb, A_ref[...], preferred_element_type=jnp.float32)

    # Per-head softmax: H is small (4-8); head-wise lane slices are static, so
    # a short static loop keeps lowering simple (the heavy matmuls are already
    # head-fused above/below).
    pxa = []
    for h in range(H):
        xa_h = xa_all[:, h * D:(h + 1) * D]                       # (T, D)
        # A_h = Q_h Q_h^T / sqrt(hd)  =>  G[t,s] = q_t . q_s / sqrt(hd)
        G = jax.lax.dot_general(
            xa_h, xb, dimension_numbers=(((1,), (1,)), ((), ())),
            preferred_element_type=jnp.float32)                   # (T, T)
        d = jnp.sum(xa_h * xb, axis=-1, keepdims=True)            # diag(G), (T, 1)
        logits = 2.0 * G - d - jnp.transpose(d)                   # = -sq_dist/sqrt(hd)
        m = jnp.max(logits, axis=-1, keepdims=True)
        e = jnp.exp(logits - m)
        attn = e * pl.reciprocal(jnp.sum(e, axis=-1, keepdims=True), approx=True)
        pxa.append(jnp.dot(attn, xa_h, preferred_element_type=jnp.float32))
    pxa_cat = jnp.concatenate(pxa, axis=-1)                       # (T, H*D)

    # Fused v_weight + out_proj: one (T, H*D) @ (H*D, D) matmul + bias
    sa = (jnp.dot(pxa_cat, Wc_ref[...], preferred_element_type=jnp.float32)
          + ob_ref[...])

    # residual + ActNorm1d:  y = (x + bias) * exp(weight)  (exp precomputed)
    x1 = (xb + sa + n1b_ref[...]) * n1s_ref[...]

    # feed-forward (t folded into biases): ConcatLinear -> relu -> ConcatLinear
    h1 = jnp.maximum(
        jnp.dot(x1, w1_ref[...], preferred_element_type=jnp.float32)
        + b1_ref[...], 0.0)
    ff = (jnp.dot(h1, w2_ref[...], preferred_element_type=jnp.float32)
          + b2_ref[...])

    o_ref[...] = (x1 + ff + n2b_ref[...]) * n2s_ref[...]


def encoder_layer(x2d, lp, b1_eff, b2_eff, *, T):
    NT, D = x2d.shape
    N = NT // T
    HD = lp["A"].shape[1]
    F = lp["w1"].shape[1]

    def const(shape):
        return pl.BlockSpec(shape, lambda b: (0, 0))

    # For production sizes (D=512, H=8) the dense A/Wc stacks are ~16 MiB of
    # weights; activations are tiled per batch block, so this fits the default
    # scoped VMEM.  Raise pltpu.CompilerParams(vmem_limit_bytes=...) if needed.
    return pl.pallas_call(
        _encoder_layer_kernel,
        out_shape=jax.ShapeDtypeStruct((NT, D), jnp.float32),
        grid=(N,),
        in_specs=[
            pl.BlockSpec((T, D), lambda b: (b, 0)),   # x: one batch block/step
            const((D, HD)),                           # A_stack
            const((HD, D)),                           # Wc_stack
            const((1, D)),                            # out_proj bias
            const((1, D)), const((1, D)),             # norm1 scale/bias
            const((D, F)), const((1, F)),             # linear1
            const((F, D)), const((1, D)),             # linear2
            const((1, D)), const((1, D)),             # norm2 scale/bias
        ],
        out_specs=pl.BlockSpec((T, D), lambda b: (b, 0)),
        compiler_params=pltpu.CompilerParams(
            dimension_semantics=("parallel",)),
    )(x2d, lp["A"], lp["Wc"], lp["ob"], lp["n1s"], lp["n1b"],
      lp["w1"], b1_eff, lp["w2"], b2_eff, lp["n2s"], lp["n2b"])


# ----------------------------------------------------------------------------
# Deterministic parameter initialization (shapes follow the PyTorch __init__)
# ----------------------------------------------------------------------------
def init_params(key, num_layers, d_in, d_out, d_model, nhead, dim_ff):
    def lin_init(k, fan_in, fan_out):
        bound = 1.0 / math.sqrt(fan_in)
        kw, kb = jax.random.split(k)
        W = jax.random.uniform(kw, (fan_out, fan_in), jnp.float32, -bound, bound)
        b = jax.random.uniform(kb, (fan_out,), jnp.float32, -bound, bound)
        return W, b

    hd = d_model // nhead
    keys = jax.random.split(key, num_layers + 2)

    # top-level ConcatLinear(d_in, d_model)
    W, b = lin_init(keys[0], d_in + 1, d_model)
    lin1 = dict(w=W[:, 1:].T, wt=W[:, :1].T, b=b.reshape(1, -1))

    layers = []
    for l in range(num_layers):
        ks = jax.random.split(keys[1 + l], 9)
        xav = math.sqrt(6.0 / (2.0 * d_model))   # xavier_uniform on (D, D) view
        q_w = jax.random.uniform(ks[0], (d_model, nhead, hd), jnp.float32, -xav, xav)
        v_w = jax.random.uniform(ks[1], (d_model, nhead, hd), jnp.float32, -xav, xav)
        Wo, bo = lin_init(ks[2], d_model, d_model)            # out_proj
        W1, b1 = lin_init(ks[3], d_model + 1, dim_ff)         # ConcatLinear(d_model, dim_ff)
        W2, b2 = lin_init(ks[4], dim_ff + 1, d_model)         # ConcatLinear(dim_ff, d_model)
        n1w = 0.05 * jax.random.normal(ks[5], (d_model,), jnp.float32)
        n1b = 0.05 * jax.random.normal(ks[6], (d_model,), jnp.float32)
        n2w = 0.05 * jax.random.normal(ks[7], (d_model,), jnp.float32)
        n2b = 0.05 * jax.random.normal(ks[8], (d_model,), jnp.float32)

        # Head-fused, weight-only precompute (plain JAX glue):
        #   A_stack  (D, H*D):  x @ A_stack gives all heads' XA side by side
        #   Wc_stack (H*D, D):  folds v_weight and out_proj.weight
        A = jnp.einsum('mhd,nhd->hmn', q_w, q_w) / math.sqrt(hd)          # (H, D, D)
        A_stack = jnp.transpose(A, (1, 0, 2)).reshape(d_model, nhead * d_model)
        Wc = jnp.einsum('mhd,ehd->hme', v_w, Wo.reshape(d_model, nhead, hd))
        Wc_stack = Wc.reshape(nhead * d_model, d_model)

        layers.append(dict(
            A=A_stack, Wc=Wc_stack, ob=bo.reshape(1, -1),
            n1s=jnp.exp(n1w).reshape(1, -1), n1b=n1b.reshape(1, -1),
            w1=W1[:, 1:].T, w1t=W1[:, :1].T, b1=b1.reshape(1, -1),
            w2=W2[:, 1:].T, w2t=W2[:, :1].T, b2=b2.reshape(1, -1),
            n2s=jnp.exp(n2w).reshape(1, -1), n2b=n2b.reshape(1, -1),
        ))

    # final ConcatLinear(d_model, d_out): weight /= d_out, bias zeroed.
    # Zero-pad the output dim to a lane-dense multiple of 128 (sliced outside).
    Wf, bf = lin_init(keys[-1], d_model + 1, d_out)
    Wf = Wf / d_out
    bf = jnp.zeros_like(bf)
    d_pad = ((d_out + 127) // 128) * 128
    Wf = jnp.pad(Wf, ((0, d_pad - d_out), (0, 0)))
    bf = jnp.pad(bf, ((0, d_pad - d_out),))
    lin2 = dict(w=Wf[:, 1:].T, wt=Wf[:, :1].T, b=bf.reshape(1, -1))

    return dict(lin1=lin1, layers=layers, lin2=lin2)


# ----------------------------------------------------------------------------
# Full forward pass
# ----------------------------------------------------------------------------
def diffeq_transformer_forward(params, t, x, d_out):
    N, T, d_in = x.shape
    t = jnp.asarray(t, jnp.float32)
    x2d = x.reshape(N * T, d_in).astype(jnp.float32)

    # top ConcatLinear: fold t into the bias (tiny (1, d) op), then matmul kernel
    p = params["lin1"]
    x2d = linear_bias(x2d, p["w"], t * p["wt"] + p["b"], block_rows=T)

    for lp in params["layers"]:
        b1_eff = t * lp["w1t"] + lp["b1"]
        b2_eff = t * lp["w2t"] + lp["b2"]
        x2d = encoder_layer(x2d, lp, b1_eff, b2_eff, T=T)

    p = params["lin2"]
    y = linear_bias(x2d, p["w"], t * p["wt"] + p["b"], block_rows=T)
    return y[:, :d_out].reshape(N, T, d_out)


if __name__ == "__main__":
    # small shapes consistent with the module's forward (batch, seqlen, dim);
    # d_model chosen as a multiple of 128 so all intermediate tiles are lane-dense.
    num_layers, d_in, d_out = 2, 4, 4
    d_model, nhead, dim_ff = 128, 4, 128
    N, T = 4, 16

    key = jax.random.PRNGKey(0)
    kp, kx = jax.random.split(key)
    params = init_params(kp, num_layers, d_in, d_out, d_model, nhead, dim_ff)
    x = jax.random.normal(kx, (N, T, d_in), jnp.float32)
    t = jnp.float32(0.5)

    fwd = jax.jit(functools.partial(diffeq_transformer_forward, d_out=d_out))
    out = jax.block_until_ready(fwd(params, t, x))

    assert out.shape == (N, T, d_out), out.shape
    assert bool(jnp.all(jnp.isfinite(out)))
    print("KERNEL_OK")
</pallas_src>

<mosaic_0001>
module attributes {stable_mosaic.version = 11 : i64} {
  func.func @_linear_bias_kernel(%arg0: i32, %arg1: memref<16x4xf32, #tpu.memory_space<vmem>>, %arg2: memref<4x128xf32, #tpu.memory_space<vmem>>, %arg3: memref<1x128xf32, #tpu.memory_space<vmem>>, %arg4: memref<16x128xf32, #tpu.memory_space<vmem>>) attributes {dimension_semantics = [#tpu.dimension_semantics<parallel>], iteration_bounds = array<i64: 4>, scalar_prefetch = 0 : i64, scratch_operands = 0 : i64, tpu.core_type = #tpu.core_type<tc>, window_params = [{transform_indices = @transform_0, window_bounds = array<i64: 16, 4>}, {pipeline_mode = #tpu.pipeline_mode<synchronous>, transform_indices = @transform_1, window_bounds = array<i64: 4, 128>}, {pipeline_mode = #tpu.pipeline_mode<synchronous>, transform_indices = @transform_2, window_bounds = array<i64: 1, 128>}, {transform_indices = @transform_3, window_bounds = array<i64: 16, 128>}]} {
    %c0 = arith.constant 0 : index
    %c0_0 = arith.constant 0 : index
    %0 = vector.load %arg1[%c0, %c0_0] : memref<16x4xf32, #tpu.memory_space<vmem>>, vector<16x4xf32>
    %c0_1 = arith.constant 0 : index
    %c0_2 = arith.constant 0 : index
    %1 = vector.load %arg2[%c0_1, %c0_2] : memref<4x128xf32, #tpu.memory_space<vmem>>, vector<4x128xf32>
    %cst = arith.constant dense<0.000000e+00> : vector<16x128xf32>
    %2 = tpu.matmul %0, %1, %cst {dimension_numbers = #tpu.dot_dimension_numbers<[1], [0], [0], [1], [0, 0, 1, 1], [], []>} : vector<16x4xf32>, vector<4x128xf32>, vector<16x128xf32> -> vector<16x128xf32>
    %c0_3 = arith.constant 0 : index
    %c0_4 = arith.constant 0 : index
    %3 = vector.load %arg3[%c0_3, %c0_4] : memref<1x128xf32, #tpu.memory_space<vmem>>, vector<1x128xf32>
    %4 = vector.broadcast %3 : vector<1x128xf32> to vector<16x128xf32>
    %5 = arith.addf %2, %4 : vector<16x128xf32>
    %c0_5 = arith.constant 0 : index
    %c0_6 = arith.constant 0 : index
    %6 = vector.load %arg4[%c0_5, %c0_6] : memref<16x128xf32, #tpu.memory_space<vmem>>, vector<16x128xf32>
    tpu.vector_store %arg4[%c0_5, %c0_6], %5 {strides = array<i32>} : memref<16x128xf32, #tpu.memory_space<vmem>>, vector<16x128xf32>,
    return
  }
  func.func @transform_0(%arg0: i32) -> (i32, i32) {
    %c0_i32 = arith.constant 0 : i32
    %c0_i32_0 = arith.constant 0 : i32
    return %arg0, %c0_i32 : i32, i32
  }
  func.func @transform_1(%arg0: i32) -> (i32, i32) {
    %c0_i32 = arith.constant 0 : i32
    %c0_i32_0 = arith.constant 0 : i32
    %c0_i32_1 = arith.constant 0 : i32
    return %c0_i32, %c0_i32_0 : i32, i32
  }
  func.func @transform_2(%arg0: i32) -> (i32, i32) {
    %c0_i32 = arith.constant 0 : i32
    %c0_i32_0 = arith.constant 0 : i32
    %c0_i32_1 = arith.constant 0 : i32
    return %c0_i32, %c0_i32_0 : i32, i32
  }
  func.func @transform_3(%arg0: i32) -> (i32, i32) {
    %c0_i32 = arith.constant 0 : i32
    %c0_i32_0 = arith.constant 0 : i32
    return %arg0, %c0_i32 : i32, i32
  }
}

module attributes {stable_mosaic.version = 11 : i64} {
  func.func @_encoder_layer_kernel(%arg0: i32, %arg1: memref<16x128xf32, #tpu.memory_space<vmem>>, %arg2: memref<128x512xf32, #tpu.memory_space<vmem>>, %arg3: memref<512x128xf32, #tpu.memory_space<vmem>>, %arg4: memref<1x128xf32, #tpu.memory_space<vmem>>, %arg5: memref<1x128xf32, #tpu.memory_space<vmem>>, %arg6: memref<1x128xf32, #tpu.memory_space<vmem>>, %arg7: memref<128x128xf32, #tpu.memory_space<vmem>>, %arg8: memref<1x128xf32, #tpu.memory_space<vmem>>, %arg9: memref<128x128xf32, #tpu.memory_space<vmem>>, %arg10: memref<1x128xf32, #tpu.memory_space<vmem>>, %arg11: memref<1x128xf32, #tpu.memory_space<vmem>>, %arg12: memref<1x128xf32, #tpu.memory_space<vmem>>, %arg13: memref<16x128xf32, #tpu.memory_space<vmem>>) attributes {dimension_semantics = [#tpu.dimension_semantics<parallel>], iteration_bounds = array<i64: 4>, scalar_prefetch = 0 : i64, scratch_operands = 0 : i64, tpu.core_type = #tpu.core_type<tc>, window_params = [{transform_indices = @transform_0, window_bounds = array<i64: 16, 128>}, {pipeline_mode = #tpu.pipeline_mode<synchronous>, transform_indices = @transform_1, window_bounds = array<i64: 128, 512>}, {pipeline_mode = #tpu.pipeline_mode<synchronous>, transform_indices = @transform_2, window_bounds = array<i64: 512, 128>}, {pipeline_mode = #tpu.pipeline_mode<synchronous>, transform_indices = @transform_3, window_bounds = array<i64: 1, 128>}, {pipeline_mode = #tpu.pipeline_mode<synchronous>, transform_indices = @transform_4, window_bounds = array<i64: 1, 128>}, {pipeline_mode = #tpu.pipeline_mode<synchronous>, transform_indices = @transform_5, window_bounds = array<i64: 1, 128>}, {pipeline_mode = #tpu.pipeline_mode<synchronous>, transform_indices = @transform_6, window_bounds = array<i64: 128, 128>}, {pipeline_mode = #tpu.pipeline_mode<synchronous>, transform_indices = @transform_7, window_bounds = array<i64: 1, 128>}, {pipeline_mode = #tpu.pipeline_mode<synchronous>, transform_indices = @transform_8, window_bounds = array<i64: 128, 128>}, {pipeline_mode = #tpu.pipeline_mode<synchronous>, transform_indices = @transform_9, window_bounds = array<i64: 1, 128>}, {pipeline_mode = #tpu.pipeline_mode<synchronous>, transform_indices = @transform_10, window_bounds = array<i64: 1, 128>}, {pipeline_mode = #tpu.pipeline_mode<synchronous>, transform_indices = @transform_11, window_bounds = array<i64: 1, 128>}, {transform_indices = @transform_12, window_bounds = array<i64: 16, 128>}]} {
    %c0 = arith.constant 0 : index
    %c0_0 = arith.constant 0 : index
    %0 = vector.load %arg1[%c0, %c0_0] : memref<16x128xf32, #tpu.memory_space<vmem>>, vector<16x128xf32>
    %c0_1 = arith.constant 0 : index
    %c0_2 = arith.constant 0 : index
    %1 = vector.load %arg2[%c0_1, %c0_2] : memref<128x512xf32, #tpu.memory_space<vmem>>, vector<128x512xf32>
    %cst = arith.constant dense<0.000000e+00> : vector<16x512xf32>
    %2 = tpu.matmul %0, %1, %cst {dimension_numbers = #tpu.dot_dimension_numbers<[1], [0], [0], [1], [0, 0, 1, 1], [], []>} : vector<16x128xf32>, vector<128x512xf32>, vector<16x512xf32> -> vector<16x512xf32>
    %3 = vector.extract_strided_slice %2 {offsets = [0, 0], sizes = [16, 128], strides = [1, 1]} : vector<16x512xf32> to vector<16x128xf32>
    %cst_3 = arith.constant dense<0.000000e+00> : vector<16x16xf32>
    %4 = tpu.matmul %3, %0, %cst_3 {dimension_numbers = #tpu.dot_dimension_numbers<[1], [1], [0], [0], [0, 0, 1, 0], [], []>} : vector<16x128xf32>, vector<16x128xf32>, vector<16x16xf32> -> vector<16x16xf32>
    %5 = arith.mulf %3, %0 : vector<16x128xf32>
    %cst_4 = arith.constant dense<0.000000e+00> : vector<16xf32>
    %6 = vector.multi_reduction <add>, %5, %cst_4 [1] : vector<16x128xf32> to vector<16xf32>
    %7 = vector.shape_cast %6 : vector<16xf32> to vector<16x1xf32>
    %cst_5 = arith.constant 2.000000e+00 : f32
    %8 = vector.broadcast %cst_5 : f32 to vector<16x16xf32>
    %9 = arith.mulf %8, %4 : vector<16x16xf32>
    %10 = vector.broadcast %7 : vector<16x1xf32> to vector<16x16xf32>
    %11 = arith.subf %9, %10 : vector<16x16xf32>
    %12 = tpu.transpose %7, [1, 0] : vector<16x1xf32> -> vector<1x16xf32>
    %13 = vector.broadcast %12 : vector<1x16xf32> to vector<16x16xf32>
    %14 = arith.subf %11, %13 : vector<16x16xf32>
    %cst_6 = arith.constant dense<0xFF800000> : vector<16xf32>
    %15 = vector.multi_reduction <maximumf>, %14, %cst_6 [1] : vector<16x16xf32> to vector<16xf32>
    %16 = vector.shape_cast %15 : vector<16xf32> to vector<16x1xf32>
    %17 = vector.broadcast %16 : vector<16x1xf32> to vector<16x16xf32>
    %18 = arith.subf %14, %17 : vector<16x16xf32>
    %19 = math.exp %18 : vector<16x16xf32>
    %cst_7 = arith.constant dense<0.000000e+00> : vector<16xf32>
    %20 = vector.multi_reduction <add>, %19, %cst_7 [1] : vector<16x16xf32> to vector<16xf32>
    %21 = vector.shape_cast %20 : vector<16xf32> to vector<16x1xf32>
    %22 = tpu.reciprocal %21 {approx = true} : vector<16x1xf32> -> vector<16x1xf32>
    %23 = vector.broadcast %22 : vector<16x1xf32> to vector<16x16xf32>
    %24 = arith.mulf %19, %23 : vector<16x16xf32>
    %cst_8 = arith.constant dense<0.000000e+00> : vector<16x128xf32>
    %25 = tpu.matmul %24, %3, %cst_8 {dimension_numbers = #tpu.dot_dimension_numbers<[1], [0], [0], [1], [0, 0, 1, 1], [], []>} : vector<16x16xf32>, vector<16x128xf32>, vector<16x128xf32> -> vector<16x128xf32>
    %26 = vector.extract_strided_slice %2 {offsets = [0, 128], sizes = [16, 128], strides = [1, 1]} : vector<16x512xf32> to vector<16x128xf32>
    %cst_9 = arith.constant dense<0.000000e+00> : vector<16x16xf32>
    %27 = tpu.matmul %26, %0, %cst_9 {dimension_numbers = #tpu.dot_dimension_numbers<[1], [1], [0], [0], [0, 0, 1, 0], [], []>} : vector<16x128xf32>, vector<16x128xf32>, vector<16x16xf32> -> vector<16x16xf32>
    %28 = arith.mulf %26, %0 : vector<16x128xf32>
    %cst_10 = arith.constant dense<0.000000e+00> : vector<16xf32>
    %29 = vector.multi_reduction <add>, %28, %cst_10 [1] : vector<16x128xf32> to vector<16xf32>
    %30 = vector.shape_cast %29 : vector<16xf32> to vector<16x1xf32>
    %cst_11 = arith.constant 2.000000e+00 : f32
    %31 = vector.broadcast %cst_11 : f32 to vector<16x16xf32>
    %32 = arith.mulf %31, %27 : vector<16x16xf32>
    %33 = vector.broadcast %30 : vector<16x1xf32> to vector<16x16xf32>
    %34 = arith.subf %32, %33 : vector<16x16xf32>
    %35 = tpu.transpose %30, [1, 0] : vector<16x1xf32> -> vector<1x16xf32>
    %36 = vector.broadcast %35 : vector<1x16xf32> to vector<16x16xf32>
    %37 = arith.subf %34, %36 : vector<16x16xf32>
    %cst_12 = arith.constant dense<0xFF800000> : vector<16xf32>
    %38 = vector.multi_reduction <maximumf>, %37, %cst_12 [1] : vector<16x16xf32> to vector<16xf32>
    %39 = vector.shape_cast %38 : vector<16xf32> to vector<16x1xf32>
    %40 = vector.broadcast %39 : vector<16x1xf32> to vector<16x16xf32>
    %41 = arith.subf %37, %40 : vector<16x16xf32>
    %42 = math.exp %41 : vector<16x16xf32>
    %cst_13 = arith.constant dense<0.000000e+00> : vector<16xf32>
    %43 = vector.multi_reduction <add>, %42, %cst_13 [1] : vector<16x16xf32> to vector<16xf32>
    %44 = vector.shape_cast %43 : vector<16xf32> to vector<16x1xf32>
    %45 = tpu.reciprocal %44 {approx = true} : vector<16x1xf32> -> vector<16x1xf32>
    %46 = vector.broadcast %45 : vector<16x1xf32> to vector<16x16xf32>
    %47 = arith.mulf %42, %46 : vector<16x16xf32>
    %cst_14 = arith.constant dense<0.000000e+00> : vector<16x128xf32>
    %48 = tpu.matmul %47, %26, %cst_14 {dimension_numbers = #tpu.dot_dimension_numbers<[1], [0], [0], [1], [0, 0, 1, 1], [], []>} : vector<16x16xf32>, vector<16x128xf32>, vector<16x128xf32> -> vector<16x128xf32>
    %49 = vector.extract_strided_slice %2 {offsets = [0, 256], sizes = [16, 128], strides = [1, 1]} : vector<16x512xf32> to vector<16x128xf32>
    %cst_15 = arith.constant dense<0.000000e+00> : vector<16x16xf32>
    %50 = tpu.matmul %49, %0, %cst_15 {dimension_numbers = #tpu.dot_dimension_numbers<[1], [1], [0], [0], [0, 0, 1, 0], [], []>} : vector<16x128xf32>, vector<16x128xf32>, vector<16x16xf32> -> vector<16x16xf32>
    %51 = arith.mulf %49, %0 : vector<16x128xf32>
    %cst_16 = arith.constant dense<0.000000e+00> : vector<16xf32>
    %52 = vector.multi_reduction <add>, %51, %cst_16 [1] : vector<16x128xf32> to vector<16xf32>
    %53 = vector.shape_cast %52 : vector<16xf32> to vector<16x1xf32>
    %cst_17 = arith.constant 2.000000e+00 : f32
    %54 = vector.broadcast %cst_17 : f32 to vector<16x16xf32>
    %55 = arith.mulf %54, %50 : vector<16x16xf32>
    %56 = vector.broadcast %53 : vector<16x1xf32> to vector<16x16xf32>
    %57 = arith.subf %55, %56 : vector<16x16xf32>
    %58 = tpu.transpose %53, [1, 0] : vector<16x1xf32> -> vector<1x16xf32>
    %59 = vector.broadcast %58 : vector<1x16xf32> to vector<16x16xf32>
    %60 = arith.subf %57, %59 : vector<16x16xf32>
    %cst_18 = arith.constant dense<0xFF800000> : vector<16xf32>
    %61 = vector.multi_reduction <maximumf>, %60, %cst_18 [1] : vector<16x16xf32> to vector<16xf32>
    %62 = vector.shape_cast %61 : vector<16xf32> to vector<16x1xf32>
    %63 = vector.broadcast %62 : vector<16x1xf32> to vector<16x16xf32>
    %64 = arith.subf %60, %63 : vector<16x16xf32>
    %65 = math.exp %64 : vector<16x16xf32>
    %cst_19 = arith.constant dense<0.000000e+00> : vector<16xf32>
    %66 = vector.multi_reduction <add>, %65, %cst_19 [1] : vector<16x16xf32> to vector<16xf32>
    %67 = vector.shape_cast %66 : vector<16xf32> to vector<16x1xf32>
    %68 = tpu.reciprocal %67 {approx = true} : vector<16x1xf32> -> vector<16x1xf32>
    %69 = vector.broadcast %68 : vector<16x1xf32> to vector<16x16xf32>
    %70 = arith.mulf %65, %69 : vector<16x16xf32>
    %cst_20 = arith.constant dense<0.000000e+00> : vector<16x128xf32>
    %71 = tpu.matmul %70, %49, %cst_20 {dimension_numbers = #tpu.dot_dimension_numbers<[1], [0], [0], [1], [0, 0, 1, 1], [], []>} : vector<16x16xf32>, vector<16x128xf32>, vector<16x128xf32> -> vector<16x128xf32>
    %72 = vector.extract_strided_slice %2 {offsets = [0, 384], sizes = [16, 128], strides = [1, 1]} : vector<16x512xf32> to vector<16x128xf32>
    %cst_21 = arith.constant dense<0.000000e+00> : vector<16x16xf32>
    %73 = tpu.matmul %72, %0, %cst_21 {dimension_numbers = #tpu.dot_dimension_numbers<[1], [1], [0], [0], [0, 0, 1, 0], [], []>} : vector<16x128xf32>, vector<16x128xf32>, vector<16x16xf32> -> vector<16x16xf32>
    %74 = arith.mulf %72, %0 : vector<16x128xf32>
    %cst_22 = arith.constant dense<0.000000e+00> : vector<16xf32>
    %75 = vector.multi_reduction <add>, %74, %cst_22 [1] : vector<16x128xf32> to vector<16xf32>
    %76 = vector.shape_cast %75 : vector<16xf32> to vector<16x1xf32>
    %cst_23 = arith.constant 2.000000e+00 : f32
    %77 = vector.broadcast %cst_23 : f32 to vector<16x16xf32>
    %78 = arith.mulf %77, %73 : vector<16x16xf32>
    %79 = vector.broadcast %76 : vector<16x1xf32> to vector<16x16xf32>
    %80 = arith.subf %78, %79 : vector<16x16xf32>
    %81 = tpu.transpose %76, [1, 0] : vector<16x1xf32> -> vector<1x16xf32>
    %82 = vector.broadcast %81 : vector<1x16xf32> to vector<16x16xf32>
    %83 = arith.subf %80, %82 : vector<16x16xf32>
    %cst_24 = arith.constant dense<0xFF800000> : vector<16xf32>
    %84 = vector.multi_reduction <maximumf>, %83, %cst_24 [1] : vector<16x16xf32> to vector<16xf32>
    %85 = vector.shape_cast %84 : vector<16xf32> to vector<16x1xf32>
    %86 = vector.broadcast %85 : vector<16x1xf32> to vector<16x16xf32>
    %87 = arith.subf %83, %86 : vector<16x16xf32>
    %88 = math.exp %87 : vector<16x16xf32>
    %cst_25 = arith.constant dense<0.000000e+00> : vector<16xf32>
    %89 = vector.multi_reduction <add>, %88, %cst_25 [1] : vector<16x16xf32> to vector<16xf32>
    %90 = vector.shape_cast %89 : vector<16xf32> to vector<16x1xf32>
    %91 = tpu.reciprocal %90 {approx = true} : vector<16x1xf32> -> vector<16x1xf32>
    %92 = vector.broadcast %91 : vector<16x1xf32> to vector<16x16xf32>
    %93 = arith.mulf %88, %92 : vector<16x16xf32>
    %cst_26 = arith.constant dense<0.000000e+00> : vector<16x128xf32>
    %94 = tpu.matmul %93, %72, %cst_26 {dimension_numbers = #tpu.dot_dimension_numbers<[1], [0], [0], [1], [0, 0, 1, 1], [], []>} : vector<16x16xf32>, vector<16x128xf32>, vector<16x128xf32> -> vector<16x128xf32>
    %95 = tpu.concatenate %25, %48, %71, %94 in 1 : vector<16x128xf32>, vector<16x128xf32>, vector<16x128xf32>, vector<16x128xf32> -> vector<16x512xf32>
    %c0_27 = arith.constant 0 : index
    %c0_28 = arith.constant 0 : index
    %96 = vector.load %arg3[%c0_27, %c0_28] : memref<512x128xf32, #tpu.memory_space<vmem>>, vector<512x128xf32>
    %cst_29 = arith.constant dense<0.000000e+00> : vector<16x128xf32>
    %97 = tpu.matmul %95, %96, %cst_29 {dimension_numbers = #tpu.dot_dimension_numbers<[1], [0], [0], [1], [0, 0, 1, 1], [], []>} : vector<16x512xf32>, vector<512x128xf32>, vector<16x128xf32> -> vector<16x128xf32>
    %c0_30 = arith.constant 0 : index
    %c0_31 = arith.constant 0 : index
    %98 = vector.load %arg4[%c0_30, %c0_31] : memref<1x128xf32, #tpu.memory_space<vmem>>, vector<1x128xf32>
    %99 = vector.broadcast %98 : vector<1x128xf32> to vector<16x128xf32>
    %100 = arith.addf %97, %99 : vector<16x128xf32>
    %101 = arith.addf %0, %100 : vector<16x128xf32>
    %c0_32 = arith.constant 0 : index
    %c0_33 = arith.constant 0 : index
    %102 = vector.load %arg6[%c0_32, %c0_33] : memref<1x128xf32, #tpu.memory_space<vmem>>, vector<1x128xf32>
    %103 = vector.broadcast %102 : vector<1x128xf32> to vector<16x128xf32>
    %104 = arith.addf %101, %103 : vector<16x128xf32>
    %c0_34 = arith.constant 0 : index
    %c0_35 = arith.constant 0 : index
    %105 = vector.load %arg5[%c0_34, %c0_35] : memref<1x128xf32, #tpu.memory_space<vmem>>, vector<1x128xf32>
    %106 = vector.broadcast %105 : vector<1x128xf32> to vector<16x128xf32>
    %107 = arith.mulf %104, %106 : vector<16x128xf32>
    %c0_36 = arith.constant 0 : index
    %c0_37 = arith.constant 0 : index
    %108 = vector.load %arg7[%c0_36, %c0_37] : memref<128x128xf32, #tpu.memory_space<vmem>>, vector<128x128xf32>
    %cst_38 = arith.constant dense<0.000000e+00> : vector<16x128xf32>
    %109 = tpu.matmul %107, %108, %cst_38 {dimension_numbers = #tpu.dot_dimension_numbers<[1], [0], [0], [1], [0, 0, 1, 1], [], []>} : vector<16x128xf32>, vector<128x128xf32>, vector<16x128xf32> -> vector<16x128xf32>
    %c0_39 = arith.constant 0 : index
    %c0_40 = arith.constant 0 : index
    %110 = vector.load %arg8[%c0_39, %c0_40] : memref<1x128xf32, #tpu.memory_space<vmem>>, vector<1x128xf32>
    %111 = vector.broadcast %110 : vector<1x128xf32> to vector<16x128xf32>
    %112 = arith.addf %109, %111 : vector<16x128xf32>
    %cst_41 = arith.constant 0.000000e+00 : f32
    %113 = vector.broadcast %cst_41 : f32 to vector<16x128xf32>
    %114 = arith.maximumf %112, %113 : vector<16x128xf32>
    %c0_42 = arith.constant 0 : index
    %c0_43 = arith.constant 0 : index
    %115 = vector.load %arg9[%c0_42, %c0_43] : memref<128x128xf32, #tpu.memory_space<vmem>>, vector<128x128xf32>
    %cst_44 = arith.constant dense<0.000000e+00> : vector<16x128xf32>
    %116 = tpu.matmul %114, %115, %cst_44 {dimension_numbers = #tpu.dot_dimension_numbers<[1], [0], [0], [1], [0, 0, 1, 1], [], []>} : vector<16x128xf32>, vector<128x128xf32>, vector<16x128xf32> -> vector<16x128xf32>
    %c0_45 = arith.constant 0 : index
    %c0_46 = arith.constant 0 : index
    %117 = vector.load %arg10[%c0_45, %c0_46] : memref<1x128xf32, #tpu.memory_space<vmem>>, vector<1x128xf32>
    %118 = vector.broadcast %117 : vector<1x128xf32> to vector<16x128xf32>
    %119 = arith.addf %116, %118 : vector<16x128xf32>
    %120 = arith.addf %107, %119 : vector<16x128xf32>
    %c0_47 = arith.constant 0 : index
    %c0_48 = arith.constant 0 : index
    %121 = vector.load %arg12[%c0_47, %c0_48] : memref<1x128xf32, #tpu.memory_space<vmem>>, vector<1x128xf32>
    %122 = vector.broadcast %121 : vector<1x128xf32> to vector<16x128xf32>
    %123 = arith.addf %120, %122 : vector<16x128xf32>
    %c0_49 = arith.constant 0 : index
    %c0_50 = arith.constant 0 : index
    %124 = vector.load %arg11[%c0_49, %c0_50] : memref<1x128xf32, #tpu.memory_space<vmem>>, vector<1x128xf32>
    %125 = vector.broadcast %124 : vector<1x128xf32> to vector<16x128xf32>
    %126 = arith.mulf %123, %125 : vector<16x128xf32>
    %c0_51 = arith.constant 0 : index
    %c0_52 = arith.constant 0 : index
    %127 = vector.load %arg13[%c0_51, %c0_52] : memref<16x128xf32, #tpu.memory_space<vmem>>, vector<16x128xf32>
    tpu.vector_store %arg13[%c0_51, %c0_52], %126 {strides = array<i32>} : memref<16x128xf32, #tpu.memory_space<vmem>>, vector<16x128xf32>,
    return
  }
  func.func @transform_0(%arg0: i32) -> (i32, i32) {
    %c0_i32 = arith.constant 0 : i32
    %c0_i32_0 = arith.constant 0 : i32
    return %arg0, %c0_i32 : i32, i32
  }
  func.func @transform_1(%arg0: i32) -> (i32, i32) {
    %c0_i32 = arith.constant 0 : i32
    %c0_i32_0 = arith.constant 0 : i32
    %c0_i32_1 = arith.constant 0 : i32
    return %c0_i32, %c0_i32_0 : i32, i32
  }
  func.func @transform_2(%arg0: i32) -> (i32, i32) {
    %c0_i32 = arith.constant 0 : i32
    %c0_i32_0 = arith.constant 0 : i32
    %c0_i32_1 = arith.constant 0 : i32
    return %c0_i32, %c0_i32_0 : i32, i32
  }
  func.func @transform_3(%arg0: i32) -> (i32, i32) {
    %c0_i32 = arith.constant 0 : i32
    %c0_i32_0 = arith.constant 0 : i32
    %c0_i32_1 = arith.constant 0 : i32
    return %c0_i32, %c0_i32_0 : i32, i32
  }
  func.func @transform_4(%arg0: i32) -> (i32, i32) {
    %c0_i32 = arith.constant 0 : i32
    %c0_i32_0 = arith.constant 0 : i32
    %c0_i32_1 = arith.constant 0 : i32
    return %c0_i32, %c0_i32_0 : i32, i32
  }
  func.func @transform_5(%arg0: i32) -> (i32, i32) {
    %c0_i32 = arith.constant 0 : i32
    %c0_i32_0 = arith.constant 0 : i32
    %c0_i32_1 = arith.constant 0 : i32
    return %c0_i32, %c0_i32_0 : i32, i32
  }
  func.func @transform_6(%arg0: i32) -> (i32, i32) {
    %c0_i32 = arith.constant 0 : i32
    %c0_i32_0 = arith.constant 0 : i32
    %c0_i32_1 = arith.constant 0 : i32
    return %c0_i32, %c0_i32_0 : i32, i32
  }
  func.func @transform_7(%arg0: i32) -> (i32, i32) {
    %c0_i32 = arith.constant 0 : i32
    %c0_i32_0 = arith.constant 0 : i32
    %c0_i32_1 = arith.constant 0 : i32
    return %c0_i32, %c0_i32_0 : i32, i32
  }
  func.func @transform_8(%arg0: i32) -> (i32, i32) {
    %c0_i32 = arith.constant 0 : i32
    %c0_i32_0 = arith.constant 0 : i32
    %c0_i32_1 = arith.constant 0 : i32
    return %c0_i32, %c0_i32_0 : i32, i32
  }
  func.func @transform_9(%arg0: i32) -> (i32, i32) {
    %c0_i32 = arith.constant 0 : i32
    %c0_i32_0 = arith.constant 0 : i32
    %c0_i32_1 = arith.constant 0 : i32
    return %c0_i32, %c0_i32_0 : i32, i32
  }
  func.func @transform_10(%arg0: i32) -> (i32, i32) {
    %c0_i32 = arith.constant 0 : i32
    %c0_i32_0 = arith.constant 0 : i32
    %c0_i32_1 = arith.constant 0 : i32
    return %c0_i32, %c0_i32_0 : i32, i32
  }
  func.func @transform_11(%arg0: i32) -> (i32, i32) {
    %c0_i32 = arith.constant 0 : i32
    %c0_i32_0 = arith.constant 0 : i32
    %c0_i32_1 = arith.constant 0 : i32
    return %c0_i32, %c0_i32_0 : i32, i32
  }
  func.func @transform_12(%arg0: i32) -> (i32, i32) {
    %c0_i32 = arith.constant 0 : i32
    %c0_i32_0 = arith.constant 0 : i32
    return %arg0, %c0_i32 : i32, i32
  }
}

module attributes {stable_mosaic.version = 11 : i64} {
  func.func @_linear_bias_kernel(%arg0: i32, %arg1: memref<16x128xf32, #tpu.memory_space<vmem>>, %arg2: memref<128x128xf32, #tpu.memory_space<vmem>>, %arg3: memref<1x128xf32, #tpu.memory_space<vmem>>, %arg4: memref<16x128xf32, #tpu.memory_space<vmem>>) attributes {dimension_semantics = [#tpu.dimension_semantics<parallel>], iteration_bounds = array<i64: 4>, scalar_prefetch = 0 : i64, scratch_operands = 0 : i64, tpu.core_type = #tpu.core_type<tc>, window_params = [{transform_indices = @transform_0, window_bounds = array<i64: 16, 128>}, {pipeline_mode = #tpu.pipeline_mode<synchronous>, transform_indices = @transform_1, window_bounds = array<i64: 128, 128>}, {pipeline_mode = #tpu.pipeline_mode<synchronous>, transform_indices = @transform_2, window_bounds = array<i64: 1, 128>}, {transform_indices = @transform_3, window_bounds = array<i64: 16, 128>}]} {
    %c0 = arith.constant 0 : index
    %c0_0 = arith.constant 0 : index
    %0 = vector.load %arg1[%c0, %c0_0] : memref<16x128xf32, #tpu.memory_space<vmem>>, vector<16x128xf32>
    %c0_1 = arith.constant 0 : index
    %c0_2 = arith.constant 0 : index
    %1 = vector.load %arg2[%c0_1, %c0_2] : memref<128x128xf32, #tpu.memory_space<vmem>>, vector<128x128xf32>
    %cst = arith.constant dense<0.000000e+00> : vector<16x128xf32>
    %2 = tpu.matmul %0, %1, %cst {dimension_numbers = #tpu.dot_dimension_numbers<[1], [0], [0], [1], [0, 0, 1, 1], [], []>} : vector<16x128xf32>, vector<128x128xf32>, vector<16x128xf32> -> vector<16x128xf32>
    %c0_3 = arith.constant 0 : index
    %c0_4 = arith.constant 0 : index
    %3 = vector.load %arg3[%c0_3, %c0_4] : memref<1x128xf32, #tpu.memory_space<vmem>>, vector<1x128xf32>
    %4 = vector.broadcast %3 : vector<1x128xf32> to vector<16x128xf32>
    %5 = arith.addf %2, %4 : vector<16x128xf32>
    %c0_5 = arith.constant 0 : index
    %c0_6 = arith.constant 0 : index
    %6 = vector.load %arg4[%c0_5, %c0_6] : memref<16x128xf32, #tpu.memory_space<vmem>>, vector<16x128xf32>
    tpu.vector_store %arg4[%c0_5, %c0_6], %5 {strides = array<i32>} : memref<16x128xf32, #tpu.memory_space<vmem>>, vector<16x128xf32>,
    return
  }
  func.func @transform_0(%arg0: i32) -> (i32, i32) {
    %c0_i32 = arith.constant 0 : i32
    %c0_i32_0 = arith.constant 0 : i32
    return %arg0, %c0_i32 : i32, i32
  }
  func.func @transform_1(%arg0: i32) -> (i32, i32) {
    %c0_i32 = arith.constant 0 : i32
    %c0_i32_0 = arith.constant 0 : i32
    %c0_i32_1 = arith.constant 0 : i32
    return %c0_i32, %c0_i32_0 : i32, i32
  }
  func.func @transform_2(%arg0: i32) -> (i32, i32) {
    %c0_i32 = arith.constant 0 : i32
    %c0_i32_0 = arith.constant 0 : i32
    %c0_i32_1 = arith.constant 0 : i32
    return %c0_i32, %c0_i32_0 : i32, i32
  }
  func.func @transform_3(%arg0: i32) -> (i32, i32) {
    %c0_i32 = arith.constant 0 : i32
    %c0_i32_0 = arith.constant 0 : i32
    return %arg0, %c0_i32 : i32, i32
  }
}

module attributes {stable_mosaic.version = 11 : i64} {
  func.func @_encoder_layer_kernel(%arg0: i32, %arg1: memref<16x128xf32, #tpu.memory_space<vmem>>, %arg2: memref<128x512xf32, #tpu.memory_space<vmem>>, %arg3: memref<512x128xf32, #tpu.memory_space<vmem>>, %arg4: memref<1x128xf32, #tpu.memory_space<vmem>>, %arg5: memref<1x128xf32, #tpu.memory_space<vmem>>, %arg6: memref<1x128xf32, #tpu.memory_space<vmem>>, %arg7: memref<128x128xf32, #tpu.memory_space<vmem>>, %arg8: memref<1x128xf32, #tpu.memory_space<vmem>>, %arg9: memref<128x128xf32, #tpu.memory_space<vmem>>, %arg10: memref<1x128xf32, #tpu.memory_space<vmem>>, %arg11: memref<1x128xf32, #tpu.memory_space<vmem>>, %arg12: memref<1x128xf32, #tpu.memory_space<vmem>>, %arg13: memref<16x128xf32, #tpu.memory_space<vmem>>) attributes {dimension_semantics = [#tpu.dimension_semantics<parallel>], iteration_bounds = array<i64: 4>, scalar_prefetch = 0 : i64, scratch_operands = 0 : i64, tpu.core_type = #tpu.core_type<tc>, window_params = [{transform_indices = @transform_0, window_bounds = array<i64: 16, 128>}, {pipeline_mode = #tpu.pipeline_mode<synchronous>, transform_indices = @transform_1, window_bounds = array<i64: 128, 512>}, {pipeline_mode = #tpu.pipeline_mode<synchronous>, transform_indices = @transform_2, window_bounds = array<i64: 512, 128>}, {pipeline_mode = #tpu.pipeline_mode<synchronous>, transform_indices = @transform_3, window_bounds = array<i64: 1, 128>}, {pipeline_mode = #tpu.pipeline_mode<synchronous>, transform_indices = @transform_4, window_bounds = array<i64: 1, 128>}, {pipeline_mode = #tpu.pipeline_mode<synchronous>, transform_indices = @transform_5, window_bounds = array<i64: 1, 128>}, {pipeline_mode = #tpu.pipeline_mode<synchronous>, transform_indices = @transform_6, window_bounds = array<i64: 128, 128>}, {pipeline_mode = #tpu.pipeline_mode<synchronous>, transform_indices = @transform_7, window_bounds = array<i64: 1, 128>}, {pipeline_mode = #tpu.pipeline_mode<synchronous>, transform_indices = @transform_8, window_bounds = array<i64: 128, 128>}, {pipeline_mode = #tpu.pipeline_mode<synchronous>, transform_indices = @transform_9, window_bounds = array<i64: 1, 128>}, {pipeline_mode = #tpu.pipeline_mode<synchronous>, transform_indices = @transform_10, window_bounds = array<i64: 1, 128>}, {pipeline_mode = #tpu.pipeline_mode<synchronous>, transform_indices = @transform_11, window_bounds = array<i64: 1, 128>}, {transform_indices = @transform_12, window_bounds = array<i64: 16, 128>}]} {
    %c0 = arith.constant 0 : index
    %c0_0 = arith.constant 0 : index
    %0 = vector.load %arg1[%c0, %c0_0] : memref<16x128xf32, #tpu.memory_space<vmem>>, vector<16x128xf32>
    %c0_1 = arith.constant 0 : index
    %c0_2 = arith.constant 0 : index
    %1 = vector.load %arg2[%c0_1, %c0_2] : memref<128x512xf32, #tpu.memory_space<vmem>>, vector<128x512xf32>
    %cst = arith.constant dense<0.000000e+00> : vector<16x512xf32>
    %2 = tpu.matmul %0, %1, %cst {dimension_numbers = #tpu.dot_dimension_numbers<[1], [0], [0], [1], [0, 0, 1, 1], [], []>} : vector<16x128xf32>, vector<128x512xf32>, vector<16x512xf32> -> vector<16x512xf32>
    %3 = vector.extract_strided_slice %2 {offsets = [0, 0], sizes = [16, 128], strides = [1, 1]} : vector<16x512xf32> to vector<16x128xf32>
    %cst_3 = arith.constant dense<0.000000e+00> : vector<16x16xf32>
    %4 = tpu.matmul %3, %0, %cst_3 {dimension_numbers = #tpu.dot_dimension_numbers<[1], [1], [0], [0], [0, 0, 1, 0], [], []>} : vector<16x128xf32>, vector<16x128xf32>, vector<16x16xf32> -> vector<16x16xf32>
    %5 = arith.mulf %3, %0 : vector<16x128xf32>
    %cst_4 = arith.constant dense<0.000000e+00> : vector<16xf32>
    %6 = vector.multi_reduction <add>, %5, %cst_4 [1] : vector<16x128xf32> to vector<16xf32>
    %7 = vector.shape_cast %6 : vector<16xf32> to vector<16x1xf32>
    %cst_5 = arith.constant 2.000000e+00 : f32
    %8 = vector.broadcast %cst_5 : f32 to vector<16x16xf32>
    %9 = arith.mulf %8, %4 : vector<16x16xf32>
    %10 = vector.broadcast %7 : vector<16x1xf32> to vector<16x16xf32>
    %11 = arith.subf %9, %10 : vector<16x16xf32>
    %12 = tpu.transpose %7, [1, 0] : vector<16x1xf32> -> vector<1x16xf32>
    %13 = vector.broadcast %12 : vector<1x16xf32> to vector<16x16xf32>
    %14 = arith.subf %11, %13 : vector<16x16xf32>
    %cst_6 = arith.constant dense<0xFF800000> : vector<16xf32>
    %15 = vector.multi_reduction <maximumf>, %14, %cst_6 [1] : vector<16x16xf32> to vector<16xf32>
    %16 = vector.shape_cast %15 : vector<16xf32> to vector<16x1xf32>
    %17 = vector.broadcast %16 : vector<16x1xf32> to vector<16x16xf32>
    %18 = arith.subf %14, %17 : vector<16x16xf32>
    %19 = math.exp %18 : vector<16x16xf32>
    %cst_7 = arith.constant dense<0.000000e+00> : vector<16xf32>
    %20 = vector.multi_reduction <add>, %19, %cst_7 [1] : vector<16x16xf32> to vector<16xf32>
    %21 = vector.shape_cast %20 : vector<16xf32> to vector<16x1xf32>
    %22 = tpu.reciprocal %21 {approx = true} : vector<16x1xf32> -> vector<16x1xf32>
    %23 = vector.broadcast %22 : vector<16x1xf32> to vector<16x16xf32>
    %24 = arith.mulf %19, %23 : vector<16x16xf32>
    %cst_8 = arith.constant dense<0.000000e+00> : vector<16x128xf32>
    %25 = tpu.matmul %24, %3, %cst_8 {dimension_numbers = #tpu.dot_dimension_numbers<[1], [0], [0], [1], [0, 0, 1, 1], [], []>} : vector<16x16xf32>, vector<16x128xf32>, vector<16x128xf32> -> vector<16x128xf32>
    %26 = vector.extract_strided_slice %2 {offsets = [0, 128], sizes = [16, 128], strides = [1, 1]} : vector<16x512xf32> to vector<16x128xf32>
    %cst_9 = arith.constant dense<0.000000e+00> : vector<16x16xf32>
    %27 = tpu.matmul %26, %0, %cst_9 {dimension_numbers = #tpu.dot_dimension_numbers<[1], [1], [0], [0], [0, 0, 1, 0], [], []>} : vector<16x128xf32>, vector<16x128xf32>, vector<16x16xf32> -> vector<16x16xf32>
    %28 = arith.mulf %26, %0 : vector<16x128xf32>
    %cst_10 = arith.constant dense<0.000000e+00> : vector<16xf32>
    %29 = vector.multi_reduction <add>, %28, %cst_10 [1] : vector<16x128xf32> to vector<16xf32>
    %30 = vector.shape_cast %29 : vector<16xf32> to vector<16x1xf32>
    %cst_11 = arith.constant 2.000000e+00 : f32
    %31 = vector.broadcast %cst_11 : f32 to vector<16x16xf32>
    %32 = arith.mulf %31, %27 : vector<16x16xf32>
    %33 = vector.broadcast %30 : vector<16x1xf32> to vector<16x16xf32>
    %34 = arith.subf %32, %33 : vector<16x16xf32>
    %35 = tpu.transpose %30, [1, 0] : vector<16x1xf32> -> vector<1x16xf32>
    %36 = vector.broadcast %35 : vector<1x16xf32> to vector<16x16xf32>
    %37 = arith.subf %34, %36 : vector<16x16xf32>
    %cst_12 = arith.constant dense<0xFF800000> : vector<16xf32>
    %38 = vector.multi_reduction <maximumf>, %37, %cst_12 [1] : vector<16x16xf32> to vector<16xf32>
    %39 = vector.shape_cast %38 : vector<16xf32> to vector<16x1xf32>
    %40 = vector.broadcast %39 : vector<16x1xf32> to vector<16x16xf32>
    %41 = arith.subf %37, %40 : vector<16x16xf32>
    %42 = math.exp %41 : vector<16x16xf32>
    %cst_13 = arith.constant dense<0.000000e+00> : vector<16xf32>
    %43 = vector.multi_reduction <add>, %42, %cst_13 [1] : vector<16x16xf32> to vector<16xf32>
    %44 = vector.shape_cast %43 : vector<16xf32> to vector<16x1xf32>
    %45 = tpu.reciprocal %44 {approx = true} : vector<16x1xf32> -> vector<16x1xf32>
    %46 = vector.broadcast %45 : vector<16x1xf32> to vector<16x16xf32>
    %47 = arith.mulf %42, %46 : vector<16x16xf32>
    %cst_14 = arith.constant dense<0.000000e+00> : vector<16x128xf32>
    %48 = tpu.matmul %47, %26, %cst_14 {dimension_numbers = #tpu.dot_dimension_numbers<[1], [0], [0], [1], [0, 0, 1, 1], [], []>} : vector<16x16xf32>, vector<16x128xf32>, vector<16x128xf32> -> vector<16x128xf32>
    %49 = vector.extract_strided_slice %2 {offsets = [0, 256], sizes = [16, 128], strides = [1, 1]} : vector<16x512xf32> to vector<16x128xf32>
    %cst_15 = arith.constant dense<0.000000e+00> : vector<16x16xf32>
    %50 = tpu.matmul %49, %0, %cst_15 {dimension_numbers = #tpu.dot_dimension_numbers<[1], [1], [0], [0], [0, 0, 1, 0], [], []>} : vector<16x128xf32>, vector<16x128xf32>, vector<16x16xf32> -> vector<16x16xf32>
    %51 = arith.mulf %49, %0 : vector<16x128xf32>
    %cst_16 = arith.constant dense<0.000000e+00> : vector<16xf32>
    %52 = vector.multi_reduction <add>, %51, %cst_16 [1] : vector<16x128xf32> to vector<16xf32>
    %53 = vector.shape_cast %52 : vector<16xf32> to vector<16x1xf32>
    %cst_17 = arith.constant 2.000000e+00 : f32
    %54 = vector.broadcast %cst_17 : f32 to vector<16x16xf32>
    %55 = arith.mulf %54, %50 : vector<16x16xf32>
    %56 = vector.broadcast %53 : vector<16x1xf32> to vector<16x16xf32>
    %57 = arith.subf %55, %56 : vector<16x16xf32>
    %58 = tpu.transpose %53, [1, 0] : vector<16x1xf32> -> vector<1x16xf32>
    %59 = vector.broadcast %58 : vector<1x16xf32> to vector<16x16xf32>
    %60 = arith.subf %57, %59 : vector<16x16xf32>
    %cst_18 = arith.constant dense<0xFF800000> : vector<16xf32>
    %61 = vector.multi_reduction <maximumf>, %60, %cst_18 [1] : vector<16x16xf32> to vector<16xf32>
    %62 = vector.shape_cast %61 : vector<16xf32> to vector<16x1xf32>
    %63 = vector.broadcast %62 : vector<16x1xf32> to vector<16x16xf32>
    %64 = arith.subf %60, %63 : vector<16x16xf32>
    %65 = math.exp %64 : vector<16x16xf32>
    %cst_19 = arith.constant dense<0.000000e+00> : vector<16xf32>
    %66 = vector.multi_reduction <add>, %65, %cst_19 [1] : vector<16x16xf32> to vector<16xf32>
    %67 = vector.shape_cast %66 : vector<16xf32> to vector<16x1xf32>
    %68 = tpu.reciprocal %67 {approx = true} : vector<16x1xf32> -> vector<16x1xf32>
    %69 = vector.broadcast %68 : vector<16x1xf32> to vector<16x16xf32>
    %70 = arith.mulf %65, %69 : vector<16x16xf32>
    %cst_20 = arith.constant dense<0.000000e+00> : vector<16x128xf32>
    %71 = tpu.matmul %70, %49, %cst_20 {dimension_numbers = #tpu.dot_dimension_numbers<[1], [0], [0], [1], [0, 0, 1, 1], [], []>} : vector<16x16xf32>, vector<16x128xf32>, vector<16x128xf32> -> vector<16x128xf32>
    %72 = vector.extract_strided_slice %2 {offsets = [0, 384], sizes = [16, 128], strides = [1, 1]} : vector<16x512xf32> to vector<16x128xf32>
    %cst_21 = arith.constant dense<0.000000e+00> : vector<16x16xf32>
    %73 = tpu.matmul %72, %0, %cst_21 {dimension_numbers = #tpu.dot_dimension_numbers<[1], [1], [0], [0], [0, 0, 1, 0], [], []>} : vector<16x128xf32>, vector<16x128xf32>, vector<16x16xf32> -> vector<16x16xf32>
    %74 = arith.mulf %72, %0 : vector<16x128xf32>
    %cst_22 = arith.constant dense<0.000000e+00> : vector<16xf32>
    %75 = vector.multi_reduction <add>, %74, %cst_22 [1] : vector<16x128xf32> to vector<16xf32>
    %76 = vector.shape_cast %75 : vector<16xf32> to vector<16x1xf32>
    %cst_23 = arith.constant 2.000000e+00 : f32
    %77 = vector.broadcast %cst_23 : f32 to vector<16x16xf32>
    %78 = arith.mulf %77, %73 : vector<16x16xf32>
    %79 = vector.broadcast %76 : vector<16x1xf32> to vector<16x16xf32>
    %80 = arith.subf %78, %79 : vector<16x16xf32>
    %81 = tpu.transpose %76, [1, 0] : vector<16x1xf32> -> vector<1x16xf32>
    %82 = vector.broadcast %81 : vector<1x16xf32> to vector<16x16xf32>
    %83 = arith.subf %80, %82 : vector<16x16xf32>
    %cst_24 = arith.constant dense<0xFF800000> : vector<16xf32>
    %84 = vector.multi_reduction <maximumf>, %83, %cst_24 [1] : vector<16x16xf32> to vector<16xf32>
    %85 = vector.shape_cast %84 : vector<16xf32> to vector<16x1xf32>
    %86 = vector.broadcast %85 : vector<16x1xf32> to vector<16x16xf32>
    %87 = arith.subf %83, %86 : vector<16x16xf32>
    %88 = math.exp %87 : vector<16x16xf32>
    %cst_25 = arith.constant dense<0.000000e+00> : vector<16xf32>
    %89 = vector.multi_reduction <add>, %88, %cst_25 [1] : vector<16x16xf32> to vector<16xf32>
    %90 = vector.shape_cast %89 : vector<16xf32> to vector<16x1xf32>
    %91 = tpu.reciprocal %90 {approx = true} : vector<16x1xf32> -> vector<16x1xf32>
    %92 = vector.broadcast %91 : vector<16x1xf32> to vector<16x16xf32>
    %93 = arith.mulf %88, %92 : vector<16x16xf32>
    %cst_26 = arith.constant dense<0.000000e+00> : vector<16x128xf32>
    %94 = tpu.matmul %93, %72, %cst_26 {dimension_numbers = #tpu.dot_dimension_numbers<[1], [0], [0], [1], [0, 0, 1, 1], [], []>} : vector<16x16xf32>, vector<16x128xf32>, vector<16x128xf32> -> vector<16x128xf32>
    %95 = tpu.concatenate %25, %48, %71, %94 in 1 : vector<16x128xf32>, vector<16x128xf32>, vector<16x128xf32>, vector<16x128xf32> -> vector<16x512xf32>
    %c0_27 = arith.constant 0 : index
    %c0_28 = arith.constant 0 : index
    %96 = vector.load %arg3[%c0_27, %c0_28] : memref<512x128xf32, #tpu.memory_space<vmem>>, vector<512x128xf32>
    %cst_29 = arith.constant dense<0.000000e+00> : vector<16x128xf32>
    %97 = tpu.matmul %95, %96, %cst_29 {dimension_numbers = #tpu.dot_dimension_numbers<[1], [0], [0], [1], [0, 0, 1, 1], [], []>} : vector<16x512xf32>, vector<512x128xf32>, vector<16x128xf32> -> vector<16x128xf32>
    %c0_30 = arith.constant 0 : index
    %c0_31 = arith.constant 0 : index
    %98 = vector.load %arg4[%c0_30, %c0_31] : memref<1x128xf32, #tpu.memory_space<vmem>>, vector<1x128xf32>
    %99 = vector.broadcast %98 : vector<1x128xf32> to vector<16x128xf32>
    %100 = arith.addf %97, %99 : vector<16x128xf32>
    %101 = arith.addf %0, %100 : vector<16x128xf32>
    %c0_32 = arith.constant 0 : index
    %c0_33 = arith.constant 0 : index
    %102 = vector.load %arg6[%c0_32, %c0_33] : memref<1x128xf32, #tpu.memory_space<vmem>>, vector<1x128xf32>
    %103 = vector.broadcast %102 : vector<1x128xf32> to vector<16x128xf32>
    %104 = arith.addf %101, %103 : vector<16x128xf32>
    %c0_34 = arith.constant 0 : index
    %c0_35 = arith.constant 0 : index
    %105 = vector.load %arg5[%c0_34, %c0_35] : memref<1x128xf32, #tpu.memory_space<vmem>>, vector<1x128xf32>
    %106 = vector.broadcast %105 : vector<1x128xf32> to vector<16x128xf32>
    %107 = arith.mulf %104, %106 : vector<16x128xf32>
    %c0_36 = arith.constant 0 : index
    %c0_37 = arith.constant 0 : index
    %108 = vector.load %arg7[%c0_36, %c0_37] : memref<128x128xf32, #tpu.memory_space<vmem>>, vector<128x128xf32>
    %cst_38 = arith.constant dense<0.000000e+00> : vector<16x128xf32>
    %109 = tpu.matmul %107, %108, %cst_38 {dimension_numbers = #tpu.dot_dimension_numbers<[1], [0], [0], [1], [0, 0, 1, 1], [], []>} : vector<16x128xf32>, vector<128x128xf32>, vector<16x128xf32> -> vector<16x128xf32>
    %c0_39 = arith.constant 0 : index
    %c0_40 = arith.constant 0 : index
    %110 = vector.load %arg8[%c0_39, %c0_40] : memref<1x128xf32, #tpu.memory_space<vmem>>, vector<1x128xf32>
    %111 = vector.broadcast %110 : vector<1x128xf32> to vector<16x128xf32>
    %112 = arith.addf %109, %111 : vector<16x128xf32>
    %cst_41 = arith.constant 0.000000e+00 : f32
    %113 = vector.broadcast %cst_41 : f32 to vector<16x128xf32>
    %114 = arith.maximumf %112, %113 : vector<16x128xf32>
    %c0_42 = arith.constant 0 : index
    %c0_43 = arith.constant 0 : index
    %115 = vector.load %arg9[%c0_42, %c0_43] : memref<128x128xf32, #tpu.memory_space<vmem>>, vector<128x128xf32>
    %cst_44 = arith.constant dense<0.000000e+00> : vector<16x128xf32>
    %116 = tpu.matmul %114, %115, %cst_44 {dimension_numbers = #tpu.dot_dimension_numbers<[1], [0], [0], [1], [0, 0, 1, 1], [], []>} : vector<16x128xf32>, vector<128x128xf32>, vector<16x128xf32> -> vector<16x128xf32>
    %c0_45 = arith.constant 0 : index
    %c0_46 = arith.constant 0 : index
    %117 = vector.load %arg10[%c0_45, %c0_46] : memref<1x128xf32, #tpu.memory_space<vmem>>, vector<1x128xf32>
    %118 = vector.broadcast %117 : vector<1x128xf32> to vector<16x128xf32>
    %119 = arith.addf %116, %118 : vector<16x128xf32>
    %120 = arith.addf %107, %119 : vector<16x128xf32>
    %c0_47 = arith.constant 0 : index
    %c0_48 = arith.constant 0 : index
    %121 = vector.load %arg12[%c0_47, %c0_48] : memref<1x128xf32, #tpu.memory_space<vmem>>, vector<1x128xf32>
    %122 = vector.broadcast %121 : vector<1x128xf32> to vector<16x128xf32>
    %123 = arith.addf %120, %122 : vector<16x128xf32>
    %c0_49 = arith.constant 0 : index
    %c0_50 = arith.constant 0 : index
    %124 = vector.load %arg11[%c0_49, %c0_50] : memref<1x128xf32, #tpu.memory_space<vmem>>, vector<1x128xf32>
    %125 = vector.broadcast %124 : vector<1x128xf32> to vector<16x128xf32>
    %126 = arith.mulf %123, %125 : vector<16x128xf32>
    %c0_51 = arith.constant 0 : index
    %c0_52 = arith.constant 0 : index
    %127 = vector.load %arg13[%c0_51, %c0_52] : memref<16x128xf32, #tpu.memory_space<vmem>>, vector<16x128xf32>
    tpu.vector_store %arg13[%c0_51, %c0_52], %126 {strides = array<i32>} : memref<16x128xf32, #tpu.memory_space<vmem>>, vector<16x128xf32>,
    return
  }
  func.func @transform_0(%arg0: i32) -> (i32, i32) {
    %c0_i32 = arith.constant 0 : i32
    %c0_i32_0 = arith.constant 0 : i32
    return %arg0, %c0_i32 : i32, i32
  }
  func.func @transform_1(%arg0: i32) -> (i32, i32) {
    %c0_i32 = arith.constant 0 : i32
    %c0_i32_0 = arith.constant 0 : i32
    %c0_i32_1 = arith.constant 0 : i32
    return %c0_i32, %c0_i32_0 : i32, i32
  }
  func.func @transform_2(%arg0: i32) -> (i32, i32) {
    %c0_i32 = arith.constant 0 : i32
    %c0_i32_0 = arith.constant 0 : i32
    %c0_i32_1 = arith.constant 0 : i32
    return %c0_i32, %c0_i32_0 : i32, i32
  }
  func.func @transform_3(%arg0: i32) -> (i32, i32) {
    %c0_i32 = arith.constant 0 : i32
    %c0_i32_0 = arith.constant 0 : i32
    %c0_i32_1 = arith.constant 0 : i32
    return %c0_i32, %c0_i32_0 : i32, i32
  }
  func.func @transform_4(%arg0: i32) -> (i32, i32) {
    %c0_i32 = arith.constant 0 : i32
    %c0_i32_0 = arith.constant 0 : i32
    %c0_i32_1 = arith.constant 0 : i32
    return %c0_i32, %c0_i32_0 : i32, i32
  }
  func.func @transform_5(%arg0: i32) -> (i32, i32) {
    %c0_i32 = arith.constant 0 : i32
    %c0_i32_0 = arith.constant 0 : i32
    %c0_i32_1 = arith.constant 0 : i32
    return %c0_i32, %c0_i32_0 : i32, i32
  }
  func.func @transform_6(%arg0: i32) -> (i32, i32) {
    %c0_i32 = arith.constant 0 : i32
    %c0_i32_0 = arith.constant 0 : i32
    %c0_i32_1 = arith.constant 0 : i32
    return %c0_i32, %c0_i32_0 : i32, i32
  }
  func.func @transform_7(%arg0: i32) -> (i32, i32) {
    %c0_i32 = arith.constant 0 : i32
    %c0_i32_0 = arith.constant 0 : i32
    %c0_i32_1 = arith.constant 0 : i32
    return %c0_i32, %c0_i32_0 : i32, i32
  }
  func.func @transform_8(%arg0: i32) -> (i32, i32) {
    %c0_i32 = arith.constant 0 : i32
    %c0_i32_0 = arith.constant 0 : i32
    %c0_i32_1 = arith.constant 0 : i32
    return %c0_i32, %c0_i32_0 : i32, i32
  }
  func.func @transform_9(%arg0: i32) -> (i32, i32) {
    %c0_i32 = arith.constant 0 : i32
    %c0_i32_0 = arith.constant 0 : i32
    %c0_i32_1 = arith.constant 0 : i32
    return %c0_i32, %c0_i32_0 : i32, i32
  }
  func.func @transform_10(%arg0: i32) -> (i32, i32) {
    %c0_i32 = arith.constant 0 : i32
    %c0_i32_0 = arith.constant 0 : i32
    %c0_i32_1 = arith.constant 0 : i32
    return %c0_i32, %c0_i32_0 : i32, i32
  }
  func.func @transform_11(%arg0: i32) -> (i32, i32) {
    %c0_i32 = arith.constant 0 : i32
    %c0_i32_0 = arith.constant 0 : i32
    %c0_i32_1 = arith.constant 0 : i32
    return %c0_i32, %c0_i32_0 : i32, i32
  }
  func.func @transform_12(%arg0: i32) -> (i32, i32) {
    %c0_i32 = arith.constant 0 : i32
    %c0_i32_0 = arith.constant 0 : i32
    return %arg0, %c0_i32 : i32, i32
  }
}

</mosaic_0001>

<llo_original>
// kernel: diffeq_transformer_forward.4
$region0: #{diffeq_transformer_forward.4}
  #allocation0 [shape = 'u32[]', space=smem, size = 0x4, offset = 0x4, fixed_abs, tag = 'smem constant byte address 0x4 - core index']
  #allocation1 [shape = 'u32[144,128]{1,0:T(1,128)}', space=vmem, size = 0x12000, scoped, tag = 'internal scratch']
  %s0 = inlined_call_operand.vmem [shape: f32[64,4], index: 0, kind: input, shape index: {}]
  %s1 = inlined_call_operand.vmem [shape: f32[4,128], index: 1, kind: input, shape index: {}]
  %s2 = inlined_call_operand.vmem [shape: f32[1,128], index: 2, kind: input, shape index: {}]
  %s3 = inlined_call_operand.vmem [shape: f32[64,128], index: 3, kind: output, shape index: {}]
  %s4 = sld [smem:[#allocation0]]
  $region45: #{diffeq_transformer_forward.4} parent=0
    _
  %s6 = ssub.s32 1, %s4
  %s7 = scalar_select 0, %s6, %s4
  loop: start=0, step=1, limit=6
  $region2: #{diffeq_transformer_forward.4} parent=0 // loop_pre_header
    _
  $region3: #{diffeq_transformer_forward.4} parent=0 // loop_header
    %s9 = sphi 0, %s13
    %p10 = scmp.ge.s32.totalorder %s9, 6
    %s19 = sphi 0, %s21
    %s22 = sphi 0, %s19
    %s23 = sphi 0, %s22
    %s39 = sphi 0, %s23
    %s43 = sphi 0, %s43
    %s45 = sphi 0, %s43
    %s46 = sphi 0, %s45
    %s60 = sphi 0, %s46
    %s64 = sphi 0, %s64
    %s66 = sphi 0, %s64
    %s67 = sphi 0, %s66
    %s81 = sphi 0, %s67
    %s87 = sphi 0, %s89
    %s90 = sphi 0, %s87
    %s91 = sphi 0, %s90
    %s107 = sphi 0, %s91
  $region4: #{diffeq_transformer_forward.4} parent=0 // loop_header_branch
    %12 = sbr.rel (%p10) target = $region8
  $region5: #{diffeq_transformer_forward.4} parent=0 // loop_body
    %s14 = ssub.s32 %s9, 1
    %s15 = ssub.s32 %s9, 2
    %s16 = sadd.s32 %s9, 1
    %s17 = ssub.s32 %s9, %s16
    %p18 = scmp.eq.s32.totalorder %s17, 0
    %s20 = sadd.s32 %s19, 1
    %s21 = scalar_select %p18, %s19, %s20
    %p24 = pneg %p18
    %p25 = scmp.eq.s32.totalorder %s9, 3
    %p26 = por %p24, %p25
    %p27 = scmp.ne.s32.totalorder %s19, %s22
    %p28 = scmp.eq.s32.totalorder %s9, 0
    %p29 = por %p27, %p28
    %p30 = scmp.ne.s32.totalorder %s19, %s22
    %p31 = scmp.eq.s32.totalorder %s14, 3
    %p32 = por %p30, %p31
    %p33 = scmp.ne.s32.totalorder %s22, %s23
    %p34 = scmp.eq.s32.totalorder %s14, 0
    %p35 = por %p33, %p34
    %p36 = scmp.ne.s32.totalorder %s22, %s23
    %p37 = scmp.eq.s32.totalorder %s15, 3
    %p38 = por %p36, %p37
    %p40 = scmp.ne.s32.totalorder %s23, %s39
    %p41 = scmp.eq.s32.totalorder %s15, 0
    %p42 = por %p40, %p41
    %s44 = sadd.s32 %s43, 1
    %p47 = scmp.eq.s32.totalorder %s9, 3
    %p48 = scmp.ne.s32.totalorder %s43, %s45
    %p49 = scmp.eq.s32.totalorder %s9, 0
    %p50 = por %p48, %p49
    %p51 = scmp.ne.s32.totalorder %s43, %s45
    %p52 = scmp.eq.s32.totalorder %s14, 3
    %p53 = por %p51, %p52
    %p54 = scmp.ne.s32.totalorder %s45, %s46
    %p55 = scmp.eq.s32.totalorder %s14, 0
    %p56 = por %p54, %p55
    %p57 = scmp.ne.s32.totalorder %s45, %s46
    %p58 = scmp.eq.s32.totalorder %s15, 3
    %p59 = por %p57, %p58
    %p61 = scmp.ne.s32.totalorder %s46, %s60
    %p62 = scmp.eq.s32.totalorder %s15, 0
    %p63 = por %p61, %p62
    %s65 = sadd.s32 %s64, 1
    %p68 = scmp.eq.s32.totalorder %s9, 3
    %p69 = scmp.ne.s32.totalorder %s64, %s66
    %p70 = scmp.eq.s32.totalorder %s9, 0
    %p71 = por %p69, %p70
    %p72 = scmp.ne.s32.totalorder %s64, %s66
    %p73 = scmp.eq.s32.totalorder %s14, 3
    %p74 = por %p72, %p73
    %p75 = scmp.ne.s32.totalorder %s66, %s67
    %p76 = scmp.eq.s32.totalorder %s14, 0
    %p77 = por %p75, %p76
    %p78 = scmp.ne.s32.totalorder %s66, %s67
    %p79 = scmp.eq.s32.totalorder %s15, 3
    %p80 = por %p78, %p79
    %p82 = scmp.ne.s32.totalorder %s67, %s81
    %p83 = scmp.eq.s32.totalorder %s15, 0
    %p84 = por %p82, %p83
    %s85 = ssub.s32 %s9, %s16
    %p86 = scmp.eq.s32.totalorder %s85, 0
    %s88 = sadd.s32 %s87, 1
    %s89 = scalar_select %p86, %s87, %s88
    %p92 = pneg %p86
    %p93 = scmp.eq.s32.totalorder %s9, 3
    %p94 = por %p92, %p93
    %p95 = scmp.ne.s32.totalorder %s87, %s90
    %p96 = scmp.eq.s32.totalorder %s9, 0
    %p97 = por %p95, %p96
    %p98 = scmp.ne.s32.totalorder %s87, %s90
    %p99 = scmp.eq.s32.totalorder %s14, 3
    %p100 = por %p98, %p99
    %p101 = scmp.ne.s32.totalorder %s90, %s91
    %p102 = scmp.eq.s32.totalorder %s14, 0
    %p103 = por %p101, %p102
    %p104 = scmp.ne.s32.totalorder %s90, %s91
    %p105 = scmp.eq.s32.totalorder %s15, 3
    %p106 = por %p104, %p105
    %p108 = scmp.ne.s32.totalorder %s91, %s107
    %p109 = scmp.eq.s32.totalorder %s15, 0
    %p110 = por %p108, %p109
    %p111 = scmp.le.s32.totalorder 1, %s9
    %p112 = scmp.lt.s32.totalorder %s9, 5
    %p113 = pnand %p111, %p112
    %p114 = pneg %p113
    // Predicated region
    $region9: #{diffeq_transformer_forward.4} parent=5 // pred_check
      _
    $region10: #{diffeq_transformer_forward.4} parent=5 // pred_check_branch
      %116 = sbr.rel (%p113) target = $region12
    $region11: #{diffeq_transformer_forward.4} parent=5 // pred_region
      %s117 = ssub.s32 %s9, 1
      // Predicated region
      $region13: #{diffeq_transformer_forward.4} parent=11 // pred_check
        %p118 = pneg %p56
      $region14: #{diffeq_transformer_forward.4} parent=11 // pred_check_branch
        %120 = sbr.rel (%p118) target = $region16
      $region15: #{diffeq_transformer_forward.4} parent=11 // pred_region
        _
      $region16: #{diffeq_transformer_forward.4} parent=11 // pred_fallthru
        _
      // Predicated region
      $region17: #{diffeq_transformer_forward.4} parent=11 // pred_check
        %p121 = pneg %p77
      $region18: #{diffeq_transformer_forward.4} parent=11 // pred_check_branch
        %123 = sbr.rel (%p121) target = $region20
      $region19: #{diffeq_transformer_forward.4} parent=11 // pred_region
        _
      $region20: #{diffeq_transformer_forward.4} parent=11 // pred_fallthru
        _
    $region12: #{diffeq_transformer_forward.4} parent=5 // pred_fallthru
      _
    %p124 = scmp.lt.s32.totalorder %s9, 4
    // Predicated region
    $region21: #{diffeq_transformer_forward.4} parent=5 // pred_check
      %p125 = pneg %p124
    $region22: #{diffeq_transformer_forward.4} parent=5 // pred_check_branch
      %127 = sbr.rel (%p125) target = $region24
    $region23: #{diffeq_transformer_forward.4} parent=5 // pred_region
      // Predicated region
      $region25: #{diffeq_transformer_forward.4} parent=23 // pred_check
        %p128 = pneg %p29
      $region26: #{diffeq_transformer_forward.4} parent=23 // pred_check_branch
        %130 = sbr.rel (%p128) target = $region28
      $region27: #{diffeq_transformer_forward.4} parent=23 // pred_region
        %s131 = smul.u32 2, %s9
        %p132 = scmp.lt.s32.totalorder %s131, 7
        %s133 = scalar_select %p132, %s131, 7
        %s134 = smul.addr %s133, 8
        %s135 = scalar_lea.vmem %s0, %s134
        %s136 = smul.u32 2, %s9
      $region28: #{diffeq_transformer_forward.4} parent=23 // pred_fallthru
        _
    $region24: #{diffeq_transformer_forward.4} parent=5 // pred_fallthru
      _
    %p137 = scmp.le.s32.totalorder 1, %s9
    %p138 = scmp.lt.s32.totalorder %s9, 5
    %p139 = pnand %p137, %p138
    %p140 = pneg %p139
    // Predicated region
    $region29: #{diffeq_transformer_forward.4} parent=5 // pred_check
      _
    $region30: #{diffeq_transformer_forward.4} parent=5 // pred_check_branch
      %142 = sbr.rel (%p139) target = $region32
    $region31: #{diffeq_transformer_forward.4} parent=5 // pred_region
      %s143 = ssub.s32 %s9, 1
      %s144 = smul.u32 2, %s14
      %p145 = scmp.lt.s32.totalorder %s144, 7
      %s146 = scalar_select %p145, %s144, 7
      %s147 = smul.addr %s146, 8
      %s148 = scalar_lea.vmem %s0, %s147
      %p149 = pneg %p35
      %p150 = pneg %p32
      %p151 = pneg %p56
      %p152 = pneg %p53
      %p153 = pneg %p77
      %p154 = pneg %p74
      %p155 = pneg %p103
      %p156 = pneg %p100
      %s157 = smul.u32 2, %s14
      %p158 = scmp.lt.s32.totalorder %s157, 7
      %s159 = scalar_select %p158, %s157, 7
      %s160 = smul.addr %s159, 8
      %s161 = scalar_lea.vmem %s3, %s160
      %s162 = smul.u32 2, %s14
      %p163 = scmp.lt.s32.totalorder %s162, 7
      %s164 = scalar_select %p163, %s162, 7
      %s165 = smul.addr %s164, 8
      %s166 = scalar_lea.vmem %s0, %s165
      %s167 = smul.u32 2, %s14
      %s168 = smul.u32 2, %s14
      %p169 = scmp.lt.s32.totalorder %s168, 7
      %s170 = scalar_select %p169, %s168, 7
      %s171 = smul.addr %s170, 8
      %s172 = scalar_lea.vmem %s3, %s171
      %s173 = smul.u32 2, %s14
      %v174 = vld [vmem:[%s166] sm:$0xff]
      %v175 = vld [vmem:[%s166 + $0x8] sm:$0xff]
      %v176 = vld [vmem:[%s1] sm:$0xf]
      %v177 = vld [vmem:[%s2] sm:$0x1]
      %v179 = vlaneseq
      %v180 = vshrl.u32 %v179, 7
      %v181 = vsub.s32 0, %v180
      %v182 = vrot.slane %v177, %v181
      %vm184 = vcmask 31744
      %v186 = vsel %vm184, %v174, 0
      %v189 = vsel %vm184, %v175, 0
      %vm191 = vcmask 1043456
      %v193 = vsel %vm191, %v176, 0
      %195 = vmatprep.subr.mxu0 0.0
      %196 = vmatpush1.msra.mxu0 %v193
      %197 = vmatprep.subr.mxu0 0.0
      %198 = vmatpush1.msra.mxu0 0.0
      %199 = vmatprep.subr.mxu0 0.0
      %200 = vmatpush1.msra.mxu0 0.0
      %201 = vmatprep.subr.mxu0 0.0
      %202 = vmatpush1.msra.mxu0 0.0
      %203 = vmatprep.subr.mxu0 0.0
      %204 = vmatpush1.msra.mxu0 0.0
      %205 = vmatprep.subr.mxu0 0.0
      %206 = vmatpush1.msra.mxu0 0.0
      %207 = vmatprep.subr.mxu0 0.0
      %208 = vmatpush1.msra.mxu0 0.0
      %209 = vmatprep.subr.mxu0 0.0
      %210 = vmatpush1.msra.mxu0 0.0
      %211 = vmatprep.subr.mxu0 0.0
      %212 = vmatpush1.msra.mxu0 0.0
      %213 = vmatprep.subr.mxu0 0.0
      %214 = vmatpush1.msra.mxu0 0.0
      %215 = vmatprep.subr.mxu0 0.0
      %216 = vmatpush1.msra.mxu0 0.0
      %217 = vmatprep.subr.mxu0 0.0
      %218 = vmatpush1.msra.mxu0 0.0
      %219 = vmatprep.subr.mxu0 0.0
      %220 = vmatpush1.msra.mxu0 0.0
      %221 = vmatprep.subr.mxu0 0.0
      %222 = vmatpush1.msra.mxu0 0.0
      %223 = vmatprep.subr.mxu0 0.0
      %224 = vmatpush1.msra.mxu0 0.0
      %225 = vmatprep.subr.mxu0 0.0
      %226 = vmatpush1.msra.mxu0 0.0
      %227 = vmatprep.subr.mxu0 0.0
      %228 = vmatpush1.msra.mxu0 0.0
      %229 = vmatprep.subr.mxu0 0.0
      %230 = vmatpush1.msra.mxu0 0.0
      %231 = vmatprep.subr.mxu0 0.0
      %232 = vmatpush1.msra.mxu0 0.0
      %233 = vmatprep.subr.mxu0 0.0
      %234 = vmatpush1.msra.mxu0 0.0
      %235 = vmatprep.subr.mxu0 0.0
      %236 = vmatpush1.msra.mxu0 0.0
      %237 = vmatprep.subr.mxu0 0.0
      %238 = vmatpush1.msra.mxu0 0.0
      %239 = vmatprep.subr.mxu0 0.0
      %240 = vmatpush1.msra.mxu0 0.0
      %241 = vmatprep.subr.mxu0 0.0
      %242 = vmatpush1.msra.mxu0 0.0
      %243 = vmatprep.subr.mxu0 0.0
      %244 = vmatpush1.msra.mxu0 0.0
      %245 = vmatprep.subr.mxu0 0.0
      %246 = vmatpush1.msra.mxu0 0.0
      %247 = vmatprep.subr.mxu0 0.0
      %248 = vmatpush1.msra.mxu0 0.0
      %249 = vmatprep.subr.mxu0 0.0
      %250 = vmatpush1.msra.mxu0 0.0
      %251 = vmatprep.subr.mxu0 0.0
      %252 = vmatpush1.msra.mxu0 0.0
      %253 = vmatprep.subr.mxu0 0.0
      %254 = vmatpush1.msra.mxu0 0.0
      %255 = vmatprep.subr.mxu0 0.0
      %256 = vmatpush1.msra.mxu0 0.0
      %257 = vmatprep.subr.mxu0 0.0
      %258 = vmatpush1.msra.mxu0 0.0
      %259 = vmatprep.mubr.f32.mxu0 0.0
      %260 = vmatmul.mubr.f32.gmra.mrb[0].mxu0 %v186
      %v261 = vpop.f32.mrb[0].mxu0
      %v262 = vadd.f32 %v182, %v261
      %v263 = vpop.f32.mrb[0].mxu0
      %264 = vmatprep.mubr.f32.mxu0 0.0
      %265 = vmatmul.mubr.f32.gmra.mrb[0].mxu0 %v189
      %v266 = vpop.f32.mrb[0].mxu0
      %v267 = vadd.f32 %v182, %v266
      %v268 = vpop.f32.mrb[0].mxu0
      %269 = vdwg.mxu0
      %270 = vst [vmem:[%s172] sm:$0xff] %v262
      %271 = vst [vmem:[%s172 + $0x8] sm:$0xff] %v267
      %s272 = smul.u32 2, %s14
      %p273 = scmp.lt.s32.totalorder %s272, 7
      %s274 = scalar_select %p273, %s272, 7
      %s275 = smul.addr %s274, 8
      %s276 = scalar_lea.vmem %s3, %s275
      // Predicated region
      $region33: #{diffeq_transformer_forward.4} parent=31 // pred_check
        %p277 = pneg %p100
      $region34: #{diffeq_transformer_forward.4} parent=31 // pred_check_branch
        %279 = sbr.rel (%p277) target = $region36
      $region35: #{diffeq_transformer_forward.4} parent=31 // pred_region
        %s280 = smul.u32 2, %s14
      $region36: #{diffeq_transformer_forward.4} parent=31 // pred_fallthru
        _
    $region32: #{diffeq_transformer_forward.4} parent=5 // pred_fallthru
      _
    %p281 = scmp.le.s32.totalorder 2, %s9
    // Predicated region
    $region37: #{diffeq_transformer_forward.4} parent=5 // pred_check
      %p282 = pneg %p281
    $region38: #{diffeq_transformer_forward.4} parent=5 // pred_check_branch
      %284 = sbr.rel (%p282) target = $region40
    $region39: #{diffeq_transformer_forward.4} parent=5 // pred_region
      %s285 = ssub.s32 %s9, 2
      // Predicated region
      $region41: #{diffeq_transformer_forward.4} parent=39 // pred_check
        %p286 = pneg %p106
      $region42: #{diffeq_transformer_forward.4} parent=39 // pred_check_branch
        %288 = sbr.rel (%p286) target = $region44
      $region43: #{diffeq_transformer_forward.4} parent=39 // pred_region
        %s289 = smul.u32 2, %s15
        %p290 = scmp.lt.s32.totalorder %s289, 7
        %s291 = scalar_select %p290, %s289, 7
        %s292 = smul.addr %s291, 8
        %s293 = scalar_lea.vmem %s3, %s292
      $region44: #{diffeq_transformer_forward.4} parent=39 // pred_fallthru
        _
    $region40: #{diffeq_transformer_forward.4} parent=5 // pred_fallthru
      _
  $region6: #{diffeq_transformer_forward.4} parent=0 // loop_footer
    %s13 = sadd.s32 1, %s9
  $region7: #{diffeq_transformer_forward.4} parent=0 // loop_footer_branch
    %8 = sbr.rel target = $region3
  $region8: #{diffeq_transformer_forward.4} parent=0 // loop_exit
    _

// kernel: diffeq_transformer_forward.7
$region0: #{diffeq_transformer_forward.7}
  #allocation0 [shape = 'u32[]', space=smem, size = 0x4, offset = 0x4, fixed_abs, tag = 'smem constant byte address 0x4 - core index']
  #allocation1 [shape = 'u32[144,128]{1,0:T(1,128)}', space=vmem, size = 0x12000, scoped, tag = 'internal scratch']
  %s0 = inlined_call_operand.vmem [shape: f32[64,128], index: 0, kind: input, shape index: {}]
  %s1 = inlined_call_operand.vmem [shape: f32[128,128], index: 1, kind: input, shape index: {}]
  %s2 = inlined_call_operand.vmem [shape: f32[1,128], index: 2, kind: input, shape index: {}]
  %s3 = inlined_call_operand.vmem [shape: f32[64,128], index: 3, kind: output, shape index: {}]
  %s4 = sld [smem:[#allocation0]]
  $region45: #{diffeq_transformer_forward.7} parent=0
    _
  %s6 = ssub.s32 1, %s4
  %s7 = scalar_select 0, %s6, %s4
  loop: start=0, step=1, limit=6
  $region2: #{diffeq_transformer_forward.7} parent=0 // loop_pre_header
    _
  $region3: #{diffeq_transformer_forward.7} parent=0 // loop_header
    %s9 = sphi 0, %s13
    %p10 = scmp.ge.s32.totalorder %s9, 6
    %s19 = sphi 0, %s21
    %s22 = sphi 0, %s19
    %s23 = sphi 0, %s22
    %s39 = sphi 0, %s23
    %s43 = sphi 0, %s43
    %s45 = sphi 0, %s43
    %s46 = sphi 0, %s45
    %s60 = sphi 0, %s46
    %s64 = sphi 0, %s64
    %s66 = sphi 0, %s64
    %s67 = sphi 0, %s66
    %s81 = sphi 0, %s67
    %s87 = sphi 0, %s89
    %s90 = sphi 0, %s87
    %s91 = sphi 0, %s90
    %s107 = sphi 0, %s91
  $region4: #{diffeq_transformer_forward.7} parent=0 // loop_header_branch
    %12 = sbr.rel (%p10) target = $region8
  $region5: #{diffeq_transformer_forward.7} parent=0 // loop_body
    %s14 = ssub.s32 %s9, 1
    %s15 = ssub.s32 %s9, 2
    %s16 = sadd.s32 %s9, 1
    %s17 = ssub.s32 %s9, %s16
    %p18 = scmp.eq.s32.totalorder %s17, 0
    %s20 = sadd.s32 %s19, 1
    %s21 = scalar_select %p18, %s19, %s20
    %p24 = pneg %p18
    %p25 = scmp.eq.s32.totalorder %s9, 3
    %p26 = por %p24, %p25
    %p27 = scmp.ne.s32.totalorder %s19, %s22
    %p28 = scmp.eq.s32.totalorder %s9, 0
    %p29 = por %p27, %p28
    %p30 = scmp.ne.s32.totalorder %s19, %s22
    %p31 = scmp.eq.s32.totalorder %s14, 3
    %p32 = por %p30, %p31
    %p33 = scmp.ne.s32.totalorder %s22, %s23
    %p34 = scmp.eq.s32.totalorder %s14, 0
    %p35 = por %p33, %p34
    %p36 = scmp.ne.s32.totalorder %s22, %s23
    %p37 = scmp.eq.s32.totalorder %s15, 3
    %p38 = por %p36, %p37
    %p40 = scmp.ne.s32.totalorder %s23, %s39
    %p41 = scmp.eq.s32.totalorder %s15, 0
    %p42 = por %p40, %p41
    %s44 = sadd.s32 %s43, 1
    %p47 = scmp.eq.s32.totalorder %s9, 3
    %p48 = scmp.ne.s32.totalorder %s43, %s45
    %p49 = scmp.eq.s32.totalorder %s9, 0
    %p50 = por %p48, %p49
    %p51 = scmp.ne.s32.totalorder %s43, %s45
    %p52 = scmp.eq.s32.totalorder %s14, 3
    %p53 = por %p51, %p52
    %p54 = scmp.ne.s32.totalorder %s45, %s46
    %p55 = scmp.eq.s32.totalorder %s14, 0
    %p56 = por %p54, %p55
    %p57 = scmp.ne.s32.totalorder %s45, %s46
    %p58 = scmp.eq.s32.totalorder %s15, 3
    %p59 = por %p57, %p58
    %p61 = scmp.ne.s32.totalorder %s46, %s60
    %p62 = scmp.eq.s32.totalorder %s15, 0
    %p63 = por %p61, %p62
    %s65 = sadd.s32 %s64, 1
    %p68 = scmp.eq.s32.totalorder %s9, 3
    %p69 = scmp.ne.s32.totalorder %s64, %s66
    %p70 = scmp.eq.s32.totalorder %s9, 0
    %p71 = por %p69, %p70
    %p72 = scmp.ne.s32.totalorder %s64, %s66
    %p73 = scmp.eq.s32.totalorder %s14, 3
    %p74 = por %p72, %p73
    %p75 = scmp.ne.s32.totalorder %s66, %s67
    %p76 = scmp.eq.s32.totalorder %s14, 0
    %p77 = por %p75, %p76
    %p78 = scmp.ne.s32.totalorder %s66, %s67
    %p79 = scmp.eq.s32.totalorder %s15, 3
    %p80 = por %p78, %p79
    %p82 = scmp.ne.s32.totalorder %s67, %s81
    %p83 = scmp.eq.s32.totalorder %s15, 0
    %p84 = por %p82, %p83
    %s85 = ssub.s32 %s9, %s16
    %p86 = scmp.eq.s32.totalorder %s85, 0
    %s88 = sadd.s32 %s87, 1
    %s89 = scalar_select %p86, %s87, %s88
    %p92 = pneg %p86
    %p93 = scmp.eq.s32.totalorder %s9, 3
    %p94 = por %p92, %p93
    %p95 = scmp.ne.s32.totalorder %s87, %s90
    %p96 = scmp.eq.s32.totalorder %s9, 0
    %p97 = por %p95, %p96
    %p98 = scmp.ne.s32.totalorder %s87, %s90
    %p99 = scmp.eq.s32.totalorder %s14, 3
    %p100 = por %p98, %p99
    %p101 = scmp.ne.s32.totalorder %s90, %s91
    %p102 = scmp.eq.s32.totalorder %s14, 0
    %p103 = por %p101, %p102
    %p104 = scmp.ne.s32.totalorder %s90, %s91
    %p105 = scmp.eq.s32.totalorder %s15, 3
    %p106 = por %p104, %p105
    %p108 = scmp.ne.s32.totalorder %s91, %s107
    %p109 = scmp.eq.s32.totalorder %s15, 0
    %p110 = por %p108, %p109
    %p111 = scmp.le.s32.totalorder 1, %s9
    %p112 = scmp.lt.s32.totalorder %s9, 5
    %p113 = pnand %p111, %p112
    %p114 = pneg %p113
    // Predicated region
    $region9: #{diffeq_transformer_forward.7} parent=5 // pred_check
      _
    $region10: #{diffeq_transformer_forward.7} parent=5 // pred_check_branch
      %116 = sbr.rel (%p113) target = $region12
    $region11: #{diffeq_transformer_forward.7} parent=5 // pred_region
      %s117 = ssub.s32 %s9, 1
      // Predicated region
      $region13: #{diffeq_transformer_forward.7} parent=11 // pred_check
        %p118 = pneg %p56
      $region14: #{diffeq_transformer_forward.7} parent=11 // pred_check_branch
        %120 = sbr.rel (%p118) target = $region16
      $region15: #{diffeq_transformer_forward.7} parent=11 // pred_region
        _
      $region16: #{diffeq_transformer_forward.7} parent=11 // pred_fallthru
        _
      // Predicated region
      $region17: #{diffeq_transformer_forward.7} parent=11 // pred_check
        %p121 = pneg %p77
      $region18: #{diffeq_transformer_forward.7} parent=11 // pred_check_branch
        %123 = sbr.rel (%p121) target = $region20
      $region19: #{diffeq_transformer_forward.7} parent=11 // pred_region
        _
      $region20: #{diffeq_transformer_forward.7} parent=11 // pred_fallthru
        _
    $region12: #{diffeq_transformer_forward.7} parent=5 // pred_fallthru
      _
    %p124 = scmp.lt.s32.totalorder %s9, 4
    // Predicated region
    $region21: #{diffeq_transformer_forward.7} parent=5 // pred_check
      %p125 = pneg %p124
    $region22: #{diffeq_transformer_forward.7} parent=5 // pred_check_branch
      %127 = sbr.rel (%p125) target = $region24
    $region23: #{diffeq_transformer_forward.7} parent=5 // pred_region
      // Predicated region
      $region25: #{diffeq_transformer_forward.7} parent=23 // pred_check
        %p128 = pneg %p29
      $region26: #{diffeq_transformer_forward.7} parent=23 // pred_check_branch
        %130 = sbr.rel (%p128) target = $region28
      $region27: #{diffeq_transformer_forward.7} parent=23 // pred_region
        %s131 = smul.u32 2, %s9
        %p132 = scmp.lt.s32.totalorder %s131, 7
        %s133 = scalar_select %p132, %s131, 7
        %s134 = smul.addr %s133, 8
        %s135 = scalar_lea.vmem %s0, %s134
        %s136 = smul.u32 2, %s9
      $region28: #{diffeq_transformer_forward.7} parent=23 // pred_fallthru
        _
    $region24: #{diffeq_transformer_forward.7} parent=5 // pred_fallthru
      _
    %p137 = scmp.le.s32.totalorder 1, %s9
    %p138 = scmp.lt.s32.totalorder %s9, 5
    %p139 = pnand %p137, %p138
    %p140 = pneg %p139
    // Predicated region
    $region29: #{diffeq_transformer_forward.7} parent=5 // pred_check
      _
    $region30: #{diffeq_transformer_forward.7} parent=5 // pred_check_branch
      %142 = sbr.rel (%p139) target = $region32
    $region31: #{diffeq_transformer_forward.7} parent=5 // pred_region
      %s143 = ssub.s32 %s9, 1
      %s144 = smul.u32 2, %s14
      %p145 = scmp.lt.s32.totalorder %s144, 7
      %s146 = scalar_select %p145, %s144, 7
      %s147 = smul.addr %s146, 8
      %s148 = scalar_lea.vmem %s0, %s147
      %p149 = pneg %p35
      %p150 = pneg %p32
      %p151 = pneg %p56
      %p152 = pneg %p53
      %p153 = pneg %p77
      %p154 = pneg %p74
      %p155 = pneg %p103
      %p156 = pneg %p100
      %s157 = smul.u32 2, %s14
      %p158 = scmp.lt.s32.totalorder %s157, 7
      %s159 = scalar_select %p158, %s157, 7
      %s160 = smul.addr %s159, 8
      %s161 = scalar_lea.vmem %s3, %s160
      %s162 = smul.u32 2, %s14
      %p163 = scmp.lt.s32.totalorder %s162, 7
      %s164 = scalar_select %p163, %s162, 7
      %s165 = smul.addr %s164, 8
      %s166 = scalar_lea.vmem %s0, %s165
      %s167 = smul.u32 2, %s14
      %s168 = smul.u32 2, %s14
      %p169 = scmp.lt.s32.totalorder %s168, 7
      %s170 = scalar_select %p169, %s168, 7
      %s171 = smul.addr %s170, 8
      %s172 = scalar_lea.vmem %s3, %s171
      %s173 = smul.u32 2, %s14
      %v174 = vld [vmem:[%s166] sm:$0xff]
      %v175 = vld [vmem:[%s166 + $0x8] sm:$0xff]
      %v176 = vld [vmem:[%s1] sm:$0xff]
      %v177 = vld [vmem:[%s1 + $0x8] sm:$0xff]
      %v178 = vld [vmem:[%s1 + $0x10] sm:$0xff]
      %v179 = vld [vmem:[%s1 + $0x18] sm:$0xff]
      %v180 = vld [vmem:[%s1 + $0x20] sm:$0xff]
      %v181 = vld [vmem:[%s1 + $0x28] sm:$0xff]
      %v182 = vld [vmem:[%s1 + $0x30] sm:$0xff]
      %v183 = vld [vmem:[%s1 + $0x38] sm:$0xff]
      %v184 = vld [vmem:[%s1 + $0x40] sm:$0xff]
      %v185 = vld [vmem:[%s1 + $0x48] sm:$0xff]
      %v186 = vld [vmem:[%s1 + $0x50] sm:$0xff]
      %v187 = vld [vmem:[%s1 + $0x58] sm:$0xff]
      %v188 = vld [vmem:[%s1 + $0x60] sm:$0xff]
      %v189 = vld [vmem:[%s1 + $0x68] sm:$0xff]
      %v190 = vld [vmem:[%s1 + $0x70] sm:$0xff]
      %v191 = vld [vmem:[%s1 + $0x78] sm:$0xff]
      %v192 = vld [vmem:[%s2] sm:$0x1]
      %v194 = vlaneseq
      %v195 = vshrl.u32 %v194, 7
      %v196 = vsub.s32 0, %v195
      %v197 = vrot.slane %v192, %v196
      %199 = vmatprep.subr.mxu0 0.0
      %200 = vmatpush1.msra.mxu0 %v176
      %201 = vmatprep.subr.mxu0 0.0
      %202 = vmatpush1.msra.mxu0 %v177
      %203 = vmatprep.subr.mxu0 0.0
      %204 = vmatpush1.msra.mxu0 %v178
      %205 = vmatprep.subr.mxu0 0.0
      %206 = vmatpush1.msra.mxu0 %v179
      %207 = vmatprep.subr.mxu0 0.0
      %208 = vmatpush1.msra.mxu0 %v180
      %209 = vmatprep.subr.mxu0 0.0
      %210 = vmatpush1.msra.mxu0 %v181
      %211 = vmatprep.subr.mxu0 0.0
      %212 = vmatpush1.msra.mxu0 %v182
      %213 = vmatprep.subr.mxu0 0.0
      %214 = vmatpush1.msra.mxu0 %v183
      %215 = vmatprep.subr.mxu0 0.0
      %216 = vmatpush1.msra.mxu0 %v184
      %217 = vmatprep.subr.mxu0 0.0
      %218 = vmatpush1.msra.mxu0 %v185
      %219 = vmatprep.subr.mxu0 0.0
      %220 = vmatpush1.msra.mxu0 %v186
      %221 = vmatprep.subr.mxu0 0.0
      %222 = vmatpush1.msra.mxu0 %v187
      %223 = vmatprep.subr.mxu0 0.0
      %224 = vmatpush1.msra.mxu0 %v188
      %225 = vmatprep.subr.mxu0 0.0
      %226 = vmatpush1.msra.mxu0 %v189
      %227 = vmatprep.subr.mxu0 0.0
      %228 = vmatpush1.msra.mxu0 %v190
      %229 = vmatprep.subr.mxu0 0.0
      %230 = vmatpush1.msra.mxu0 %v191
      %231 = vmatprep.subr.mxu0 0.0
      %232 = vmatpush1.msra.mxu0 0.0
      %233 = vmatprep.subr.mxu0 0.0
      %234 = vmatpush1.msra.mxu0 0.0
      %235 = vmatprep.subr.mxu0 0.0
      %236 = vmatpush1.msra.mxu0 0.0
      %237 = vmatprep.subr.mxu0 0.0
      %238 = vmatpush1.msra.mxu0 0.0
      %239 = vmatprep.subr.mxu0 0.0
      %240 = vmatpush1.msra.mxu0 0.0
      %241 = vmatprep.subr.mxu0 0.0
      %242 = vmatpush1.msra.mxu0 0.0
      %243 = vmatprep.subr.mxu0 0.0
      %244 = vmatpush1.msra.mxu0 0.0
      %245 = vmatprep.subr.mxu0 0.0
      %246 = vmatpush1.msra.mxu0 0.0
      %247 = vmatprep.subr.mxu0 0.0
      %248 = vmatpush1.msra.mxu0 0.0
      %249 = vmatprep.subr.mxu0 0.0
      %250 = vmatpush1.msra.mxu0 0.0
      %251 = vmatprep.subr.mxu0 0.0
      %252 = vmatpush1.msra.mxu0 0.0
      %253 = vmatprep.subr.mxu0 0.0
      %254 = vmatpush1.msra.mxu0 0.0
      %255 = vmatprep.subr.mxu0 0.0
      %256 = vmatpush1.msra.mxu0 0.0
      %257 = vmatprep.subr.mxu0 0.0
      %258 = vmatpush1.msra.mxu0 0.0
      %259 = vmatprep.subr.mxu0 0.0
      %260 = vmatpush1.msra.mxu0 0.0
      %261 = vmatprep.subr.mxu0 0.0
      %262 = vmatpush1.msra.mxu0 0.0
      %263 = vmatprep.mubr.f32.mxu0 0.0
      %264 = vmatmul.mubr.f32.gmra.mrb[0].mxu0 %v174
      %v265 = vpop.f32.mrb[0].mxu0
      %v266 = vadd.f32 %v197, %v265
      %v267 = vpop.f32.mrb[0].mxu0
      %268 = vmatprep.mubr.f32.mxu0 0.0
      %269 = vmatmul.mubr.f32.gmra.mrb[0].mxu0 %v175
      %v270 = vpop.f32.mrb[0].mxu0
      %v271 = vadd.f32 %v197, %v270
      %v272 = vpop.f32.mrb[0].mxu0
      %273 = vdwg.mxu0
      %274 = vst [vmem:[%s172] sm:$0xff] %v266
      %275 = vst [vmem:[%s172 + $0x8] sm:$0xff] %v271
      %s276 = smul.u32 2, %s14
      %p277 = scmp.lt.s32.totalorder %s276, 7
      %s278 = scalar_select %p277, %s276, 7
      %s279 = smul.addr %s278, 8
      %s280 = scalar_lea.vmem %s3, %s279
      // Predicated region
      $region33: #{diffeq_transformer_forward.7} parent=31 // pred_check
        %p281 = pneg %p100
      $region34: #{diffeq_transformer_forward.7} parent=31 // pred_check_branch
        %283 = sbr.rel (%p281) target = $region36
      $region35: #{diffeq_transformer_forward.7} parent=31 // pred_region
        %s284 = smul.u32 2, %s14
      $region36: #{diffeq_transformer_forward.7} parent=31 // pred_fallthru
        _
    $region32: #{diffeq_transformer_forward.7} parent=5 // pred_fallthru
      _
    %p285 = scmp.le.s32.totalorder 2, %s9
    // Predicated region
    $region37: #{diffeq_transformer_forward.7} parent=5 // pred_check
      %p286 = pneg %p285
    $region38: #{diffeq_transformer_forward.7} parent=5 // pred_check_branch
      %288 = sbr.rel (%p286) target = $region40
    $region39: #{diffeq_transformer_forward.7} parent=5 // pred_region
      %s289 = ssub.s32 %s9, 2
      // Predicated region
      $region41: #{diffeq_transformer_forward.7} parent=39 // pred_check
        %p290 = pneg %p106
      $region42: #{diffeq_transformer_forward.7} parent=39 // pred_check_branch
        %292 = sbr.rel (%p290) target = $region44
      $region43: #{diffeq_transformer_forward.7} parent=39 // pred_region
        %s293 = smul.u32 2, %s15
        %p294 = scmp.lt.s32.totalorder %s293, 7
        %s295 = scalar_select %p294, %s293, 7
        %s296 = smul.addr %s295, 8
        %s297 = scalar_lea.vmem %s3, %s296
      $region44: #{diffeq_transformer_forward.7} parent=39 // pred_fallthru
        _
    $region40: #{diffeq_transformer_forward.7} parent=5 // pred_fallthru
      _
  $region6: #{diffeq_transformer_forward.7} parent=0 // loop_footer
    %s13 = sadd.s32 1, %s9
  $region7: #{diffeq_transformer_forward.7} parent=0 // loop_footer_branch
    %8 = sbr.rel target = $region3
  $region8: #{diffeq_transformer_forward.7} parent=0 // loop_exit
    _

// kernel: diffeq_transformer_forward.5
$region0: #{diffeq_transformer_forward.5}
  #allocation0 [shape = 'u32[]', space=smem, size = 0x4, offset = 0x4, fixed_abs, tag = 'smem constant byte address 0x4 - core index']
  #allocation1 [shape = 'u32[144,128]{1,0:T(1,128)}', space=vmem, size = 0x12000, scoped, tag = 'internal scratch']
  %s0 = inlined_call_operand.vmem [shape: f32[64,128], index: 0, kind: input, shape index: {}]
  %s1 = inlined_call_operand.hbm [shape: f32[128,512], index: 1, kind: input, shape index: {}]
  %s2 = inlined_call_operand.hbm [shape: f32[512,128], index: 2, kind: input, shape index: {}]
  %s3 = inlined_call_operand.vmem [shape: f32[1,128], index: 3, kind: input, shape index: {}]
  %s4 = inlined_call_operand.vmem [shape: f32[1,128], index: 4, kind: input, shape index: {}]
  %s5 = inlined_call_operand.vmem [shape: f32[1,128], index: 5, kind: input, shape index: {}]
  %s6 = inlined_call_operand.vmem [shape: f32[128,128], index: 6, kind: input, shape index: {}]
  %s7 = inlined_call_operand.vmem [shape: f32[1,128], index: 7, kind: input, shape index: {}]
  %s8 = inlined_call_operand.vmem [shape: f32[128,128], index: 8, kind: input, shape index: {}]
  %s9 = inlined_call_operand.vmem [shape: f32[1,128], index: 9, kind: input, shape index: {}]
  %s10 = inlined_call_operand.vmem [shape: f32[1,128], index: 10, kind: input, shape index: {}]
  %s11 = inlined_call_operand.vmem [shape: f32[1,128], index: 11, kind: input, shape index: {}]
  %s12 = inlined_call_operand.vmem [shape: f32[64,128], index: 12, kind: output, shape index: {}]
  %s13 = sld [smem:[#allocation0]]
  $region89: #{diffeq_transformer_forward.5} parent=0
    _
  %s15 = ssub.s32 1, %s13
  %s16 = scalar_select 0, %s15, %s13
  $region1: #{diffeq_transformer_forward.5} parent=0
    #allocation2 [shape = 'u8[262144]{0}', space=vmem, size = 0x40000, scoped, tag = 'input window, operand 1, single buffered']
    #allocation3 [shape = 's32[2]{0}', space=sflag, size = 0x8, scoped, tag = 'scoped memory for diffeq_transformer_forward.5']
    #allocation4 [shape = 'u8[262144]{0}', space=vmem, size = 0x40000, scoped, tag = 'input window, operand 2, single buffered']
    #allocation5 [shape = 's32[1]{0}', space=sflag, size = 0x4, scoped, tag = 'scoped memory for diffeq_transformer_forward.5']
    %17 = vsyncpa [#allocation3], 0
    %18 = vsyncpa [#allocation5], 0
    loop: start=0, step=1, limit=6
    $region2: #{diffeq_transformer_forward.5} parent=1 // loop_pre_header
      _
    $region3: #{diffeq_transformer_forward.5} parent=1 // loop_header
      %s20 = sphi 0, %s24
      %p21 = scmp.ge.s32.totalorder %s20, 6
      %s30 = sphi 0, %s32
      %s33 = sphi 0, %s30
      %s34 = sphi 0, %s33
      %s50 = sphi 0, %s34
      %s54 = sphi 0, %s54
      %s56 = sphi 0, %s54
      %s57 = sphi 0, %s56
      %s71 = sphi 0, %s57
      %s75 = sphi 0, %s75
      %s77 = sphi 0, %s75
      %s78 = sphi 0, %s77
      %s92 = sphi 0, %s78
      %s96 = sphi 0, %s96
      %s98 = sphi 0, %s96
      %s99 = sphi 0, %s98
      %s113 = sphi 0, %s99
      %s117 = sphi 0, %s117
      %s119 = sphi 0, %s117
      %s120 = sphi 0, %s119
      %s134 = sphi 0, %s120
      %s138 = sphi 0, %s138
      %s140 = sphi 0, %s138
      %s141 = sphi 0, %s140
      %s155 = sphi 0, %s141
      %s159 = sphi 0, %s159
      %s161 = sphi 0, %s159
      %s162 = sphi 0, %s161
      %s176 = sphi 0, %s162
      %s180 = sphi 0, %s180
      %s182 = sphi 0, %s180
      %s183 = sphi 0, %s182
      %s197 = sphi 0, %s183
      %s201 = sphi 0, %s201
      %s203 = sphi 0, %s201
      %s204 = sphi 0, %s203
      %s218 = sphi 0, %s204
      %s222 = sphi 0, %s222
      %s224 = sphi 0, %s222
      %s225 = sphi 0, %s224
      %s239 = sphi 0, %s225
      %s243 = sphi 0, %s243
      %s245 = sphi 0, %s243
      %s246 = sphi 0, %s245
      %s260 = sphi 0, %s246
      %s264 = sphi 0, %s264
      %s266 = sphi 0, %s264
      %s267 = sphi 0, %s266
      %s281 = sphi 0, %s267
      %s287 = sphi 0, %s289
      %s290 = sphi 0, %s287
      %s291 = sphi 0, %s290
      %s307 = sphi 0, %s291
    $region4: #{diffeq_transformer_forward.5} parent=1 // loop_header_branch
      %23 = sbr.rel (%p21) target = $region8
    $region5: #{diffeq_transformer_forward.5} parent=1 // loop_body
      %s25 = ssub.s32 %s20, 1
      %s26 = ssub.s32 %s20, 2
      %s27 = sadd.s32 %s20, 1
      %s28 = ssub.s32 %s20, %s27
      %p29 = scmp.eq.s32.totalorder %s28, 0
      %s31 = sadd.s32 %s30, 1
      %s32 = scalar_select %p29, %s30, %s31
      %p35 = pneg %p29
      %p36 = scmp.eq.s32.totalorder %s20, 3
      %p37 = por %p35, %p36
      %p38 = scmp.ne.s32.totalorder %s30, %s33
      %p39 = scmp.eq.s32.totalorder %s20, 0
      %p40 = por %p38, %p39
      %p41 = scmp.ne.s32.totalorder %s30, %s33
      %p42 = scmp.eq.s32.totalorder %s25, 3
      %p43 = por %p41, %p42
      %p44 = scmp.ne.s32.totalorder %s33, %s34
      %p45 = scmp.eq.s32.totalorder %s25, 0
      %p46 = por %p44, %p45
      %p47 = scmp.ne.s32.totalorder %s33, %s34
      %p48 = scmp.eq.s32.totalorder %s26, 3
      %p49 = por %p47, %p48
      %p51 = scmp.ne.s32.totalorder %s34, %s50
      %p52 = scmp.eq.s32.totalorder %s26, 0
      %p53 = por %p51, %p52
      %s55 = sadd.s32 %s54, 1
      %p58 = scmp.eq.s32.totalorder %s20, 3
      %p59 = scmp.ne.s32.totalorder %s54, %s56
      %p60 = scmp.eq.s32.totalorder %s20, 0
      %p61 = por %p59, %p60
      %p62 = scmp.ne.s32.totalorder %s54, %s56
      %p63 = scmp.eq.s32.totalorder %s25, 3
      %p64 = por %p62, %p63
      %p65 = scmp.ne.s32.totalorder %s56, %s57
      %p66 = scmp.eq.s32.totalorder %s25, 0
      %p67 = por %p65, %p66
      %p68 = scmp.ne.s32.totalorder %s56, %s57
      %p69 = scmp.eq.s32.totalorder %s26, 3
      %p70 = por %p68, %p69
      %p72 = scmp.ne.s32.totalorder %s57, %s71
      %p73 = scmp.eq.s32.totalorder %s26, 0
      %p74 = por %p72, %p73
      %s76 = sadd.s32 %s75, 1
      %p79 = scmp.eq.s32.totalorder %s20, 3
      %p80 = scmp.ne.s32.totalorder %s75, %s77
      %p81 = scmp.eq.s32.totalorder %s20, 0
      %p82 = por %p80, %p81
      %p83 = scmp.ne.s32.totalorder %s75, %s77
      %p84 = scmp.eq.s32.totalorder %s25, 3
      %p85 = por %p83, %p84
      %p86 = scmp.ne.s32.totalorder %s77, %s78
      %p87 = scmp.eq.s32.totalorder %s25, 0
      %p88 = por %p86, %p87
      %p89 = scmp.ne.s32.totalorder %s77, %s78
      %p90 = scmp.eq.s32.totalorder %s26, 3
      %p91 = por %p89, %p90
      %p93 = scmp.ne.s32.totalorder %s78, %s92
      %p94 = scmp.eq.s32.totalorder %s26, 0
      %p95 = por %p93, %p94
      %s97 = sadd.s32 %s96, 1
      %p100 = scmp.eq.s32.totalorder %s20, 3
      %p101 = scmp.ne.s32.totalorder %s96, %s98
      %p102 = scmp.eq.s32.totalorder %s20, 0
      %p103 = por %p101, %p102
      %p104 = scmp.ne.s32.totalorder %s96, %s98
      %p105 = scmp.eq.s32.totalorder %s25, 3
      %p106 = por %p104, %p105
      %p107 = scmp.ne.s32.totalorder %s98, %s99
      %p108 = scmp.eq.s32.totalorder %s25, 0
      %p109 = por %p107, %p108
      %p110 = scmp.ne.s32.totalorder %s98, %s99
      %p111 = scmp.eq.s32.totalorder %s26, 3
      %p112 = por %p110, %p111
      %p114 = scmp.ne.s32.totalorder %s99, %s113
      %p115 = scmp.eq.s32.totalorder %s26, 0
      %p116 = por %p114, %p115
      %s118 = sadd.s32 %s117, 1
      %p121 = scmp.eq.s32.totalorder %s20, 3
      %p122 = scmp.ne.s32.totalorder %s117, %s119
      %p123 = scmp.eq.s32.totalorder %s20, 0
      %p124 = por %p122, %p123
      %p125 = scmp.ne.s32.totalorder %s117, %s119
      %p126 = scmp.eq.s32.totalorder %s25, 3
      %p127 = por %p125, %p126
      %p128 = scmp.ne.s32.totalorder %s119, %s120
      %p129 = scmp.eq.s32.totalorder %s25, 0
      %p130 = por %p128, %p129
      %p131 = scmp.ne.s32.totalorder %s119, %s120
      %p132 = scmp.eq.s32.totalorder %s26, 3
      %p133 = por %p131, %p132
      %p135 = scmp.ne.s32.totalorder %s120, %s134
      %p136 = scmp.eq.s32.totalorder %s26, 0
      %p137 = por %p135, %p136
      %s139 = sadd.s32 %s138, 1
      %p142 = scmp.eq.s32.totalorder %s20, 3
      %p143 = scmp.ne.s32.totalorder %s138, %s140
      %p144 = scmp.eq.s32.totalorder %s20, 0
      %p145 = por %p143, %p144
      %p146 = scmp.ne.s32.totalorder %s138, %s140
      %p147 = scmp.eq.s32.totalorder %s25, 3
      %p148 = por %p146, %p147
      %p149 = scmp.ne.s32.totalorder %s140, %s141
      %p150 = scmp.eq.s32.totalorder %s25, 0
      %p151 = por %p149, %p150
      %p152 = scmp.ne.s32.totalorder %s140, %s141
      %p153 = scmp.eq.s32.totalorder %s26, 3
      %p154 = por %p152, %p153
      %p156 = scmp.ne.s32.totalorder %s141, %s155
      %p157 = scmp.eq.s32.totalorder %s26, 0
      %p158 = por %p156, %p157
      %s160 = sadd.s32 %s159, 1
      %p163 = scmp.eq.s32.totalorder %s20, 3
      %p164 = scmp.ne.s32.totalorder %s159, %s161
      %p165 = scmp.eq.s32.totalorder %s20, 0
      %p166 = por %p164, %p165
      %p167 = scmp.ne.s32.totalorder %s159, %s161
      %p168 = scmp.eq.s32.totalorder %s25, 3
      %p169 = por %p167, %p168
      %p170 = scmp.ne.s32.totalorder %s161, %s162
      %p171 = scmp.eq.s32.totalorder %s25, 0
      %p172 = por %p170, %p171
      %p173 = scmp.ne.s32.totalorder %s161, %s162
      %p174 = scmp.eq.s32.totalorder %s26, 3
      %p175 = por %p173, %p174
      %p177 = scmp.ne.s32.totalorder %s162, %s176
      %p178 = scmp.eq.s32.totalorder %s26, 0
      %p179 = por %p177, %p178
      %s181 = sadd.s32 %s180, 1
      %p184 = scmp.eq.s32.totalorder %s20, 3
      %p185 = scmp.ne.s32.totalorder %s180, %s182
      %p186 = scmp.eq.s32.totalorder %s20, 0
      %p187 = por %p185, %p186
      %p188 = scmp.ne.s32.totalorder %s180, %s182
      %p189 = scmp.eq.s32.totalorder %s25, 3
      %p190 = por %p188, %p189
      %p191 = scmp.ne.s32.totalorder %s182, %s183
      %p192 = scmp.eq.s32.totalorder %s25, 0
      %p193 = por %p191, %p192
      %p194 = scmp.ne.s32.totalorder %s182, %s183
      %p195 = scmp.eq.s32.totalorder %s26, 3
      %p196 = por %p194, %p195
      %p198 = scmp.ne.s32.totalorder %s183, %s197
      %p199 = scmp.eq.s32.totalorder %s26, 0
      %p200 = por %p198, %p199
      %s202 = sadd.s32 %s201, 1
      %p205 = scmp.eq.s32.totalorder %s20, 3
      %p206 = scmp.ne.s32.totalorder %s201, %s203
      %p207 = scmp.eq.s32.totalorder %s20, 0
      %p208 = por %p206, %p207
      %p209 = scmp.ne.s32.totalorder %s201, %s203
      %p210 = scmp.eq.s32.totalorder %s25, 3
      %p211 = por %p209, %p210
      %p212 = scmp.ne.s32.totalorder %s203, %s204
      %p213 = scmp.eq.s32.totalorder %s25, 0
      %p214 = por %p212, %p213
      %p215 = scmp.ne.s32.totalorder %s203, %s204
      %p216 = scmp.eq.s32.totalorder %s26, 3
      %p217 = por %p215, %p216
      %p219 = scmp.ne.s32.totalorder %s204, %s218
      %p220 = scmp.eq.s32.totalorder %s26, 0
      %p221 = por %p219, %p220
      %s223 = sadd.s32 %s222, 1
      %p226 = scmp.eq.s32.totalorder %s20, 3
      %p227 = scmp.ne.s32.totalorder %s222, %s224
      %p228 = scmp.eq.s32.totalorder %s20, 0
      %p229 = por %p227, %p228
      %p230 = scmp.ne.s32.totalorder %s222, %s224
      %p231 = scmp.eq.s32.totalorder %s25, 3
      %p232 = por %p230, %p231
      %p233 = scmp.ne.s32.totalorder %s224, %s225
      %p234 = scmp.eq.s32.totalorder %s25, 0
      %p235 = por %p233, %p234
      %p236 = scmp.ne.s32.totalorder %s224, %s225
      %p237 = scmp.eq.s32.totalorder %s26, 3
      %p238 = por %p236, %p237
      %p240 = scmp.ne.s32.totalorder %s225, %s239
      %p241 = scmp.eq.s32.totalorder %s26, 0
      %p242 = por %p240, %p241
      %s244 = sadd.s32 %s243, 1
      %p247 = scmp.eq.s32.totalorder %s20, 3
      %p248 = scmp.ne.s32.totalorder %s243, %s245
      %p249 = scmp.eq.s32.totalorder %s20, 0
      %p250 = por %p248, %p249
      %p251 = scmp.ne.s32.totalorder %s243, %s245
      %p252 = scmp.eq.s32.totalorder %s25, 3
      %p253 = por %p251, %p252
      %p254 = scmp.ne.s32.totalorder %s245, %s246
      %p255 = scmp.eq.s32.totalorder %s25, 0
      %p256 = por %p254, %p255
      %p257 = scmp.ne.s32.totalorder %s245, %s246
      %p258 = scmp.eq.s32.totalorder %s26, 3
      %p259 = por %p257, %p258
      %p261 = scmp.ne.s32.totalorder %s246, %s260
      %p262 = scmp.eq.s32.totalorder %s26, 0
      %p263 = por %p261, %p262
      %s265 = sadd.s32 %s264, 1
      %p268 = scmp.eq.s32.totalorder %s20, 3
      %p269 = scmp.ne.s32.totalorder %s264, %s266
      %p270 = scmp.eq.s32.totalorder %s20, 0
      %p271 = por %p269, %p270
      %p272 = scmp.ne.s32.totalorder %s264, %s266
      %p273 = scmp.eq.s32.totalorder %s25, 3
      %p274 = por %p272, %p273
      %p275 = scmp.ne.s32.totalorder %s266, %s267
      %p276 = scmp.eq.s32.totalorder %s25, 0
      %p277 = por %p275, %p276
      %p278 = scmp.ne.s32.totalorder %s266, %s267
      %p279 = scmp.eq.s32.totalorder %s26, 3
      %p280 = por %p278, %p279
      %p282 = scmp.ne.s32.totalorder %s267, %s281
      %p283 = scmp.eq.s32.totalorder %s26, 0
      %p284 = por %p282, %p283
      %s285 = ssub.s32 %s20, %s27
      %p286 = scmp.eq.s32.totalorder %s285, 0
      %s288 = sadd.s32 %s287, 1
      %s289 = scalar_select %p286, %s287, %s288
      %p292 = pneg %p286
      %p293 = scmp.eq.s32.totalorder %s20, 3
      %p294 = por %p292, %p293
      %p295 = scmp.ne.s32.totalorder %s287, %s290
      %p296 = scmp.eq.s32.totalorder %s20, 0
      %p297 = por %p295, %p296
      %p298 = scmp.ne.s32.totalorder %s287, %s290
      %p299 = scmp.eq.s32.totalorder %s25, 3
      %p300 = por %p298, %p299
      %p301 = scmp.ne.s32.totalorder %s290, %s291
      %p302 = scmp.eq.s32.totalorder %s25, 0
      %p303 = por %p301, %p302
      %p304 = scmp.ne.s32.totalorder %s290, %s291
      %p305 = scmp.eq.s32.totalorder %s26, 3
      %p306 = por %p304, %p305
      %p308 = scmp.ne.s32.totalorder %s291, %s307
      %p309 = scmp.eq.s32.totalorder %s26, 0
      %p310 = por %p308, %p309
      %p311 = scmp.le.s32.totalorder 1, %s20
      %p312 = scmp.lt.s32.totalorder %s20, 5
      %p313 = pnand %p311, %p312
      %p314 = pneg %p313
      // Predicated region
      $region9: #{diffeq_transformer_forward.5} parent=5 // pred_check
        _
      $region10: #{diffeq_transformer_forward.5} parent=5 // pred_check_branch
        %316 = sbr.rel (%p313) target = $region12
      $region11: #{diffeq_transformer_forward.5} parent=5 // pred_region
        %s317 = ssub.s32 %s20, 1
        // Predicated region
        $region13: #{diffeq_transformer_forward.5} parent=11 // pred_check
          %p318 = pneg %p67
        $region14: #{diffeq_transformer_forward.5} parent=11 // pred_check_branch
          %320 = sbr.rel (%p318) target = $region16
        $region15: #{diffeq_transformer_forward.5} parent=11 // pred_region
          %s322 = ssub.s32 8192, 8192
          %323 = vsyncadd [#allocation3], %s322
          %s324 = sshll.u32 [#allocation2], 4
          %s325 = int_to_ptr.vmem [resolvable:$true] %s324
          %330 = dma.hbm_to_vmem [thread:$0]  %s1, 8192, %s325, [#allocation3], 512, 512, 32
        $region16: #{diffeq_transformer_forward.5} parent=11 // pred_fallthru
          _
        // Predicated region
        $region17: #{diffeq_transformer_forward.5} parent=11 // pred_check
          %p331 = pneg %p88
        $region18: #{diffeq_transformer_forward.5} parent=11 // pred_check_branch
          %333 = sbr.rel (%p331) target = $region20
        $region19: #{diffeq_transformer_forward.5} parent=11 // pred_region
          %s335 = ssub.s32 8192, 8192
          %336 = vsyncadd [#allocation5], %s335
          %s337 = sshll.u32 [#allocation4], 4
          %s338 = int_to_ptr.vmem [resolvable:$true] %s337
          %343 = dma.hbm_to_vmem [thread:$0]  %s2, 8192, %s338, [#allocation5], 128, 128, 8
        $region20: #{diffeq_transformer_forward.5} parent=11 // pred_fallthru
          _
        // Predicated region
        $region21: #{diffeq_transformer_forward.5} parent=11 // pred_check
          %p344 = pneg %p109
        $region22: #{diffeq_transformer_forward.5} parent=11 // pred_check_branch
          %346 = sbr.rel (%p344) target = $region24
        $region23: #{diffeq_transformer_forward.5} parent=11 // pred_region
          _
        $region24: #{diffeq_transformer_forward.5} parent=11 // pred_fallthru
          _
        // Predicated region
        $region25: #{diffeq_transformer_forward.5} parent=11 // pred_check
          %p347 = pneg %p130
        $region26: #{diffeq_transformer_forward.5} parent=11 // pred_check_branch
          %349 = sbr.rel (%p347) target = $region28
        $region27: #{diffeq_transformer_forward.5} parent=11 // pred_region
          _
        $region28: #{diffeq_transformer_forward.5} parent=11 // pred_fallthru
          _
        // Predicated region
        $region29: #{diffeq_transformer_forward.5} parent=11 // pred_check
          %p350 = pneg %p151
        $region30: #{diffeq_transformer_forward.5} parent=11 // pred_check_branch
          %352 = sbr.rel (%p350) target = $region32
        $region31: #{diffeq_transformer_forward.5} parent=11 // pred_region
          _
        $region32: #{diffeq_transformer_forward.5} parent=11 // pred_fallthru
          _
        // Predicated region
        $region33: #{diffeq_transformer_forward.5} parent=11 // pred_check
          %p353 = pneg %p172
        $region34: #{diffeq_transformer_forward.5} parent=11 // pred_check_branch
          %355 = sbr.rel (%p353) target = $region36
        $region35: #{diffeq_transformer_forward.5} parent=11 // pred_region
          _
        $region36: #{diffeq_transformer_forward.5} parent=11 // pred_fallthru
          _
        // Predicated region
        $region37: #{diffeq_transformer_forward.5} parent=11 // pred_check
          %p356 = pneg %p193
        $region38: #{diffeq_transformer_forward.5} parent=11 // pred_check_branch
          %358 = sbr.rel (%p356) target = $region40
        $region39: #{diffeq_transformer_forward.5} parent=11 // pred_region
          _
        $region40: #{diffeq_transformer_forward.5} parent=11 // pred_fallthru
          _
        // Predicated region
        $region41: #{diffeq_transformer_forward.5} parent=11 // pred_check
          %p359 = pneg %p214
        $region42: #{diffeq_transformer_forward.5} parent=11 // pred_check_branch
          %361 = sbr.rel (%p359) target = $region44
        $region43: #{diffeq_transformer_forward.5} parent=11 // pred_region
          _
        $region44: #{diffeq_transformer_forward.5} parent=11 // pred_fallthru
          _
        // Predicated region
        $region45: #{diffeq_transformer_forward.5} parent=11 // pred_check
          %p362 = pneg %p235
        $region46: #{diffeq_transformer_forward.5} parent=11 // pred_check_branch
          %364 = sbr.rel (%p362) target = $region48
        $region47: #{diffeq_transformer_forward.5} parent=11 // pred_region
          _
        $region48: #{diffeq_transformer_forward.5} parent=11 // pred_fallthru
          _
        // Predicated region
        $region49: #{diffeq_transformer_forward.5} parent=11 // pred_check
          %p365 = pneg %p256
        $region50: #{diffeq_transformer_forward.5} parent=11 // pred_check_branch
          %367 = sbr.rel (%p365) target = $region52
        $region51: #{diffeq_transformer_forward.5} parent=11 // pred_region
          _
        $region52: #{diffeq_transformer_forward.5} parent=11 // pred_fallthru
          _
        // Predicated region
        $region53: #{diffeq_transformer_forward.5} parent=11 // pred_check
          %p368 = pneg %p277
        $region54: #{diffeq_transformer_forward.5} parent=11 // pred_check_branch
          %370 = sbr.rel (%p368) target = $region56
        $region55: #{diffeq_transformer_forward.5} parent=11 // pred_region
          _
        $region56: #{diffeq_transformer_forward.5} parent=11 // pred_fallthru
          _
      $region12: #{diffeq_transformer_forward.5} parent=5 // pred_fallthru
        _
      %p371 = scmp.lt.s32.totalorder %s20, 4
      // Predicated region
      $region57: #{diffeq_transformer_forward.5} parent=5 // pred_check
        %p372 = pneg %p371
      $region58: #{diffeq_transformer_forward.5} parent=5 // pred_check_branch
        %374 = sbr.rel (%p372) target = $region60
      $region59: #{diffeq_transformer_forward.5} parent=5 // pred_region
        // Predicated region
        $region61: #{diffeq_transformer_forward.5} parent=59 // pred_check
          %p375 = pneg %p40
        $region62: #{diffeq_transformer_forward.5} parent=59 // pred_check_branch
          %377 = sbr.rel (%p375) target = $region64
        $region63: #{diffeq_transformer_forward.5} parent=59 // pred_region
          %s378 = smul.u32 2, %s20
          %p379 = scmp.lt.s32.totalorder %s378, 7
          %s380 = scalar_select %p379, %s378, 7
          %s381 = smul.addr %s380, 8
          %s382 = scalar_lea.vmem %s0, %s381
          %s383 = smul.u32 2, %s20
        $region64: #{diffeq_transformer_forward.5} parent=59 // pred_fallthru
          _
      $region60: #{diffeq_transformer_forward.5} parent=5 // pred_fallthru
        _
      %p384 = scmp.le.s32.totalorder 1, %s20
      %p385 = scmp.lt.s32.totalorder %s20, 5
      %p386 = pnand %p384, %p385
      %p387 = pneg %p386
      // Predicated region
      $region65: #{diffeq_transformer_forward.5} parent=5 // pred_check
        _
      $region66: #{diffeq_transformer_forward.5} parent=5 // pred_check_branch
        %389 = sbr.rel (%p386) target = $region68
      $region67: #{diffeq_transformer_forward.5} parent=5 // pred_region
        %s390 = ssub.s32 %s20, 1
        // Predicated region
        $region69: #{diffeq_transformer_forward.5} parent=67 // pred_check
          %p391 = pneg %p67
        $region70: #{diffeq_transformer_forward.5} parent=67 // pred_check_branch
          %393 = sbr.rel (%p391) target = $region72
        $region71: #{diffeq_transformer_forward.5} parent=67 // pred_region
          %394 = dma.done [#allocation3], 8192
        $region72: #{diffeq_transformer_forward.5} parent=67 // pred_fallthru
          _
        // Predicated region
        $region73: #{diffeq_transformer_forward.5} parent=67 // pred_check
          %p395 = pneg %p88
        $region74: #{diffeq_transformer_forward.5} parent=67 // pred_check_branch
          %397 = sbr.rel (%p395) target = $region76
        $region75: #{diffeq_transformer_forward.5} parent=67 // pred_region
          %398 = dma.done [#allocation5], 8192
        $region76: #{diffeq_transformer_forward.5} parent=67 // pred_fallthru
          _
        %s399 = smul.u32 2, %s25
        %p400 = scmp.lt.s32.totalorder %s399, 7
        %s401 = scalar_select %p400, %s399, 7
        %s402 = smul.addr %s401, 8
        %s403 = scalar_lea.vmem %s0, %s402
        %p404 = pneg %p46
        %p405 = pneg %p43
        %p406 = pneg %p67
        %p407 = pneg %p64
        %p408 = pneg %p88
        %p409 = pneg %p85
        %p410 = pneg %p109
        %p411 = pneg %p106
        %p412 = pneg %p130
        %p413 = pneg %p127
        %p414 = pneg %p151
        %p415 = pneg %p148
        %p416 = pneg %p172
        %p417 = pneg %p169
        %p418 = pneg %p193
        %p419 = pneg %p190
        %p420 = pneg %p214
        %p421 = pneg %p211
        %p422 = pneg %p235
        %p423 = pneg %p232
        %p424 = pneg %p256
        %p425 = pneg %p253
        %p426 = pneg %p277
        %p427 = pneg %p274
        %p428 = pneg %p303
        %p429 = pneg %p300
        %s430 = smul.u32 2, %s25
        %p431 = scmp.lt.s32.totalorder %s430, 7
        %s432 = scalar_select %p431, %s430, 7
        %s433 = smul.addr %s432, 8
        %s434 = scalar_lea.vmem %s12, %s433
        %s435 = smul.u32 2, %s25
        %p436 = scmp.lt.s32.totalorder %s435, 7
        %s437 = scalar_select %p436, %s435, 7
        %s438 = smul.addr %s437, 8
        %s439 = scalar_lea.vmem %s0, %s438
        %s440 = smul.u32 2, %s25
        %s441 = smul.u32 2, %s25
        %p442 = scmp.lt.s32.totalorder %s441, 7
        %s443 = scalar_select %p442, %s441, 7
        %s444 = smul.addr %s443, 8
        %s445 = scalar_lea.vmem %s12, %s444
        %s446 = smul.u32 2, %s25
        %v447 = vld [vmem:[%s439] sm:$0xff]
        %v448 = vld [vmem:[%s439 + $0x8] sm:$0xff]
        %v449 = vld [vmem:[#allocation2] sm:$0xff]
        %v450 = vld [vmem:[#allocation2 + $0x8] sm:$0xff]
        %v451 = vld [vmem:[#allocation2 + $0x10] sm:$0xff]
        %v452 = vld [vmem:[#allocation2 + $0x18] sm:$0xff]
        %v453 = vld [vmem:[#allocation2 + $0x20] sm:$0xff]
        %v454 = vld [vmem:[#allocation2 + $0x28] sm:$0xff]
        %v455 = vld [vmem:[#allocation2 + $0x30] sm:$0xff]
        %v456 = vld [vmem:[#allocation2 + $0x38] sm:$0xff]
        %v457 = vld [vmem:[#allocation2 + $0x40] sm:$0xff]
        %v458 = vld [vmem:[#allocation2 + $0x48] sm:$0xff]
        %v459 = vld [vmem:[#allocation2 + $0x50] sm:$0xff]
        %v460 = vld [vmem:[#allocation2 + $0x58] sm:$0xff]
        %v461 = vld [vmem:[#allocation2 + $0x60] sm:$0xff]
        %v462 = vld [vmem:[#allocation2 + $0x68] sm:$0xff]
        %v463 = vld [vmem:[#allocation2 + $0x70] sm:$0xff]
        %v464 = vld [vmem:[#allocation2 + $0x78] sm:$0xff]
        %v465 = vld [vmem:[#allocation2 + $0x80] sm:$0xff]
        %v466 = vld [vmem:[#allocation2 + $0x88] sm:$0xff]
        %v467 = vld [vmem:[#allocation2 + $0x90] sm:$0xff]
        %v468 = vld [vmem:[#allocation2 + $0x98] sm:$0xff]
        %v469 = vld [vmem:[#allocation2 + $0xa0] sm:$0xff]
        %v470 = vld [vmem:[#allocation2 + $0xa8] sm:$0xff]
        %v471 = vld [vmem:[#allocation2 + $0xb0] sm:$0xff]
        %v472 = vld [vmem:[#allocation2 + $0xb8] sm:$0xff]
        %v473 = vld [vmem:[#allocation2 + $0xc0] sm:$0xff]
        %v474 = vld [vmem:[#allocation2 + $0xc8] sm:$0xff]
        %v475 = vld [vmem:[#allocation2 + $0xd0] sm:$0xff]
        %v476 = vld [vmem:[#allocation2 + $0xd8] sm:$0xff]
        %v477 = vld [vmem:[#allocation2 + $0xe0] sm:$0xff]
        %v478 = vld [vmem:[#allocation2 + $0xe8] sm:$0xff]
        %v479 = vld [vmem:[#allocation2 + $0xf0] sm:$0xff]
        %v480 = vld [vmem:[#allocation2 + $0xf8] sm:$0xff]
        %v481 = vld [vmem:[#allocation2 + $0x100] sm:$0xff]
        %v482 = vld [vmem:[#allocation2 + $0x108] sm:$0xff]
        %v483 = vld [vmem:[#allocation2 + $0x110] sm:$0xff]
        %v484 = vld [vmem:[#allocation2 + $0x118] sm:$0xff]
        %v485 = vld [vmem:[#allocation2 + $0x120] sm:$0xff]
        %v486 = vld [vmem:[#allocation2 + $0x128] sm:$0xff]
        %v487 = vld [vmem:[#allocation2 + $0x130] sm:$0xff]
        %v488 = vld [vmem:[#allocation2 + $0x138] sm:$0xff]
        %v489 = vld [vmem:[#allocation2 + $0x140] sm:$0xff]
        %v490 = vld [vmem:[#allocation2 + $0x148] sm:$0xff]
        %v491 = vld [vmem:[#allocation2 + $0x150] sm:$0xff]
        %v492 = vld [vmem:[#allocation2 + $0x158] sm:$0xff]
        %v493 = vld [vmem:[#allocation2 + $0x160] sm:$0xff]
        %v494 = vld [vmem:[#allocation2 + $0x168] sm:$0xff]
        %v495 = vld [vmem:[#allocation2 + $0x170] sm:$0xff]
        %v496 = vld [vmem:[#allocation2 + $0x178] sm:$0xff]
        %v497 = vld [vmem:[#allocation2 + $0x180] sm:$0xff]
        %v498 = vld [vmem:[#allocation2 + $0x188] sm:$0xff]
        %v499 = vld [vmem:[#allocation2 + $0x190] sm:$0xff]
        %v500 = vld [vmem:[#allocation2 + $0x198] sm:$0xff]
        %v501 = vld [vmem:[#allocation2 + $0x1a0] sm:$0xff]
        %v502 = vld [vmem:[#allocation2 + $0x1a8] sm:$0xff]
        %v503 = vld [vmem:[#allocation2 + $0x1b0] sm:$0xff]
        %v504 = vld [vmem:[#allocation2 + $0x1b8] sm:$0xff]
        %v505 = vld [vmem:[#allocation2 + $0x1c0] sm:$0xff]
        %v506 = vld [vmem:[#allocation2 + $0x1c8] sm:$0xff]
        %v507 = vld [vmem:[#allocation2 + $0x1d0] sm:$0xff]
        %v508 = vld [vmem:[#allocation2 + $0x1d8] sm:$0xff]
        %v509 = vld [vmem:[#allocation2 + $0x1e0] sm:$0xff]
        %v510 = vld [vmem:[#allocation2 + $0x1e8] sm:$0xff]
        %v511 = vld [vmem:[#allocation2 + $0x1f0] sm:$0xff]
        %v512 = vld [vmem:[#allocation2 + $0x1f8] sm:$0xff]
        %513 = vmatprep.subr.mxu0 %v450
        %514 = vmatpush1.msra.mxu0 %v449
        %515 = vmatprep.subr.mxu0 %v454
        %516 = vmatpush1.msra.mxu0 %v453
        %517 = vmatprep.subr.mxu0 %v458
        %518 = vmatpush1.msra.mxu0 %v457
        %519 = vmatprep.subr.mxu0 %v462
        %520 = vmatpush1.msra.mxu0 %v461
        %521 = vmatprep.subr.mxu0 %v466
        %522 = vmatpush1.msra.mxu0 %v465
        %523 = vmatprep.subr.mxu0 %v470
        %524 = vmatpush1.msra.mxu0 %v469
        %525 = vmatprep.subr.mxu0 %v474
        %526 = vmatpush1.msra.mxu0 %v473
        %527 = vmatprep.subr.mxu0 %v478
        %528 = vmatpush1.msra.mxu0 %v477
        %529 = vmatprep.subr.mxu0 %v482
        %530 = vmatpush1.msra.mxu0 %v481
        %531 = vmatprep.subr.mxu0 %v486
        %532 = vmatpush1.msra.mxu0 %v485
        %533 = vmatprep.subr.mxu0 %v490
        %534 = vmatpush1.msra.mxu0 %v489
        %535 = vmatprep.subr.mxu0 %v494
        %536 = vmatpush1.msra.mxu0 %v493
        %537 = vmatprep.subr.mxu0 %v498
        %538 = vmatpush1.msra.mxu0 %v497
        %539 = vmatprep.subr.mxu0 %v502
        %540 = vmatpush1.msra.mxu0 %v501
        %541 = vmatprep.subr.mxu0 %v506
        %542 = vmatpush1.msra.mxu0 %v505
        %543 = vmatprep.subr.mxu0 %v510
        %544 = vmatpush1.msra.mxu0 %v509
        %545 = vmatprep.subr.mxu0 0.0
        %546 = vmatpush1.msra.mxu0 0.0
        %547 = vmatprep.subr.mxu0 0.0
        %548 = vmatpush1.msra.mxu0 0.0
        %549 = vmatprep.subr.mxu0 0.0
        %550 = vmatpush1.msra.mxu0 0.0
        %551 = vmatprep.subr.mxu0 0.0
        %552 = vmatpush1.msra.mxu0 0.0
        %553 = vmatprep.subr.mxu0 0.0
        %554 = vmatpush1.msra.mxu0 0.0
        %555 = vmatprep.subr.mxu0 0.0
        %556 = vmatpush1.msra.mxu0 0.0
        %557 = vmatprep.subr.mxu0 0.0
        %558 = vmatpush1.msra.mxu0 0.0
        %559 = vmatprep.subr.mxu0 0.0
        %560 = vmatpush1.msra.mxu0 0.0
        %561 = vmatprep.subr.mxu0 0.0
        %562 = vmatpush1.msra.mxu0 0.0
        %563 = vmatprep.subr.mxu0 0.0
        %564 = vmatpush1.msra.mxu0 0.0
        %565 = vmatprep.subr.mxu0 0.0
        %566 = vmatpush1.msra.mxu0 0.0
        %567 = vmatprep.subr.mxu0 0.0
        %568 = vmatpush1.msra.mxu0 0.0
        %569 = vmatprep.subr.mxu0 0.0
        %570 = vmatpush1.msra.mxu0 0.0
        %571 = vmatprep.subr.mxu0 0.0
        %572 = vmatpush1.msra.mxu0 0.0
        %573 = vmatprep.subr.mxu0 0.0
        %574 = vmatpush1.msra.mxu0 0.0
        %575 = vmatprep.subr.mxu0 0.0
        %576 = vmatpush1.msra.mxu0 0.0
        %577 = vmatprep.mubr.f32.mxu0 0.0
        %578 = vmatmul.mubr.f32.gmra.mrb[0].mxu0 %v447
        %v579 = vpop.f32.mrb[0].mxu0
        %v580 = vadd.f32 0.0, %v579
        %v581 = vpop.f32.mrb[0].mxu0
        %v582 = vadd.f32 0.0, %v581
        %583 = vmatprep.mubr.f32.mxu0 0.0
        %584 = vmatmul.mubr.f32.gmra.mrb[0].mxu0 %v448
        %v585 = vpop.f32.mrb[0].mxu0
        %v586 = vadd.f32 0.0, %v585
        %v587 = vpop.f32.mrb[0].mxu0
        %v588 = vadd.f32 0.0, %v587
        %589 = vdwg.mxu0
        %590 = vmatprep.subr.mxu0 %v452
        %591 = vmatpush1.msra.mxu0 %v451
        %592 = vmatprep.subr.mxu0 %v456
        %593 = vmatpush1.msra.mxu0 %v455
        %594 = vmatprep.subr.mxu0 %v460
        %595 = vmatpush1.msra.mxu0 %v459
        %596 = vmatprep.subr.mxu0 %v464
        %597 = vmatpush1.msra.mxu0 %v463
        %598 = vmatprep.subr.mxu0 %v468
        %599 = vmatpush1.msra.mxu0 %v467
        %600 = vmatprep.subr.mxu0 %v472
        %601 = vmatpush1.msra.mxu0 %v471
        %602 = vmatprep.subr.mxu0 %v476
        %603 = vmatpush1.msra.mxu0 %v475
        %604 = vmatprep.subr.mxu0 %v480
        %605 = vmatpush1.msra.mxu0 %v479
        %606 = vmatprep.subr.mxu0 %v484
        %607 = vmatpush1.msra.mxu0 %v483
        %608 = vmatprep.subr.mxu0 %v488
        %609 = vmatpush1.msra.mxu0 %v487
        %610 = vmatprep.subr.mxu0 %v492
        %611 = vmatpush1.msra.mxu0 %v491
        %612 = vmatprep.subr.mxu0 %v496
        %613 = vmatpush1.msra.mxu0 %v495
        %614 = vmatprep.subr.mxu0 %v500
        %615 = vmatpush1.msra.mxu0 %v499
        %616 = vmatprep.subr.mxu0 %v504
        %617 = vmatpush1.msra.mxu0 %v503
        %618 = vmatprep.subr.mxu0 %v508
        %619 = vmatpush1.msra.mxu0 %v507
        %620 = vmatprep.subr.mxu0 %v512
        %621 = vmatpush1.msra.mxu0 %v511
        %622 = vmatprep.subr.mxu0 0.0
        %623 = vmatpush1.msra.mxu0 0.0
        %624 = vmatprep.subr.mxu0 0.0
        %625 = vmatpush1.msra.mxu0 0.0
        %626 = vmatprep.subr.mxu0 0.0
        %627 = vmatpush1.msra.mxu0 0.0
        %628 = vmatprep.subr.mxu0 0.0
        %629 = vmatpush1.msra.mxu0 0.0
        %630 = vmatprep.subr.mxu0 0.0
        %631 = vmatpush1.msra.mxu0 0.0
        %632 = vmatprep.subr.mxu0 0.0
        %633 = vmatpush1.msra.mxu0 0.0
        %634 = vmatprep.subr.mxu0 0.0
        %635 = vmatpush1.msra.mxu0 0.0
        %636 = vmatprep.subr.mxu0 0.0
        %637 = vmatpush1.msra.mxu0 0.0
        %638 = vmatprep.subr.mxu0 0.0
        %639 = vmatpush1.msra.mxu0 0.0
        %640 = vmatprep.subr.mxu0 0.0
        %641 = vmatpush1.msra.mxu0 0.0
        %642 = vmatprep.subr.mxu0 0.0
        %643 = vmatpush1.msra.mxu0 0.0
        %644 = vmatprep.subr.mxu0 0.0
        %645 = vmatpush1.msra.mxu0 0.0
        %646 = vmatprep.subr.mxu0 0.0
        %647 = vmatpush1.msra.mxu0 0.0
        %648 = vmatprep.subr.mxu0 0.0
        %649 = vmatpush1.msra.mxu0 0.0
        %650 = vmatprep.subr.mxu0 0.0
        %651 = vmatpush1.msra.mxu0 0.0
        %652 = vmatprep.subr.mxu0 0.0
        %653 = vmatpush1.msra.mxu0 0.0
        %654 = vmatprep.mubr.f32.mxu0 0.0
        %655 = vmatmul.mubr.f32.gmra.mrb[0].mxu0 %v447
        %v656 = vpop.f32.mrb[0].mxu0
        %v657 = vadd.f32 0.0, %v656
        %v658 = vpop.f32.mrb[0].mxu0
        %v659 = vadd.f32 0.0, %v658
        %660 = vmatprep.mubr.f32.mxu0 0.0
        %661 = vmatmul.mubr.f32.gmra.mrb[0].mxu0 %v448
        %v662 = vpop.f32.mrb[0].mxu0
        %v663 = vadd.f32 0.0, %v662
        %v664 = vpop.f32.mrb[0].mxu0
        %v665 = vadd.f32 0.0, %v664
        %666 = vdwg.mxu0
        %667 = vmatprep.subr.mxu0 0.0
        %668 = vmatpush1.xpose.msra.mxu0 %v447
        %669 = vmatprep.subr.mxu0 0.0
        %670 = vmatpush1.xpose.msra.mxu0 %v448
        %671 = vmatprep.subr.mxu0 0.0
        %672 = vmatpush1.xpose.msra.mxu0 0.0
        %673 = vmatprep.subr.mxu0 0.0
        %674 = vmatpush1.xpose.msra.mxu0 0.0
        %675 = vmatprep.subr.mxu0 0.0
        %676 = vmatpush1.xpose.msra.mxu0 0.0
        %677 = vmatprep.subr.mxu0 0.0
        %678 = vmatpush1.xpose.msra.mxu0 0.0
        %679 = vmatprep.subr.mxu0 0.0
        %680 = vmatpush1.xpose.msra.mxu0 0.0
        %681 = vmatprep.subr.mxu0 0.0
        %682 = vmatpush1.xpose.msra.mxu0 0.0
        %683 = vmatprep.subr.mxu0 0.0
        %684 = vmatpush1.xpose.msra.mxu0 0.0
        %685 = vmatprep.subr.mxu0 0.0
        %686 = vmatpush1.xpose.msra.mxu0 0.0
        %687 = vmatprep.subr.mxu0 0.0
        %688 = vmatpush1.xpose.msra.mxu0 0.0
        %689 = vmatprep.subr.mxu0 0.0
        %690 = vmatpush1.xpose.msra.mxu0 0.0
        %691 = vmatprep.subr.mxu0 0.0
        %692 = vmatpush1.xpose.msra.mxu0 0.0
        %693 = vmatprep.subr.mxu0 0.0
        %694 = vmatpush1.xpose.msra.mxu0 0.0
        %695 = vmatprep.subr.mxu0 0.0
        %696 = vmatpush1.xpose.msra.mxu0 0.0
        %697 = vmatprep.subr.mxu0 0.0
        %698 = vmatpush1.xpose.msra.mxu0 0.0
        %699 = vmatprep.subr.mxu0 0.0
        %700 = vmatpush1.xpose.msra.mxu0 0.0
        %701 = vmatprep.subr.mxu0 0.0
        %702 = vmatpush1.xpose.msra.mxu0 0.0
        %703 = vmatprep.subr.mxu0 0.0
        %704 = vmatpush1.xpose.msra.mxu0 0.0
        %705 = vmatprep.subr.mxu0 0.0
        %706 = vmatpush1.xpose.msra.mxu0 0.0
        %707 = vmatprep.subr.mxu0 0.0
        %708 = vmatpush1.xpose.msra.mxu0 0.0
        %709 = vmatprep.subr.mxu0 0.0
        %710 = vmatpush1.xpose.msra.mxu0 0.0
        %711 = vmatprep.subr.mxu0 0.0
        %712 = vmatpush1.xpose.msra.mxu0 0.0
        %713 = vmatprep.subr.mxu0 0.0
        %714 = vmatpush1.xpose.msra.mxu0 0.0
        %715 = vmatprep.subr.mxu0 0.0
        %716 = vmatpush1.xpose.msra.mxu0 0.0
        %717 = vmatprep.subr.mxu0 0.0
        %718 = vmatpush1.xpose.msra.mxu0 0.0
        %719 = vmatprep.subr.mxu0 0.0
        %720 = vmatpush1.xpose.msra.mxu0 0.0
        %721 = vmatprep.subr.mxu0 0.0
        %722 = vmatpush1.xpose.msra.mxu0 0.0
        %723 = vmatprep.subr.mxu0 0.0
        %724 = vmatpush1.xpose.msra.mxu0 0.0
        %725 = vmatprep.subr.mxu0 0.0
        %726 = vmatpush1.xpose.msra.mxu0 0.0
        %727 = vmatprep.subr.mxu0 0.0
        %728 = vmatpush1.xpose.msra.mxu0 0.0
        %729 = vmatprep.subr.mxu0 0.0
        %730 = vmatpush1.xpose.msra.mxu0 0.0
        %731 = vmatprep.mubr.f32.mxu0 0.0
        %732 = vmatmul.mubr.f32.gmra.mrb[0].mxu0 %v580
        %v733 = vpop.f32.mrb[0].mxu0
        %v734 = vadd.f32 0.0, %v733
        %v735 = vpop.f32.mrb[0].mxu0
        %736 = vmatprep.mubr.f32.mxu0 0.0
        %737 = vmatmul.mubr.f32.gmra.mrb[0].mxu0 %v586
        %v738 = vpop.f32.mrb[0].mxu0
        %v739 = vadd.f32 0.0, %v738
        %v740 = vpop.f32.mrb[0].mxu0
        %741 = vdwg.mxu0
        %v742 = vmul.f32 %v580, %v447
        %v743 = vmul.f32 %v586, %v448
        %744 = vadd.xlane.f32.xlu0 %v742
        %v745 = vpop.xlane.xlu0 %744
        %746 = vadd.xlane.f32.xlu0 %v743
        %v747 = vpop.xlane.xlu0 %746
        %v748 = vmul.f32 %v734, 2.0
        %v749 = vmul.f32 %v739, 2.0
        %v750 = vsub.f32 %v748, %v745
        %v751 = vsub.f32 %v749, %v747
        %752 = vxpose.xlu0.b32.start [1/16] %v745, 128
        %753 = vxpose.xlu0.b32.cont [2/16] %v747, 128
        %754 = vxpose.xlu0.b32.cont [3/16] 0.0, 128
        %755 = vxpose.xlu0.b32.cont [4/16] 0.0, 128
        %756 = vxpose.xlu0.b32.cont [5/16] 0.0, 128
        %757 = vxpose.xlu0.b32.cont [6/16] 0.0, 128
        %758 = vxpose.xlu0.b32.cont [7/16] 0.0, 128
        %759 = vxpose.xlu0.b32.cont [8/16] 0.0, 128
        %760 = vxpose.xlu0.b32.cont [9/16] 0.0, 128
        %761 = vxpose.xlu0.b32.cont [10/16] 0.0, 128
        %762 = vxpose.xlu0.b32.cont [11/16] 0.0, 128
        %763 = vxpose.xlu0.b32.cont [12/16] 0.0, 128
        %764 = vxpose.xlu0.b32.cont [13/16] 0.0, 128
        %765 = vxpose.xlu0.b32.cont [14/16] 0.0, 128
        %766 = vxpose.xlu0.b32.cont [15/16] 0.0, 128
        %767 = vxpose.xlu0.b32.end [16/16] 0.0, 128
        %v768 = vpop.trf.xlu0
        %v769 = vpop.trf.xlu0
        %v770 = vpop.trf.xlu0
        %v771 = vpop.trf.xlu0
        %v772 = vpop.trf.xlu0
        %v773 = vpop.trf.xlu0
        %v774 = vpop.trf.xlu0
        %v775 = vpop.trf.xlu0
        %v776 = vpop.trf.xlu0
        %v777 = vpop.trf.xlu0
        %v778 = vpop.trf.xlu0
        %v779 = vpop.trf.xlu0
        %v780 = vpop.trf.xlu0
        %v781 = vpop.trf.xlu0
        %v782 = vpop.trf.xlu0
        %v783 = vpop.trf.xlu0
        %v784 = vlaneseq
        %v785 = vshrl.u32 %v784, 7
        %v786 = vsub.s32 0, %v785
        %v787 = vrot.slane %v768, %v786
        %v788 = vsub.f32 %v750, %v787
        %v789 = vsub.f32 %v751, %v787
        %vm790 = vcmask 130048
        %v791 = vsel %vm790, %v788, -inf
        %792 = vmax.xlane.f32.xlu0 %v791
        %v793 = vpop.xlane.xlu0 %792
        %v794 = vsel %vm790, %v789, -inf
        %795 = vmax.xlane.f32.xlu0 %v794
        %v796 = vpop.xlane.xlu0 %795
        %v797 = vsub.f32 %v788, %v793
        %v798 = vsub.f32 %v789, %v796
        %v799 = vmul.f32 %v797, 1.442695
        %v800 = vpow.pop %v799
        %v801 = vmul.f32 %v798, 1.442695
        %v802 = vpow.pop %v801
        %v803 = vsel %vm790, %v800, 0.0
        %804 = vadd.xlane.f32.xlu0 %v803
        %v805 = vpop.xlane.xlu0 %804
        %v806 = vsel %vm790, %v802, 0.0
        %807 = vadd.xlane.f32.xlu0 %v806
        %v808 = vpop.xlane.xlu0 %807
        %v809 = vrcp.pop %v805
        %v810 = vrcp.pop %v808
        %v811 = vmul.f32 %v800, %v809
        %v812 = vmul.f32 %v802, %v810
        %v814 = vsel %vm790, %v811, 0
        %v817 = vsel %vm790, %v812, 0
        %819 = vmatprep.subr.mxu0 0.0
        %820 = vmatpush1.msra.mxu0 %v580
        %821 = vmatprep.subr.mxu0 0.0
        %822 = vmatpush1.msra.mxu0 %v586
        %823 = vmatprep.subr.mxu0 0.0
        %824 = vmatpush1.msra.mxu0 0.0
        %825 = vmatprep.subr.mxu0 0.0
        %826 = vmatpush1.msra.mxu0 0.0
        %827 = vmatprep.subr.mxu0 0.0
        %828 = vmatpush1.msra.mxu0 0.0
        %829 = vmatprep.subr.mxu0 0.0
        %830 = vmatpush1.msra.mxu0 0.0
        %831 = vmatprep.subr.mxu0 0.0
        %832 = vmatpush1.msra.mxu0 0.0
        %833 = vmatprep.subr.mxu0 0.0
        %834 = vmatpush1.msra.mxu0 0.0
        %835 = vmatprep.subr.mxu0 0.0
        %836 = vmatpush1.msra.mxu0 0.0
        %837 = vmatprep.subr.mxu0 0.0
        %838 = vmatpush1.msra.mxu0 0.0
        %839 = vmatprep.subr.mxu0 0.0
        %840 = vmatpush1.msra.mxu0 0.0
        %841 = vmatprep.subr.mxu0 0.0
        %842 = vmatpush1.msra.mxu0 0.0
        %843 = vmatprep.subr.mxu0 0.0
        %844 = vmatpush1.msra.mxu0 0.0
        %845 = vmatprep.subr.mxu0 0.0
        %846 = vmatpush1.msra.mxu0 0.0
        %847 = vmatprep.subr.mxu0 0.0
        %848 = vmatpush1.msra.mxu0 0.0
        %849 = vmatprep.subr.mxu0 0.0
        %850 = vmatpush1.msra.mxu0 0.0
        %851 = vmatprep.subr.mxu0 0.0
        %852 = vmatpush1.msra.mxu0 0.0
        %853 = vmatprep.subr.mxu0 0.0
        %854 = vmatpush1.msra.mxu0 0.0
        %855 = vmatprep.subr.mxu0 0.0
        %856 = vmatpush1.msra.mxu0 0.0
        %857 = vmatprep.subr.mxu0 0.0
        %858 = vmatpush1.msra.mxu0 0.0
        %859 = vmatprep.subr.mxu0 0.0
        %860 = vmatpush1.msra.mxu0 0.0
        %861 = vmatprep.subr.mxu0 0.0
        %862 = vmatpush1.msra.mxu0 0.0
        %863 = vmatprep.subr.mxu0 0.0
        %864 = vmatpush1.msra.mxu0 0.0
        %865 = vmatprep.subr.mxu0 0.0
        %866 = vmatpush1.msra.mxu0 0.0
        %867 = vmatprep.subr.mxu0 0.0
        %868 = vmatpush1.msra.mxu0 0.0
        %869 = vmatprep.subr.mxu0 0.0
        %870 = vmatpush1.msra.mxu0 0.0
        %871 = vmatprep.subr.mxu0 0.0
        %872 = vmatpush1.msra.mxu0 0.0
        %873 = vmatprep.subr.mxu0 0.0
        %874 = vmatpush1.msra.mxu0 0.0
        %875 = vmatprep.subr.mxu0 0.0
        %876 = vmatpush1.msra.mxu0 0.0
        %877 = vmatprep.subr.mxu0 0.0
        %878 = vmatpush1.msra.mxu0 0.0
        %879 = vmatprep.subr.mxu0 0.0
        %880 = vmatpush1.msra.mxu0 0.0
        %881 = vmatprep.subr.mxu0 0.0
        %882 = vmatpush1.msra.mxu0 0.0
        %883 = vmatprep.mubr.f32.mxu0 0.0
        %884 = vmatmul.mubr.f32.gmra.mrb[0].mxu0 %v814
        %v885 = vpop.f32.mrb[0].mxu0
        %v886 = vadd.f32 0.0, %v885
        %v887 = vpop.f32.mrb[0].mxu0
        %888 = vmatprep.mubr.f32.mxu0 0.0
        %889 = vmatmul.mubr.f32.gmra.mrb[0].mxu0 %v817
        %v890 = vpop.f32.mrb[0].mxu0
        %v891 = vadd.f32 0.0, %v890
        %v892 = vpop.f32.mrb[0].mxu0
        %893 = vdwg.mxu0
        %894 = vmatprep.subr.mxu0 0.0
        %895 = vmatpush1.xpose.msra.mxu0 %v447
        %896 = vmatprep.subr.mxu0 0.0
        %897 = vmatpush1.xpose.msra.mxu0 %v448
        %898 = vmatprep.subr.mxu0 0.0
        %899 = vmatpush1.xpose.msra.mxu0 0.0
        %900 = vmatprep.subr.mxu0 0.0
        %901 = vmatpush1.xpose.msra.mxu0 0.0
        %902 = vmatprep.subr.mxu0 0.0
        %903 = vmatpush1.xpose.msra.mxu0 0.0
        %904 = vmatprep.subr.mxu0 0.0
        %905 = vmatpush1.xpose.msra.mxu0 0.0
        %906 = vmatprep.subr.mxu0 0.0
        %907 = vmatpush1.xpose.msra.mxu0 0.0
        %908 = vmatprep.subr.mxu0 0.0
        %909 = vmatpush1.xpose.msra.mxu0 0.0
        %910 = vmatprep.subr.mxu0 0.0
        %911 = vmatpush1.xpose.msra.mxu0 0.0
        %912 = vmatprep.subr.mxu0 0.0
        %913 = vmatpush1.xpose.msra.mxu0 0.0
        %914 = vmatprep.subr.mxu0 0.0
        %915 = vmatpush1.xpose.msra.mxu0 0.0
        %916 = vmatprep.subr.mxu0 0.0
        %917 = vmatpush1.xpose.msra.mxu0 0.0
        %918 = vmatprep.subr.mxu0 0.0
        %919 = vmatpush1.xpose.msra.mxu0 0.0
        %920 = vmatprep.subr.mxu0 0.0
        %921 = vmatpush1.xpose.msra.mxu0 0.0
        %922 = vmatprep.subr.mxu0 0.0
        %923 = vmatpush1.xpose.msra.mxu0 0.0
        %924 = vmatprep.subr.mxu0 0.0
        %925 = vmatpush1.xpose.msra.mxu0 0.0
        %926 = vmatprep.subr.mxu0 0.0
        %927 = vmatpush1.xpose.msra.mxu0 0.0
        %928 = vmatprep.subr.mxu0 0.0
        %929 = vmatpush1.xpose.msra.mxu0 0.0
        %930 = vmatprep.subr.mxu0 0.0
        %931 = vmatpush1.xpose.msra.mxu0 0.0
        %932 = vmatprep.subr.mxu0 0.0
        %933 = vmatpush1.xpose.msra.mxu0 0.0
        %934 = vmatprep.subr.mxu0 0.0
        %935 = vmatpush1.xpose.msra.mxu0 0.0
        %936 = vmatprep.subr.mxu0 0.0
        %937 = vmatpush1.xpose.msra.mxu0 0.0
        %938 = vmatprep.subr.mxu0 0.0
        %939 = vmatpush1.xpose.msra.mxu0 0.0
        %940 = vmatprep.subr.mxu0 0.0
        %941 = vmatpush1.xpose.msra.mxu0 0.0
        %942 = vmatprep.subr.mxu0 0.0
        %943 = vmatpush1.xpose.msra.mxu0 0.0
        %944 = vmatprep.subr.mxu0 0.0
        %945 = vmatpush1.xpose.msra.mxu0 0.0
        %946 = vmatprep.subr.mxu0 0.0
        %947 = vmatpush1.xpose.msra.mxu0 0.0
        %948 = vmatprep.subr.mxu0 0.0
        %949 = vmatpush1.xpose.msra.mxu0 0.0
        %950 = vmatprep.subr.mxu0 0.0
        %951 = vmatpush1.xpose.msra.mxu0 0.0
        %952 = vmatprep.subr.mxu0 0.0
        %953 = vmatpush1.xpose.msra.mxu0 0.0
        %954 = vmatprep.subr.mxu0 0.0
        %955 = vmatpush1.xpose.msra.mxu0 0.0
        %956 = vmatprep.subr.mxu0 0.0
        %957 = vmatpush1.xpose.msra.mxu0 0.0
        %958 = vmatprep.mubr.f32.mxu0 0.0
        %959 = vmatmul.mubr.f32.gmra.mrb[0].mxu0 %v582
        %v960 = vpop.f32.mrb[0].mxu0
        %v961 = vadd.f32 0.0, %v960
        %v962 = vpop.f32.mrb[0].mxu0
        %963 = vmatprep.mubr.f32.mxu0 0.0
        %964 = vmatmul.mubr.f32.gmra.mrb[0].mxu0 %v588
        %v965 = vpop.f32.mrb[0].mxu0
        %v966 = vadd.f32 0.0, %v965
        %v967 = vpop.f32.mrb[0].mxu0
        %968 = vdwg.mxu0
        %v969 = vmul.f32 %v582, %v447
        %v970 = vmul.f32 %v588, %v448
        %971 = vadd.xlane.f32.xlu0 %v969
        %v972 = vpop.xlane.xlu0 %971
        %973 = vadd.xlane.f32.xlu0 %v970
        %v974 = vpop.xlane.xlu0 %973
        %v975 = vmul.f32 %v961, 2.0
        %v976 = vmul.f32 %v966, 2.0
        %v977 = vsub.f32 %v975, %v972
        %v978 = vsub.f32 %v976, %v974
        %979 = vxpose.xlu0.b32.start [1/16] %v972, 128
        %980 = vxpose.xlu0.b32.cont [2/16] %v974, 128
        %981 = vxpose.xlu0.b32.cont [3/16] 0.0, 128
        %982 = vxpose.xlu0.b32.cont [4/16] 0.0, 128
        %983 = vxpose.xlu0.b32.cont [5/16] 0.0, 128
        %984 = vxpose.xlu0.b32.cont [6/16] 0.0, 128
        %985 = vxpose.xlu0.b32.cont [7/16] 0.0, 128
        %986 = vxpose.xlu0.b32.cont [8/16] 0.0, 128
        %987 = vxpose.xlu0.b32.cont [9/16] 0.0, 128
        %988 = vxpose.xlu0.b32.cont [10/16] 0.0, 128
        %989 = vxpose.xlu0.b32.cont [11/16] 0.0, 128
        %990 = vxpose.xlu0.b32.cont [12/16] 0.0, 128
        %991 = vxpose.xlu0.b32.cont [13/16] 0.0, 128
        %992 = vxpose.xlu0.b32.cont [14/16] 0.0, 128
        %993 = vxpose.xlu0.b32.cont [15/16] 0.0, 128
        %994 = vxpose.xlu0.b32.end [16/16] 0.0, 128
        %v995 = vpop.trf.xlu0
        %v996 = vpop.trf.xlu0
        %v997 = vpop.trf.xlu0
        %v998 = vpop.trf.xlu0
        %v999 = vpop.trf.xlu0
        %v1000 = vpop.trf.xlu0
        %v1001 = vpop.trf.xlu0
        %v1002 = vpop.trf.xlu0
        %v1003 = vpop.trf.xlu0
        %v1004 = vpop.trf.xlu0
        %v1005 = vpop.trf.xlu0
        %v1006 = vpop.trf.xlu0
        %v1007 = vpop.trf.xlu0
        %v1008 = vpop.trf.xlu0
        %v1009 = vpop.trf.xlu0
        %v1010 = vpop.trf.xlu0
        %v1011 = vlaneseq
        %v1012 = vshrl.u32 %v1011, 7
        %v1013 = vsub.s32 0, %v1012
        %v1014 = vrot.slane %v995, %v1013
        %v1015 = vsub.f32 %v977, %v1014
        %v1016 = vsub.f32 %v978, %v1014
        %v1017 = vsel %vm790, %v1015, -inf
        %1018 = vmax.xlane.f32.xlu0 %v1017
        %v1019 = vpop.xlane.xlu0 %1018
        %v1020 = vsel %vm790, %v1016, -inf
        %1021 = vmax.xlane.f32.xlu0 %v1020
        %v1022 = vpop.xlane.xlu0 %1021
        %v1023 = vsub.f32 %v1015, %v1019
        %v1024 = vsub.f32 %v1016, %v1022
        %v1025 = vmul.f32 %v1023, 1.442695
        %v1026 = vpow.pop %v1025
        %v1027 = vmul.f32 %v1024, 1.442695
        %v1028 = vpow.pop %v1027
        %v1029 = vsel %vm790, %v1026, 0.0
        %1030 = vadd.xlane.f32.xlu0 %v1029
        %v1031 = vpop.xlane.xlu0 %1030
        %v1032 = vsel %vm790, %v1028, 0.0
        %1033 = vadd.xlane.f32.xlu0 %v1032
        %v1034 = vpop.xlane.xlu0 %1033
        %v1035 = vrcp.pop %v1031
        %v1036 = vrcp.pop %v1034
        %v1037 = vmul.f32 %v1026, %v1035
        %v1038 = vmul.f32 %v1028, %v1036
        %v1040 = vsel %vm790, %v1037, 0
        %v1043 = vsel %vm790, %v1038, 0
        %1045 = vmatprep.subr.mxu0 0.0
        %1046 = vmatpush1.msra.mxu0 %v582
        %1047 = vmatprep.subr.mxu0 0.0
        %1048 = vmatpush1.msra.mxu0 %v588
        %1049 = vmatprep.subr.mxu0 0.0
        %1050 = vmatpush1.msra.mxu0 0.0
        %1051 = vmatprep.subr.mxu0 0.0
        %1052 = vmatpush1.msra.mxu0 0.0
        %1053 = vmatprep.subr.mxu0 0.0
        %1054 = vmatpush1.msra.mxu0 0.0
        %1055 = vmatprep.subr.mxu0 0.0
        %1056 = vmatpush1.msra.mxu0 0.0
        %1057 = vmatprep.subr.mxu0 0.0
        %1058 = vmatpush1.msra.mxu0 0.0
        %1059 = vmatprep.subr.mxu0 0.0
        %1060 = vmatpush1.msra.mxu0 0.0
        %1061 = vmatprep.subr.mxu0 0.0
        %1062 = vmatpush1.msra.mxu0 0.0
        %1063 = vmatprep.subr.mxu0 0.0
        %1064 = vmatpush1.msra.mxu0 0.0
        %1065 = vmatprep.subr.mxu0 0.0
        %1066 = vmatpush1.msra.mxu0 0.0
        %1067 = vmatprep.subr.mxu0 0.0
        %1068 = vmatpush1.msra.mxu0 0.0
        %1069 = vmatprep.subr.mxu0 0.0
        %1070 = vmatpush1.msra.mxu0 0.0
        %1071 = vmatprep.subr.mxu0 0.0
        %1072 = vmatpush1.msra.mxu0 0.0
        %1073 = vmatprep.subr.mxu0 0.0
        %1074 = vmatpush1.msra.mxu0 0.0
        %1075 = vmatprep.subr.mxu0 0.0
        %1076 = vmatpush1.msra.mxu0 0.0
        %1077 = vmatprep.subr.mxu0 0.0
        %1078 = vmatpush1.msra.mxu0 0.0
        %1079 = vmatprep.subr.mxu0 0.0
        %1080 = vmatpush1.msra.mxu0 0.0
        %1081 = vmatprep.subr.mxu0 0.0
        %1082 = vmatpush1.msra.mxu0 0.0
        %1083 = vmatprep.subr.mxu0 0.0
        %1084 = vmatpush1.msra.mxu0 0.0
        %1085 = vmatprep.subr.mxu0 0.0
        %1086 = vmatpush1.msra.mxu0 0.0
        %1087 = vmatprep.subr.mxu0 0.0
        %1088 = vmatpush1.msra.mxu0 0.0
        %1089 = vmatprep.subr.mxu0 0.0
        %1090 = vmatpush1.msra.mxu0 0.0
        %1091 = vmatprep.subr.mxu0 0.0
        %1092 = vmatpush1.msra.mxu0 0.0
        %1093 = vmatprep.subr.mxu0 0.0
        %1094 = vmatpush1.msra.mxu0 0.0
        %1095 = vmatprep.subr.mxu0 0.0
        %1096 = vmatpush1.msra.mxu0 0.0
        %1097 = vmatprep.subr.mxu0 0.0
        %1098 = vmatpush1.msra.mxu0 0.0
        %1099 = vmatprep.subr.mxu0 0.0
        %1100 = vmatpush1.msra.mxu0 0.0
        %1101 = vmatprep.subr.mxu0 0.0
        %1102 = vmatpush1.msra.mxu0 0.0
        %1103 = vmatprep.subr.mxu0 0.0
        %1104 = vmatpush1.msra.mxu0 0.0
        %1105 = vmatprep.subr.mxu0 0.0
        %1106 = vmatpush1.msra.mxu0 0.0
        %1107 = vmatprep.subr.mxu0 0.0
        %1108 = vmatpush1.msra.mxu0 0.0
        %1109 = vmatprep.mubr.f32.mxu0 0.0
        %1110 = vmatmul.mubr.f32.gmra.mrb[0].mxu0 %v1040
        %v1111 = vpop.f32.mrb[0].mxu0
        %v1112 = vadd.f32 0.0, %v1111
        %v1113 = vpop.f32.mrb[0].mxu0
        %1114 = vmatprep.mubr.f32.mxu0 0.0
        %1115 = vmatmul.mubr.f32.gmra.mrb[0].mxu0 %v1043
        %v1116 = vpop.f32.mrb[0].mxu0
        %v1117 = vadd.f32 0.0, %v1116
        %v1118 = vpop.f32.mrb[0].mxu0
        %1119 = vdwg.mxu0
        %1120 = vmatprep.subr.mxu0 0.0
        %1121 = vmatpush1.xpose.msra.mxu0 %v447
        %1122 = vmatprep.subr.mxu0 0.0
        %1123 = vmatpush1.xpose.msra.mxu0 %v448
        %1124 = vmatprep.subr.mxu0 0.0
        %1125 = vmatpush1.xpose.msra.mxu0 0.0
        %1126 = vmatprep.subr.mxu0 0.0
        %1127 = vmatpush1.xpose.msra.mxu0 0.0
        %1128 = vmatprep.subr.mxu0 0.0
        %1129 = vmatpush1.xpose.msra.mxu0 0.0
        %1130 = vmatprep.subr.mxu0 0.0
        %1131 = vmatpush1.xpose.msra.mxu0 0.0
        %1132 = vmatprep.subr.mxu0 0.0
        %1133 = vmatpush1.xpose.msra.mxu0 0.0
        %1134 = vmatprep.subr.mxu0 0.0
        %1135 = vmatpush1.xpose.msra.mxu0 0.0
        %1136 = vmatprep.subr.mxu0 0.0
        %1137 = vmatpush1.xpose.msra.mxu0 0.0
        %1138 = vmatprep.subr.mxu0 0.0
        %1139 = vmatpush1.xpose.msra.mxu0 0.0
        %1140 = vmatprep.subr.mxu0 0.0
        %1141 = vmatpush1.xpose.msra.mxu0 0.0
        %1142 = vmatprep.subr.mxu0 0.0
        %1143 = vmatpush1.xpose.msra.mxu0 0.0
        %1144 = vmatprep.subr.mxu0 0.0
        %1145 = vmatpush1.xpose.msra.mxu0 0.0
        %1146 = vmatprep.subr.mxu0 0.0
        %1147 = vmatpush1.xpose.msra.mxu0 0.0
        %1148 = vmatprep.subr.mxu0 0.0
        %1149 = vmatpush1.xpose.msra.mxu0 0.0
        %1150 = vmatprep.subr.mxu0 0.0
        %1151 = vmatpush1.xpose.msra.mxu0 0.0
        %1152 = vmatprep.subr.mxu0 0.0
        %1153 = vmatpush1.xpose.msra.mxu0 0.0
        %1154 = vmatprep.subr.mxu0 0.0
        %1155 = vmatpush1.xpose.msra.mxu0 0.0
        %1156 = vmatprep.subr.mxu0 0.0
        %1157 = vmatpush1.xpose.msra.mxu0 0.0
        %1158 = vmatprep.subr.mxu0 0.0
        %1159 = vmatpush1.xpose.msra.mxu0 0.0
        %1160 = vmatprep.subr.mxu0 0.0
        %1161 = vmatpush1.xpose.msra.mxu0 0.0
        %1162 = vmatprep.subr.mxu0 0.0
        %1163 = vmatpush1.xpose.msra.mxu0 0.0
        %1164 = vmatprep.subr.mxu0 0.0
        %1165 = vmatpush1.xpose.msra.mxu0 0.0
        %1166 = vmatprep.subr.mxu0 0.0
        %1167 = vmatpush1.xpose.msra.mxu0 0.0
        %1168 = vmatprep.subr.mxu0 0.0
        %1169 = vmatpush1.xpose.msra.mxu0 0.0
        %1170 = vmatprep.subr.mxu0 0.0
        %1171 = vmatpush1.xpose.msra.mxu0 0.0
        %1172 = vmatprep.subr.mxu0 0.0
        %1173 = vmatpush1.xpose.msra.mxu0 0.0
        %1174 = vmatprep.subr.mxu0 0.0
        %1175 = vmatpush1.xpose.msra.mxu0 0.0
        %1176 = vmatprep.subr.mxu0 0.0
        %1177 = vmatpush1.xpose.msra.mxu0 0.0
        %1178 = vmatprep.subr.mxu0 0.0
        %1179 = vmatpush1.xpose.msra.mxu0 0.0
        %1180 = vmatprep.subr.mxu0 0.0
        %1181 = vmatpush1.xpose.msra.mxu0 0.0
        %1182 = vmatprep.subr.mxu0 0.0
        %1183 = vmatpush1.xpose.msra.mxu0 0.0
        %1184 = vmatprep.mubr.f32.mxu0 0.0
        %1185 = vmatmul.mubr.f32.gmra.mrb[0].mxu0 %v657
        %v1186 = vpop.f32.mrb[0].mxu0
        %v1187 = vadd.f32 0.0, %v1186
        %v1188 = vpop.f32.mrb[0].mxu0
        %1189 = vmatprep.mubr.f32.mxu0 0.0
        %1190 = vmatmul.mubr.f32.gmra.mrb[0].mxu0 %v663
        %v1191 = vpop.f32.mrb[0].mxu0
        %v1192 = vadd.f32 0.0, %v1191
        %v1193 = vpop.f32.mrb[0].mxu0
        %1194 = vdwg.mxu0
        %v1195 = vmul.f32 %v657, %v447
        %v1196 = vmul.f32 %v663, %v448
        %1197 = vadd.xlane.f32.xlu0 %v1195
        %v1198 = vpop.xlane.xlu0 %1197
        %1199 = vadd.xlane.f32.xlu0 %v1196
        %v1200 = vpop.xlane.xlu0 %1199
        %v1201 = vmul.f32 %v1187, 2.0
        %v1202 = vmul.f32 %v1192, 2.0
        %v1203 = vsub.f32 %v1201, %v1198
        %v1204 = vsub.f32 %v1202, %v1200
        %1205 = vxpose.xlu0.b32.start [1/16] %v1198, 128
        %1206 = vxpose.xlu0.b32.cont [2/16] %v1200, 128
        %1207 = vxpose.xlu0.b32.cont [3/16] 0.0, 128
        %1208 = vxpose.xlu0.b32.cont [4/16] 0.0, 128
        %1209 = vxpose.xlu0.b32.cont [5/16] 0.0, 128
        %1210 = vxpose.xlu0.b32.cont [6/16] 0.0, 128
        %1211 = vxpose.xlu0.b32.cont [7/16] 0.0, 128
        %1212 = vxpose.xlu0.b32.cont [8/16] 0.0, 128
        %1213 = vxpose.xlu0.b32.cont [9/16] 0.0, 128
        %1214 = vxpose.xlu0.b32.cont [10/16] 0.0, 128
        %1215 = vxpose.xlu0.b32.cont [11/16] 0.0, 128
        %1216 = vxpose.xlu0.b32.cont [12/16] 0.0, 128
        %1217 = vxpose.xlu0.b32.cont [13/16] 0.0, 128
        %1218 = vxpose.xlu0.b32.cont [14/16] 0.0, 128
        %1219 = vxpose.xlu0.b32.cont [15/16] 0.0, 128
        %1220 = vxpose.xlu0.b32.end [16/16] 0.0, 128
        %v1221 = vpop.trf.xlu0
        %v1222 = vpop.trf.xlu0
        %v1223 = vpop.trf.xlu0
        %v1224 = vpop.trf.xlu0
        %v1225 = vpop.trf.xlu0
        %v1226 = vpop.trf.xlu0
        %v1227 = vpop.trf.xlu0
        %v1228 = vpop.trf.xlu0
        %v1229 = vpop.trf.xlu0
        %v1230 = vpop.trf.xlu0
        %v1231 = vpop.trf.xlu0
        %v1232 = vpop.trf.xlu0
        %v1233 = vpop.trf.xlu0
        %v1234 = vpop.trf.xlu0
        %v1235 = vpop.trf.xlu0
        %v1236 = vpop.trf.xlu0
        %v1237 = vlaneseq
        %v1238 = vshrl.u32 %v1237, 7
        %v1239 = vsub.s32 0, %v1238
        %v1240 = vrot.slane %v1221, %v1239
        %v1241 = vsub.f32 %v1203, %v1240
        %v1242 = vsub.f32 %v1204, %v1240
        %v1243 = vsel %vm790, %v1241, -inf
        %1244 = vmax.xlane.f32.xlu0 %v1243
        %v1245 = vpop.xlane.xlu0 %1244
        %v1246 = vsel %vm790, %v1242, -inf
        %1247 = vmax.xlane.f32.xlu0 %v1246
        %v1248 = vpop.xlane.xlu0 %1247
        %v1249 = vsub.f32 %v1241, %v1245
        %v1250 = vsub.f32 %v1242, %v1248
        %v1251 = vmul.f32 %v1249, 1.442695
        %v1252 = vpow.pop %v1251
        %v1253 = vmul.f32 %v1250, 1.442695
        %v1254 = vpow.pop %v1253
        %v1255 = vsel %vm790, %v1252, 0.0
        %1256 = vadd.xlane.f32.xlu0 %v1255
        %v1257 = vpop.xlane.xlu0 %1256
        %v1258 = vsel %vm790, %v1254, 0.0
        %1259 = vadd.xlane.f32.xlu0 %v1258
        %v1260 = vpop.xlane.xlu0 %1259
        %v1261 = vrcp.pop %v1257
        %v1262 = vrcp.pop %v1260
        %v1263 = vmul.f32 %v1252, %v1261
        %v1264 = vmul.f32 %v1254, %v1262
        %v1266 = vsel %vm790, %v1263, 0
        %v1269 = vsel %vm790, %v1264, 0
        %1271 = vmatprep.subr.mxu0 0.0
        %1272 = vmatpush1.msra.mxu0 %v657
        %1273 = vmatprep.subr.mxu0 0.0
        %1274 = vmatpush1.msra.mxu0 %v663
        %1275 = vmatprep.subr.mxu0 0.0
        %1276 = vmatpush1.msra.mxu0 0.0
        %1277 = vmatprep.subr.mxu0 0.0
        %1278 = vmatpush1.msra.mxu0 0.0
        %1279 = vmatprep.subr.mxu0 0.0
        %1280 = vmatpush1.msra.mxu0 0.0
        %1281 = vmatprep.subr.mxu0 0.0
        %1282 = vmatpush1.msra.mxu0 0.0
        %1283 = vmatprep.subr.mxu0 0.0
        %1284 = vmatpush1.msra.mxu0 0.0
        %1285 = vmatprep.subr.mxu0 0.0
        %1286 = vmatpush1.msra.mxu0 0.0
        %1287 = vmatprep.subr.mxu0 0.0
        %1288 = vmatpush1.msra.mxu0 0.0
        %1289 = vmatprep.subr.mxu0 0.0
        %1290 = vmatpush1.msra.mxu0 0.0
        %1291 = vmatprep.subr.mxu0 0.0
        %1292 = vmatpush1.msra.mxu0 0.0
        %1293 = vmatprep.subr.mxu0 0.0
        %1294 = vmatpush1.msra.mxu0 0.0
        %1295 = vmatprep.subr.mxu0 0.0
        %1296 = vmatpush1.msra.mxu0 0.0
        %1297 = vmatprep.subr.mxu0 0.0
        %1298 = vmatpush1.msra.mxu0 0.0
        %1299 = vmatprep.subr.mxu0 0.0
        %1300 = vmatpush1.msra.mxu0 0.0
        %1301 = vmatprep.subr.mxu0 0.0
        %1302 = vmatpush1.msra.mxu0 0.0
        %1303 = vmatprep.subr.mxu0 0.0
        %1304 = vmatpush1.msra.mxu0 0.0
        %1305 = vmatprep.subr.mxu0 0.0
        %1306 = vmatpush1.msra.mxu0 0.0
        %1307 = vmatprep.subr.mxu0 0.0
        %1308 = vmatpush1.msra.mxu0 0.0
        %1309 = vmatprep.subr.mxu0 0.0
        %1310 = vmatpush1.msra.mxu0 0.0
        %1311 = vmatprep.subr.mxu0 0.0
        %1312 = vmatpush1.msra.mxu0 0.0
        %1313 = vmatprep.subr.mxu0 0.0
        %1314 = vmatpush1.msra.mxu0 0.0
        %1315 = vmatprep.subr.mxu0 0.0
        %1316 = vmatpush1.msra.mxu0 0.0
        %1317 = vmatprep.subr.mxu0 0.0
        %1318 = vmatpush1.msra.mxu0 0.0
        %1319 = vmatprep.subr.mxu0 0.0
        %1320 = vmatpush1.msra.mxu0 0.0
        %1321 = vmatprep.subr.mxu0 0.0
        %1322 = vmatpush1.msra.mxu0 0.0
        %1323 = vmatprep.subr.mxu0 0.0
        %1324 = vmatpush1.msra.mxu0 0.0
        %1325 = vmatprep.subr.mxu0 0.0
        %1326 = vmatpush1.msra.mxu0 0.0
        %1327 = vmatprep.subr.mxu0 0.0
        %1328 = vmatpush1.msra.mxu0 0.0
        %1329 = vmatprep.subr.mxu0 0.0
        %1330 = vmatpush1.msra.mxu0 0.0
        %1331 = vmatprep.subr.mxu0 0.0
        %1332 = vmatpush1.msra.mxu0 0.0
        %1333 = vmatprep.subr.mxu0 0.0
        %1334 = vmatpush1.msra.mxu0 0.0
        %1335 = vmatprep.mubr.f32.mxu0 0.0
        %1336 = vmatmul.mubr.f32.gmra.mrb[0].mxu0 %v1266
        %v1337 = vpop.f32.mrb[0].mxu0
        %v1338 = vadd.f32 0.0, %v1337
        %v1339 = vpop.f32.mrb[0].mxu0
        %1340 = vmatprep.mubr.f32.mxu0 0.0
        %1341 = vmatmul.mubr.f32.gmra.mrb[0].mxu0 %v1269
        %v1342 = vpop.f32.mrb[0].mxu0
        %v1343 = vadd.f32 0.0, %v1342
        %v1344 = vpop.f32.mrb[0].mxu0
        %1345 = vdwg.mxu0
        %1346 = vmatprep.subr.mxu0 0.0
        %1347 = vmatpush1.xpose.msra.mxu0 %v447
        %1348 = vmatprep.subr.mxu0 0.0
        %1349 = vmatpush1.xpose.msra.mxu0 %v448
        %1350 = vmatprep.subr.mxu0 0.0
        %1351 = vmatpush1.xpose.msra.mxu0 0.0
        %1352 = vmatprep.subr.mxu0 0.0
        %1353 = vmatpush1.xpose.msra.mxu0 0.0
        %1354 = vmatprep.subr.mxu0 0.0
        %1355 = vmatpush1.xpose.msra.mxu0 0.0
        %1356 = vmatprep.subr.mxu0 0.0
        %1357 = vmatpush1.xpose.msra.mxu0 0.0
        %1358 = vmatprep.subr.mxu0 0.0
        %1359 = vmatpush1.xpose.msra.mxu0 0.0
        %1360 = vmatprep.subr.mxu0 0.0
        %1361 = vmatpush1.xpose.msra.mxu0 0.0
        %1362 = vmatprep.subr.mxu0 0.0
        %1363 = vmatpush1.xpose.msra.mxu0 0.0
        %1364 = vmatprep.subr.mxu0 0.0
        %1365 = vmatpush1.xpose.msra.mxu0 0.0
        %1366 = vmatprep.subr.mxu0 0.0
        %1367 = vmatpush1.xpose.msra.mxu0 0.0
        %1368 = vmatprep.subr.mxu0 0.0
        %1369 = vmatpush1.xpose.msra.mxu0 0.0
        %1370 = vmatprep.subr.mxu0 0.0
        %1371 = vmatpush1.xpose.msra.mxu0 0.0
        %1372 = vmatprep.subr.mxu0 0.0
        %1373 = vmatpush1.xpose.msra.mxu0 0.0
        %1374 = vmatprep.subr.mxu0 0.0
        %1375 = vmatpush1.xpose.msra.mxu0 0.0
        %1376 = vmatprep.subr.mxu0 0.0
        %1377 = vmatpush1.xpose.msra.mxu0 0.0
        %1378 = vmatprep.subr.mxu0 0.0
        %1379 = vmatpush1.xpose.msra.mxu0 0.0
        %1380 = vmatprep.subr.mxu0 0.0
        %1381 = vmatpush1.xpose.msra.mxu0 0.0
        %1382 = vmatprep.subr.mxu0 0.0
        %1383 = vmatpush1.xpose.msra.mxu0 0.0
        %1384 = vmatprep.subr.mxu0 0.0
        %1385 = vmatpush1.xpose.msra.mxu0 0.0
        %1386 = vmatprep.subr.mxu0 0.0
        %1387 = vmatpush1.xpose.msra.mxu0 0.0
        %1388 = vmatprep.subr.mxu0 0.0
        %1389 = vmatpush1.xpose.msra.mxu0 0.0
        %1390 = vmatprep.subr.mxu0 0.0
        %1391 = vmatpush1.xpose.msra.mxu0 0.0
        %1392 = vmatprep.subr.mxu0 0.0
        %1393 = vmatpush1.xpose.msra.mxu0 0.0
        %1394 = vmatprep.subr.mxu0 0.0
        %1395 = vmatpush1.xpose.msra.mxu0 0.0
        %1396 = vmatprep.subr.mxu0 0.0
        %1397 = vmatpush1.xpose.msra.mxu0 0.0
        %1398 = vmatprep.subr.mxu0 0.0
        %1399 = vmatpush1.xpose.msra.mxu0 0.0
        %1400 = vmatprep.subr.mxu0 0.0
        %1401 = vmatpush1.xpose.msra.mxu0 0.0
        %1402 = vmatprep.subr.mxu0 0.0
        %1403 = vmatpush1.xpose.msra.mxu0 0.0
        %1404 = vmatprep.subr.mxu0 0.0
        %1405 = vmatpush1.xpose.msra.mxu0 0.0
        %1406 = vmatprep.subr.mxu0 0.0
        %1407 = vmatpush1.xpose.msra.mxu0 0.0
        %1408 = vmatprep.subr.mxu0 0.0
        %1409 = vmatpush1.xpose.msra.mxu0 0.0
        %1410 = vmatprep.mubr.f32.mxu0 0.0
        %1411 = vmatmul.mubr.f32.gmra.mrb[0].mxu0 %v659
        %v1412 = vpop.f32.mrb[0].mxu0
        %v1413 = vadd.f32 0.0, %v1412
        %v1414 = vpop.f32.mrb[0].mxu0
        %1415 = vmatprep.mubr.f32.mxu0 0.0
        %1416 = vmatmul.mubr.f32.gmra.mrb[0].mxu0 %v665
        %v1417 = vpop.f32.mrb[0].mxu0
        %v1418 = vadd.f32 0.0, %v1417
        %v1419 = vpop.f32.mrb[0].mxu0
        %1420 = vdwg.mxu0
        %v1421 = vmul.f32 %v659, %v447
        %v1422 = vmul.f32 %v665, %v448
        %1423 = vadd.xlane.f32.xlu0 %v1421
        %v1424 = vpop.xlane.xlu0 %1423
        %1425 = vadd.xlane.f32.xlu0 %v1422
        %v1426 = vpop.xlane.xlu0 %1425
        %v1427 = vmul.f32 %v1413, 2.0
        %v1428 = vmul.f32 %v1418, 2.0
        %v1429 = vsub.f32 %v1427, %v1424
        %v1430 = vsub.f32 %v1428, %v1426
        %1431 = vxpose.xlu0.b32.start [1/16] %v1424, 128
        %1432 = vxpose.xlu0.b32.cont [2/16] %v1426, 128
        %1433 = vxpose.xlu0.b32.cont [3/16] 0.0, 128
        %1434 = vxpose.xlu0.b32.cont [4/16] 0.0, 128
        %1435 = vxpose.xlu0.b32.cont [5/16] 0.0, 128
        %1436 = vxpose.xlu0.b32.cont [6/16] 0.0, 128
        %1437 = vxpose.xlu0.b32.cont [7/16] 0.0, 128
        %1438 = vxpose.xlu0.b32.cont [8/16] 0.0, 128
        %1439 = vxpose.xlu0.b32.cont [9/16] 0.0, 128
        %1440 = vxpose.xlu0.b32.cont [10/16] 0.0, 128
        %1441 = vxpose.xlu0.b32.cont [11/16] 0.0, 128
        %1442 = vxpose.xlu0.b32.cont [12/16] 0.0, 128
        %1443 = vxpose.xlu0.b32.cont [13/16] 0.0, 128
        %1444 = vxpose.xlu0.b32.cont [14/16] 0.0, 128
        %1445 = vxpose.xlu0.b32.cont [15/16] 0.0, 128
        %1446 = vxpose.xlu0.b32.end [16/16] 0.0, 128
        %v1447 = vpop.trf.xlu0
        %v1448 = vpop.trf.xlu0
        %v1449 = vpop.trf.xlu0
        %v1450 = vpop.trf.xlu0
        %v1451 = vpop.trf.xlu0
        %v1452 = vpop.trf.xlu0
        %v1453 = vpop.trf.xlu0
        %v1454 = vpop.trf.xlu0
        %v1455 = vpop.trf.xlu0
        %v1456 = vpop.trf.xlu0
        %v1457 = vpop.trf.xlu0
        %v1458 = vpop.trf.xlu0
        %v1459 = vpop.trf.xlu0
        %v1460 = vpop.trf.xlu0
        %v1461 = vpop.trf.xlu0
        %v1462 = vpop.trf.xlu0
        %v1463 = vlaneseq
        %v1464 = vshrl.u32 %v1463, 7
        %v1465 = vsub.s32 0, %v1464
        %v1466 = vrot.slane %v1447, %v1465
        %v1467 = vsub.f32 %v1429, %v1466
        %v1468 = vsub.f32 %v1430, %v1466
        %v1469 = vsel %vm790, %v1467, -inf
        %1470 = vmax.xlane.f32.xlu0 %v1469
        %v1471 = vpop.xlane.xlu0 %1470
        %v1472 = vsel %vm790, %v1468, -inf
        %1473 = vmax.xlane.f32.xlu0 %v1472
        %v1474 = vpop.xlane.xlu0 %1473
        %v1475 = vsub.f32 %v1467, %v1471
        %v1476 = vsub.f32 %v1468, %v1474
        %v1477 = vmul.f32 %v1475, 1.442695
        %v1478 = vpow.pop %v1477
        %v1479 = vmul.f32 %v1476, 1.442695
        %v1480 = vpow.pop %v1479
        %v1481 = vsel %vm790, %v1478, 0.0
        %1482 = vadd.xlane.f32.xlu0 %v1481
        %v1483 = vpop.xlane.xlu0 %1482
        %v1484 = vsel %vm790, %v1480, 0.0
        %1485 = vadd.xlane.f32.xlu0 %v1484
        %v1486 = vpop.xlane.xlu0 %1485
        %v1487 = vrcp.pop %v1483
        %v1488 = vrcp.pop %v1486
        %v1489 = vmul.f32 %v1478, %v1487
        %v1490 = vmul.f32 %v1480, %v1488
        %v1492 = vsel %vm790, %v1489, 0
        %v1495 = vsel %vm790, %v1490, 0
        %1497 = vmatprep.subr.mxu0 0.0
        %1498 = vmatpush1.msra.mxu0 %v659
        %1499 = vmatprep.subr.mxu0 0.0
        %1500 = vmatpush1.msra.mxu0 %v665
        %1501 = vmatprep.subr.mxu0 0.0
        %1502 = vmatpush1.msra.mxu0 0.0
        %1503 = vmatprep.subr.mxu0 0.0
        %1504 = vmatpush1.msra.mxu0 0.0
        %1505 = vmatprep.subr.mxu0 0.0
        %1506 = vmatpush1.msra.mxu0 0.0
        %1507 = vmatprep.subr.mxu0 0.0
        %1508 = vmatpush1.msra.mxu0 0.0
        %1509 = vmatprep.subr.mxu0 0.0
        %1510 = vmatpush1.msra.mxu0 0.0
        %1511 = vmatprep.subr.mxu0 0.0
        %1512 = vmatpush1.msra.mxu0 0.0
        %1513 = vmatprep.subr.mxu0 0.0
        %1514 = vmatpush1.msra.mxu0 0.0
        %1515 = vmatprep.subr.mxu0 0.0
        %1516 = vmatpush1.msra.mxu0 0.0
        %1517 = vmatprep.subr.mxu0 0.0
        %1518 = vmatpush1.msra.mxu0 0.0
        %1519 = vmatprep.subr.mxu0 0.0
        %1520 = vmatpush1.msra.mxu0 0.0
        %1521 = vmatprep.subr.mxu0 0.0
        %1522 = vmatpush1.msra.mxu0 0.0
        %1523 = vmatprep.subr.mxu0 0.0
        %1524 = vmatpush1.msra.mxu0 0.0
        %1525 = vmatprep.subr.mxu0 0.0
        %1526 = vmatpush1.msra.mxu0 0.0
        %1527 = vmatprep.subr.mxu0 0.0
        %1528 = vmatpush1.msra.mxu0 0.0
        %1529 = vmatprep.subr.mxu0 0.0
        %1530 = vmatpush1.msra.mxu0 0.0
        %1531 = vmatprep.subr.mxu0 0.0
        %1532 = vmatpush1.msra.mxu0 0.0
        %1533 = vmatprep.subr.mxu0 0.0
        %1534 = vmatpush1.msra.mxu0 0.0
        %1535 = vmatprep.subr.mxu0 0.0
        %1536 = vmatpush1.msra.mxu0 0.0
        %1537 = vmatprep.subr.mxu0 0.0
        %1538 = vmatpush1.msra.mxu0 0.0
        %1539 = vmatprep.subr.mxu0 0.0
        %1540 = vmatpush1.msra.mxu0 0.0
        %1541 = vmatprep.subr.mxu0 0.0
        %1542 = vmatpush1.msra.mxu0 0.0
        %1543 = vmatprep.subr.mxu0 0.0
        %1544 = vmatpush1.msra.mxu0 0.0
        %1545 = vmatprep.subr.mxu0 0.0
        %1546 = vmatpush1.msra.mxu0 0.0
        %1547 = vmatprep.subr.mxu0 0.0
        %1548 = vmatpush1.msra.mxu0 0.0
        %1549 = vmatprep.subr.mxu0 0.0
        %1550 = vmatpush1.msra.mxu0 0.0
        %1551 = vmatprep.subr.mxu0 0.0
        %1552 = vmatpush1.msra.mxu0 0.0
        %1553 = vmatprep.subr.mxu0 0.0
        %1554 = vmatpush1.msra.mxu0 0.0
        %1555 = vmatprep.subr.mxu0 0.0
        %1556 = vmatpush1.msra.mxu0 0.0
        %1557 = vmatprep.subr.mxu0 0.0
        %1558 = vmatpush1.msra.mxu0 0.0
        %1559 = vmatprep.subr.mxu0 0.0
        %1560 = vmatpush1.msra.mxu0 0.0
        %1561 = vmatprep.mubr.f32.mxu0 0.0
        %1562 = vmatmul.mubr.f32.gmra.mrb[0].mxu0 %v1492
        %v1563 = vpop.f32.mrb[0].mxu0
        %v1564 = vadd.f32 0.0, %v1563
        %v1565 = vpop.f32.mrb[0].mxu0
        %1566 = vmatprep.mubr.f32.mxu0 0.0
        %1567 = vmatmul.mubr.f32.gmra.mrb[0].mxu0 %v1495
        %v1568 = vpop.f32.mrb[0].mxu0
        %v1569 = vadd.f32 0.0, %v1568
        %v1570 = vpop.f32.mrb[0].mxu0
        %1571 = vdwg.mxu0
        %v1572 = vld [vmem:[#allocation4] sm:$0xff]
        %v1573 = vld [vmem:[#allocation4 + $0x8] sm:$0xff]
        %v1574 = vld [vmem:[#allocation4 + $0x10] sm:$0xff]
        %v1575 = vld [vmem:[#allocation4 + $0x18] sm:$0xff]
        %v1576 = vld [vmem:[#allocation4 + $0x20] sm:$0xff]
        %v1577 = vld [vmem:[#allocation4 + $0x28] sm:$0xff]
        %v1578 = vld [vmem:[#allocation4 + $0x30] sm:$0xff]
        %v1579 = vld [vmem:[#allocation4 + $0x38] sm:$0xff]
        %v1580 = vld [vmem:[#allocation4 + $0x40] sm:$0xff]
        %v1581 = vld [vmem:[#allocation4 + $0x48] sm:$0xff]
        %v1582 = vld [vmem:[#allocation4 + $0x50] sm:$0xff]
        %v1583 = vld [vmem:[#allocation4 + $0x58] sm:$0xff]
        %v1584 = vld [vmem:[#allocation4 + $0x60] sm:$0xff]
        %v1585 = vld [vmem:[#allocation4 + $0x68] sm:$0xff]
        %v1586 = vld [vmem:[#allocation4 + $0x70] sm:$0xff]
        %v1587 = vld [vmem:[#allocation4 + $0x78] sm:$0xff]
        %v1588 = vld [vmem:[#allocation4 + $0x80] sm:$0xff]
        %v1589 = vld [vmem:[#allocation4 + $0x88] sm:$0xff]
        %v1590 = vld [vmem:[#allocation4 + $0x90] sm:$0xff]
        %v1591 = vld [vmem:[#allocation4 + $0x98] sm:$0xff]
        %v1592 = vld [vmem:[#allocation4 + $0xa0] sm:$0xff]
        %v1593 = vld [vmem:[#allocation4 + $0xa8] sm:$0xff]
        %v1594 = vld [vmem:[#allocation4 + $0xb0] sm:$0xff]
        %v1595 = vld [vmem:[#allocation4 + $0xb8] sm:$0xff]
        %v1596 = vld [vmem:[#allocation4 + $0xc0] sm:$0xff]
        %v1597 = vld [vmem:[#allocation4 + $0xc8] sm:$0xff]
        %v1598 = vld [vmem:[#allocation4 + $0xd0] sm:$0xff]
        %v1599 = vld [vmem:[#allocation4 + $0xd8] sm:$0xff]
        %v1600 = vld [vmem:[#allocation4 + $0xe0] sm:$0xff]
        %v1601 = vld [vmem:[#allocation4 + $0xe8] sm:$0xff]
        %v1602 = vld [vmem:[#allocation4 + $0xf0] sm:$0xff]
        %v1603 = vld [vmem:[#allocation4 + $0xf8] sm:$0xff]
        %v1604 = vld [vmem:[#allocation4 + $0x100] sm:$0xff]
        %v1605 = vld [vmem:[#allocation4 + $0x108] sm:$0xff]
        %v1606 = vld [vmem:[#allocation4 + $0x110] sm:$0xff]
        %v1607 = vld [vmem:[#allocation4 + $0x118] sm:$0xff]
        %v1608 = vld [vmem:[#allocation4 + $0x120] sm:$0xff]
        %v1609 = vld [vmem:[#allocation4 + $0x128] sm:$0xff]
        %v1610 = vld [vmem:[#allocation4 + $0x130] sm:$0xff]
        %v1611 = vld [vmem:[#allocation4 + $0x138] sm:$0xff]
        %v1612 = vld [vmem:[#allocation4 + $0x140] sm:$0xff]
        %v1613 = vld [vmem:[#allocation4 + $0x148] sm:$0xff]
        %v1614 = vld [vmem:[#allocation4 + $0x150] sm:$0xff]
        %v1615 = vld [vmem:[#allocation4 + $0x158] sm:$0xff]
        %v1616 = vld [vmem:[#allocation4 + $0x160] sm:$0xff]
        %v1617 = vld [vmem:[#allocation4 + $0x168] sm:$0xff]
        %v1618 = vld [vmem:[#allocation4 + $0x170] sm:$0xff]
        %v1619 = vld [vmem:[#allocation4 + $0x178] sm:$0xff]
        %v1620 = vld [vmem:[#allocation4 + $0x180] sm:$0xff]
        %v1621 = vld [vmem:[#allocation4 + $0x188] sm:$0xff]
        %v1622 = vld [vmem:[#allocation4 + $0x190] sm:$0xff]
        %v1623 = vld [vmem:[#allocation4 + $0x198] sm:$0xff]
        %v1624 = vld [vmem:[#allocation4 + $0x1a0] sm:$0xff]
        %v1625 = vld [vmem:[#allocation4 + $0x1a8] sm:$0xff]
        %v1626 = vld [vmem:[#allocation4 + $0x1b0] sm:$0xff]
        %v1627 = vld [vmem:[#allocation4 + $0x1b8] sm:$0xff]
        %v1628 = vld [vmem:[#allocation4 + $0x1c0] sm:$0xff]
        %v1629 = vld [vmem:[#allocation4 + $0x1c8] sm:$0xff]
        %v1630 = vld [vmem:[#allocation4 + $0x1d0] sm:$0xff]
        %v1631 = vld [vmem:[#allocation4 + $0x1d8] sm:$0xff]
        %v1632 = vld [vmem:[#allocation4 + $0x1e0] sm:$0xff]
        %v1633 = vld [vmem:[#allocation4 + $0x1e8] sm:$0xff]
        %v1634 = vld [vmem:[#allocation4 + $0x1f0] sm:$0xff]
        %v1635 = vld [vmem:[#allocation4 + $0x1f8] sm:$0xff]
        %v1636 = vld [vmem:[%s3] sm:$0x1]
        %v1638 = vlaneseq
        %v1639 = vshrl.u32 %v1638, 7
        %v1640 = vsub.s32 0, %v1639
        %v1641 = vrot.slane %v1636, %v1640
        %1643 = vmatprep.subr.mxu0 0.0
        %1644 = vmatpush1.msra.mxu0 %v1572
        %1645 = vmatprep.subr.mxu0 0.0
        %1646 = vmatpush1.msra.mxu0 %v1573
        %1647 = vmatprep.subr.mxu0 0.0
        %1648 = vmatpush1.msra.mxu0 %v1574
        %1649 = vmatprep.subr.mxu0 0.0
        %1650 = vmatpush1.msra.mxu0 %v1575
        %1651 = vmatprep.subr.mxu0 0.0
        %1652 = vmatpush1.msra.mxu0 %v1576
        %1653 = vmatprep.subr.mxu0 0.0
        %1654 = vmatpush1.msra.mxu0 %v1577
        %1655 = vmatprep.subr.mxu0 0.0
        %1656 = vmatpush1.msra.mxu0 %v1578
        %1657 = vmatprep.subr.mxu0 0.0
        %1658 = vmatpush1.msra.mxu0 %v1579
        %1659 = vmatprep.subr.mxu0 0.0
        %1660 = vmatpush1.msra.mxu0 %v1580
        %1661 = vmatprep.subr.mxu0 0.0
        %1662 = vmatpush1.msra.mxu0 %v1581
        %1663 = vmatprep.subr.mxu0 0.0
        %1664 = vmatpush1.msra.mxu0 %v1582
        %1665 = vmatprep.subr.mxu0 0.0
        %1666 = vmatpush1.msra.mxu0 %v1583
        %1667 = vmatprep.subr.mxu0 0.0
        %1668 = vmatpush1.msra.mxu0 %v1584
        %1669 = vmatprep.subr.mxu0 0.0
        %1670 = vmatpush1.msra.mxu0 %v1585
        %1671 = vmatprep.subr.mxu0 0.0
        %1672 = vmatpush1.msra.mxu0 %v1586
        %1673 = vmatprep.subr.mxu0 0.0
        %1674 = vmatpush1.msra.mxu0 %v1587
        %1675 = vmatprep.subr.mxu0 0.0
        %1676 = vmatpush1.msra.mxu0 %v1588
        %1677 = vmatprep.subr.mxu0 0.0
        %1678 = vmatpush1.msra.mxu0 %v1589
        %1679 = vmatprep.subr.mxu0 0.0
        %1680 = vmatpush1.msra.mxu0 %v1590
        %1681 = vmatprep.subr.mxu0 0.0
        %1682 = vmatpush1.msra.mxu0 %v1591
        %1683 = vmatprep.subr.mxu0 0.0
        %1684 = vmatpush1.msra.mxu0 %v1592
        %1685 = vmatprep.subr.mxu0 0.0
        %1686 = vmatpush1.msra.mxu0 %v1593
        %1687 = vmatprep.subr.mxu0 0.0
        %1688 = vmatpush1.msra.mxu0 %v1594
        %1689 = vmatprep.subr.mxu0 0.0
        %1690 = vmatpush1.msra.mxu0 %v1595
        %1691 = vmatprep.subr.mxu0 0.0
        %1692 = vmatpush1.msra.mxu0 %v1596
        %1693 = vmatprep.subr.mxu0 0.0
        %1694 = vmatpush1.msra.mxu0 %v1597
        %1695 = vmatprep.subr.mxu0 0.0
        %1696 = vmatpush1.msra.mxu0 %v1598
        %1697 = vmatprep.subr.mxu0 0.0
        %1698 = vmatpush1.msra.mxu0 %v1599
        %1699 = vmatprep.subr.mxu0 0.0
        %1700 = vmatpush1.msra.mxu0 %v1600
        %1701 = vmatprep.subr.mxu0 0.0
        %1702 = vmatpush1.msra.mxu0 %v1601
        %1703 = vmatprep.subr.mxu0 0.0
        %1704 = vmatpush1.msra.mxu0 %v1602
        %1705 = vmatprep.subr.mxu0 0.0
        %1706 = vmatpush1.msra.mxu0 %v1603
        %1707 = vmatprep.mubr.f32.mxu0 %v1112
        %1708 = vmatmul.mubr.f32.gmra.mrb[0].mxu0 %v886
        %v1709 = vpop.f32.mrb[0].mxu0
        %v1710 = vadd.f32 %v1641, %v1709
        %v1711 = vpop.f32.mrb[0].mxu0
        %1712 = vmatprep.mubr.f32.mxu0 %v1117
        %1713 = vmatmul.mubr.f32.gmra.mrb[0].mxu0 %v891
        %v1714 = vpop.f32.mrb[0].mxu0
        %v1715 = vadd.f32 %v1641, %v1714
        %v1716 = vpop.f32.mrb[0].mxu0
        %1717 = vdwg.mxu0
        %1718 = vmatprep.subr.mxu0 0.0
        %1719 = vmatpush1.msra.mxu0 %v1604
        %1720 = vmatprep.subr.mxu0 0.0
        %1721 = vmatpush1.msra.mxu0 %v1605
        %1722 = vmatprep.subr.mxu0 0.0
        %1723 = vmatpush1.msra.mxu0 %v1606
        %1724 = vmatprep.subr.mxu0 0.0
        %1725 = vmatpush1.msra.mxu0 %v1607
        %1726 = vmatprep.subr.mxu0 0.0
        %1727 = vmatpush1.msra.mxu0 %v1608
        %1728 = vmatprep.subr.mxu0 0.0
        %1729 = vmatpush1.msra.mxu0 %v1609
        %1730 = vmatprep.subr.mxu0 0.0
        %1731 = vmatpush1.msra.mxu0 %v1610
        %1732 = vmatprep.subr.mxu0 0.0
        %1733 = vmatpush1.msra.mxu0 %v1611
        %1734 = vmatprep.subr.mxu0 0.0
        %1735 = vmatpush1.msra.mxu0 %v1612
        %1736 = vmatprep.subr.mxu0 0.0
        %1737 = vmatpush1.msra.mxu0 %v1613
        %1738 = vmatprep.subr.mxu0 0.0
        %1739 = vmatpush1.msra.mxu0 %v1614
        %1740 = vmatprep.subr.mxu0 0.0
        %1741 = vmatpush1.msra.mxu0 %v1615
        %1742 = vmatprep.subr.mxu0 0.0
        %1743 = vmatpush1.msra.mxu0 %v1616
        %1744 = vmatprep.subr.mxu0 0.0
        %1745 = vmatpush1.msra.mxu0 %v1617
        %1746 = vmatprep.subr.mxu0 0.0
        %1747 = vmatpush1.msra.mxu0 %v1618
        %1748 = vmatprep.subr.mxu0 0.0
        %1749 = vmatpush1.msra.mxu0 %v1619
        %1750 = vmatprep.subr.mxu0 0.0
        %1751 = vmatpush1.msra.mxu0 %v1620
        %1752 = vmatprep.subr.mxu0 0.0
        %1753 = vmatpush1.msra.mxu0 %v1621
        %1754 = vmatprep.subr.mxu0 0.0
        %1755 = vmatpush1.msra.mxu0 %v1622
        %1756 = vmatprep.subr.mxu0 0.0
        %1757 = vmatpush1.msra.mxu0 %v1623
        %1758 = vmatprep.subr.mxu0 0.0
        %1759 = vmatpush1.msra.mxu0 %v1624
        %1760 = vmatprep.subr.mxu0 0.0
        %1761 = vmatpush1.msra.mxu0 %v1625
        %1762 = vmatprep.subr.mxu0 0.0
        %1763 = vmatpush1.msra.mxu0 %v1626
        %1764 = vmatprep.subr.mxu0 0.0
        %1765 = vmatpush1.msra.mxu0 %v1627
        %1766 = vmatprep.subr.mxu0 0.0
        %1767 = vmatpush1.msra.mxu0 %v1628
        %1768 = vmatprep.subr.mxu0 0.0
        %1769 = vmatpush1.msra.mxu0 %v1629
        %1770 = vmatprep.subr.mxu0 0.0
        %1771 = vmatpush1.msra.mxu0 %v1630
        %1772 = vmatprep.subr.mxu0 0.0
        %1773 = vmatpush1.msra.mxu0 %v1631
        %1774 = vmatprep.subr.mxu0 0.0
        %1775 = vmatpush1.msra.mxu0 %v1632
        %1776 = vmatprep.subr.mxu0 0.0
        %1777 = vmatpush1.msra.mxu0 %v1633
        %1778 = vmatprep.subr.mxu0 0.0
        %1779 = vmatpush1.msra.mxu0 %v1634
        %1780 = vmatprep.subr.mxu0 0.0
        %1781 = vmatpush1.msra.mxu0 %v1635
        %1782 = vmatprep.mubr.f32.mxu0 %v1564
        %1783 = vmatmul.mubr.f32.gmra.mrb[0].mxu0 %v1338
        %v1784 = vpop.f32.mrb[0].mxu0
        %v1785 = vadd.f32 %v1710, %v1784
        %v1786 = vpop.f32.mrb[0].mxu0
        %1787 = vmatprep.mubr.f32.mxu0 %v1569
        %1788 = vmatmul.mubr.f32.gmra.mrb[0].mxu0 %v1343
        %v1789 = vpop.f32.mrb[0].mxu0
        %v1790 = vadd.f32 %v1715, %v1789
        %v1791 = vpop.f32.mrb[0].mxu0
        %1792 = vdwg.mxu0
        %v1793 = vadd.f32 %v447, %v1785
        %v1794 = vadd.f32 %v448, %v1790
        %v1795 = vld [vmem:[%s5] sm:$0x1]
        %v1797 = vlaneseq
        %v1798 = vshrl.u32 %v1797, 7
        %v1799 = vsub.s32 0, %v1798
        %v1800 = vrot.slane %v1795, %v1799
        %v1802 = vadd.f32 %v1793, %v1800
        %v1803 = vadd.f32 %v1794, %v1800
        %v1804 = vld [vmem:[%s4] sm:$0x1]
        %v1806 = vlaneseq
        %v1807 = vshrl.u32 %v1806, 7
        %v1808 = vsub.s32 0, %v1807
        %v1809 = vrot.slane %v1804, %v1808
        %v1811 = vmul.f32 %v1802, %v1809
        %v1812 = vmul.f32 %v1803, %v1809
        %v1813 = vld [vmem:[%s6] sm:$0xff]
        %v1814 = vld [vmem:[%s6 + $0x8] sm:$0xff]
        %v1815 = vld [vmem:[%s6 + $0x10] sm:$0xff]
        %v1816 = vld [vmem:[%s6 + $0x18] sm:$0xff]
        %v1817 = vld [vmem:[%s6 + $0x20] sm:$0xff]
        %v1818 = vld [vmem:[%s6 + $0x28] sm:$0xff]
        %v1819 = vld [vmem:[%s6 + $0x30] sm:$0xff]
        %v1820 = vld [vmem:[%s6 + $0x38] sm:$0xff]
        %v1821 = vld [vmem:[%s6 + $0x40] sm:$0xff]
        %v1822 = vld [vmem:[%s6 + $0x48] sm:$0xff]
        %v1823 = vld [vmem:[%s6 + $0x50] sm:$0xff]
        %v1824 = vld [vmem:[%s6 + $0x58] sm:$0xff]
        %v1825 = vld [vmem:[%s6 + $0x60] sm:$0xff]
        %v1826 = vld [vmem:[%s6 + $0x68] sm:$0xff]
        %v1827 = vld [vmem:[%s6 + $0x70] sm:$0xff]
        %v1828 = vld [vmem:[%s6 + $0x78] sm:$0xff]
        %v1829 = vld [vmem:[%s7] sm:$0x1]
        %v1831 = vlaneseq
        %v1832 = vshrl.u32 %v1831, 7
        %v1833 = vsub.s32 0, %v1832
        %v1834 = vrot.slane %v1829, %v1833
        %1836 = vmatprep.subr.mxu0 0.0
        %1837 = vmatpush1.msra.mxu0 %v1813
        %1838 = vmatprep.subr.mxu0 0.0
        %1839 = vmatpush1.msra.mxu0 %v1814
        %1840 = vmatprep.subr.mxu0 0.0
        %1841 = vmatpush1.msra.mxu0 %v1815
        %1842 = vmatprep.subr.mxu0 0.0
        %1843 = vmatpush1.msra.mxu0 %v1816
        %1844 = vmatprep.subr.mxu0 0.0
        %1845 = vmatpush1.msra.mxu0 %v1817
        %1846 = vmatprep.subr.mxu0 0.0
        %1847 = vmatpush1.msra.mxu0 %v1818
        %1848 = vmatprep.subr.mxu0 0.0
        %1849 = vmatpush1.msra.mxu0 %v1819
        %1850 = vmatprep.subr.mxu0 0.0
        %1851 = vmatpush1.msra.mxu0 %v1820
        %1852 = vmatprep.subr.mxu0 0.0
        %1853 = vmatpush1.msra.mxu0 %v1821
        %1854 = vmatprep.subr.mxu0 0.0
        %1855 = vmatpush1.msra.mxu0 %v1822
        %1856 = vmatprep.subr.mxu0 0.0
        %1857 = vmatpush1.msra.mxu0 %v1823
        %1858 = vmatprep.subr.mxu0 0.0
        %1859 = vmatpush1.msra.mxu0 %v1824
        %1860 = vmatprep.subr.mxu0 0.0
        %1861 = vmatpush1.msra.mxu0 %v1825
        %1862 = vmatprep.subr.mxu0 0.0
        %1863 = vmatpush1.msra.mxu0 %v1826
        %1864 = vmatprep.subr.mxu0 0.0
        %1865 = vmatpush1.msra.mxu0 %v1827
        %1866 = vmatprep.subr.mxu0 0.0
        %1867 = vmatpush1.msra.mxu0 %v1828
        %1868 = vmatprep.subr.mxu0 0.0
        %1869 = vmatpush1.msra.mxu0 0.0
        %1870 = vmatprep.subr.mxu0 0.0
        %1871 = vmatpush1.msra.mxu0 0.0
        %1872 = vmatprep.subr.mxu0 0.0
        %1873 = vmatpush1.msra.mxu0 0.0
        %1874 = vmatprep.subr.mxu0 0.0
        %1875 = vmatpush1.msra.mxu0 0.0
        %1876 = vmatprep.subr.mxu0 0.0
        %1877 = vmatpush1.msra.mxu0 0.0
        %1878 = vmatprep.subr.mxu0 0.0
        %1879 = vmatpush1.msra.mxu0 0.0
        %1880 = vmatprep.subr.mxu0 0.0
        %1881 = vmatpush1.msra.mxu0 0.0
        %1882 = vmatprep.subr.mxu0 0.0
        %1883 = vmatpush1.msra.mxu0 0.0
        %1884 = vmatprep.subr.mxu0 0.0
        %1885 = vmatpush1.msra.mxu0 0.0
        %1886 = vmatprep.subr.mxu0 0.0
        %1887 = vmatpush1.msra.mxu0 0.0
        %1888 = vmatprep.subr.mxu0 0.0
        %1889 = vmatpush1.msra.mxu0 0.0
        %1890 = vmatprep.subr.mxu0 0.0
        %1891 = vmatpush1.msra.mxu0 0.0
        %1892 = vmatprep.subr.mxu0 0.0
        %1893 = vmatpush1.msra.mxu0 0.0
        %1894 = vmatprep.subr.mxu0 0.0
        %1895 = vmatpush1.msra.mxu0 0.0
        %1896 = vmatprep.subr.mxu0 0.0
        %1897 = vmatpush1.msra.mxu0 0.0
        %1898 = vmatprep.subr.mxu0 0.0
        %1899 = vmatpush1.msra.mxu0 0.0
        %1900 = vmatprep.mubr.f32.mxu0 0.0
        %1901 = vmatmul.mubr.f32.gmra.mrb[0].mxu0 %v1811
        %v1902 = vpop.f32.mrb[0].mxu0
        %v1903 = vadd.f32 %v1834, %v1902
        %v1904 = vpop.f32.mrb[0].mxu0
        %1905 = vmatprep.mubr.f32.mxu0 0.0
        %1906 = vmatmul.mubr.f32.gmra.mrb[0].mxu0 %v1812
        %v1907 = vpop.f32.mrb[0].mxu0
        %v1908 = vadd.f32 %v1834, %v1907
        %v1909 = vpop.f32.mrb[0].mxu0
        %1910 = vdwg.mxu0
        %v1911 = vmax.f32 %v1903, 0.0
        %v1912 = vmax.f32 %v1908, 0.0
        %v1913 = vld [vmem:[%s8] sm:$0xff]
        %v1914 = vld [vmem:[%s8 + $0x8] sm:$0xff]
        %v1915 = vld [vmem:[%s8 + $0x10] sm:$0xff]
        %v1916 = vld [vmem:[%s8 + $0x18] sm:$0xff]
        %v1917 = vld [vmem:[%s8 + $0x20] sm:$0xff]
        %v1918 = vld [vmem:[%s8 + $0x28] sm:$0xff]
        %v1919 = vld [vmem:[%s8 + $0x30] sm:$0xff]
        %v1920 = vld [vmem:[%s8 + $0x38] sm:$0xff]
        %v1921 = vld [vmem:[%s8 + $0x40] sm:$0xff]
        %v1922 = vld [vmem:[%s8 + $0x48] sm:$0xff]
        %v1923 = vld [vmem:[%s8 + $0x50] sm:$0xff]
        %v1924 = vld [vmem:[%s8 + $0x58] sm:$0xff]
        %v1925 = vld [vmem:[%s8 + $0x60] sm:$0xff]
        %v1926 = vld [vmem:[%s8 + $0x68] sm:$0xff]
        %v1927 = vld [vmem:[%s8 + $0x70] sm:$0xff]
        %v1928 = vld [vmem:[%s8 + $0x78] sm:$0xff]
        %v1929 = vld [vmem:[%s9] sm:$0x1]
        %v1931 = vlaneseq
        %v1932 = vshrl.u32 %v1931, 7
        %v1933 = vsub.s32 0, %v1932
        %v1934 = vrot.slane %v1929, %v1933
        %1936 = vmatprep.subr.mxu0 0.0
        %1937 = vmatpush1.msra.mxu0 %v1913
        %1938 = vmatprep.subr.mxu0 0.0
        %1939 = vmatpush1.msra.mxu0 %v1914
        %1940 = vmatprep.subr.mxu0 0.0
        %1941 = vmatpush1.msra.mxu0 %v1915
        %1942 = vmatprep.subr.mxu0 0.0
        %1943 = vmatpush1.msra.mxu0 %v1916
        %1944 = vmatprep.subr.mxu0 0.0
        %1945 = vmatpush1.msra.mxu0 %v1917
        %1946 = vmatprep.subr.mxu0 0.0
        %1947 = vmatpush1.msra.mxu0 %v1918
        %1948 = vmatprep.subr.mxu0 0.0
        %1949 = vmatpush1.msra.mxu0 %v1919
        %1950 = vmatprep.subr.mxu0 0.0
        %1951 = vmatpush1.msra.mxu0 %v1920
        %1952 = vmatprep.subr.mxu0 0.0
        %1953 = vmatpush1.msra.mxu0 %v1921
        %1954 = vmatprep.subr.mxu0 0.0
        %1955 = vmatpush1.msra.mxu0 %v1922
        %1956 = vmatprep.subr.mxu0 0.0
        %1957 = vmatpush1.msra.mxu0 %v1923
        %1958 = vmatprep.subr.mxu0 0.0
        %1959 = vmatpush1.msra.mxu0 %v1924
        %1960 = vmatprep.subr.mxu0 0.0
        %1961 = vmatpush1.msra.mxu0 %v1925
        %1962 = vmatprep.subr.mxu0 0.0
        %1963 = vmatpush1.msra.mxu0 %v1926
        %1964 = vmatprep.subr.mxu0 0.0
        %1965 = vmatpush1.msra.mxu0 %v1927
        %1966 = vmatprep.subr.mxu0 0.0
        %1967 = vmatpush1.msra.mxu0 %v1928
        %1968 = vmatprep.subr.mxu0 0.0
        %1969 = vmatpush1.msra.mxu0 0.0
        %1970 = vmatprep.subr.mxu0 0.0
        %1971 = vmatpush1.msra.mxu0 0.0
        %1972 = vmatprep.subr.mxu0 0.0
        %1973 = vmatpush1.msra.mxu0 0.0
        %1974 = vmatprep.subr.mxu0 0.0
        %1975 = vmatpush1.msra.mxu0 0.0
        %1976 = vmatprep.subr.mxu0 0.0
        %1977 = vmatpush1.msra.mxu0 0.0
        %1978 = vmatprep.subr.mxu0 0.0
        %1979 = vmatpush1.msra.mxu0 0.0
        %1980 = vmatprep.subr.mxu0 0.0
        %1981 = vmatpush1.msra.mxu0 0.0
        %1982 = vmatprep.subr.mxu0 0.0
        %1983 = vmatpush1.msra.mxu0 0.0
        %1984 = vmatprep.subr.mxu0 0.0
        %1985 = vmatpush1.msra.mxu0 0.0
        %1986 = vmatprep.subr.mxu0 0.0
        %1987 = vmatpush1.msra.mxu0 0.0
        %1988 = vmatprep.subr.mxu0 0.0
        %1989 = vmatpush1.msra.mxu0 0.0
        %1990 = vmatprep.subr.mxu0 0.0
        %1991 = vmatpush1.msra.mxu0 0.0
        %1992 = vmatprep.subr.mxu0 0.0
        %1993 = vmatpush1.msra.mxu0 0.0
        %1994 = vmatprep.subr.mxu0 0.0
        %1995 = vmatpush1.msra.mxu0 0.0
        %1996 = vmatprep.subr.mxu0 0.0
        %1997 = vmatpush1.msra.mxu0 0.0
        %1998 = vmatprep.subr.mxu0 0.0
        %1999 = vmatpush1.msra.mxu0 0.0
        %2000 = vmatprep.mubr.f32.mxu0 0.0
        %2001 = vmatmul.mubr.f32.gmra.mrb[0].mxu0 %v1911
        %v2002 = vpop.f32.mrb[0].mxu0
        %v2003 = vadd.f32 %v1934, %v2002
        %v2004 = vpop.f32.mrb[0].mxu0
        %2005 = vmatprep.mubr.f32.mxu0 0.0
        %2006 = vmatmul.mubr.f32.gmra.mrb[0].mxu0 %v1912
        %v2007 = vpop.f32.mrb[0].mxu0
        %v2008 = vadd.f32 %v1934, %v2007
        %v2009 = vpop.f32.mrb[0].mxu0
        %2010 = vdwg.mxu0
        %v2011 = vadd.f32 %v1811, %v2003
        %v2012 = vadd.f32 %v1812, %v2008
        %v2013 = vld [vmem:[%s11] sm:$0x1]
        %v2015 = vlaneseq
        %v2016 = vshrl.u32 %v2015, 7
        %v2017 = vsub.s32 0, %v2016
        %v2018 = vrot.slane %v2013, %v2017
        %v2020 = vadd.f32 %v2011, %v2018
        %v2021 = vadd.f32 %v2012, %v2018
        %v2022 = vld [vmem:[%s10] sm:$0x1]
        %v2024 = vlaneseq
        %v2025 = vshrl.u32 %v2024, 7
        %v2026 = vsub.s32 0, %v2025
        %v2027 = vrot.slane %v2022, %v2026
        %v2029 = vmul.f32 %v2020, %v2027
        %v2030 = vmul.f32 %v2021, %v2027
        %2031 = vst [vmem:[%s445] sm:$0xff] %v2029
        %2032 = vst [vmem:[%s445 + $0x8] sm:$0xff] %v2030
        %s2033 = smul.u32 2, %s25
        %p2034 = scmp.lt.s32.totalorder %s2033, 7
        %s2035 = scalar_select %p2034, %s2033, 7
        %s2036 = smul.addr %s2035, 8
        %s2037 = scalar_lea.vmem %s12, %s2036
        // Predicated region
        $region77: #{diffeq_transformer_forward.5} parent=67 // pred_check
          %p2038 = pneg %p300
        $region78: #{diffeq_transformer_forward.5} parent=67 // pred_check_branch
          %2040 = sbr.rel (%p2038) target = $region80
        $region79: #{diffeq_transformer_forward.5} parent=67 // pred_region
          %s2041 = smul.u32 2, %s25
        $region80: #{diffeq_transformer_forward.5} parent=67 // pred_fallthru
          _
      $region68: #{diffeq_transformer_forward.5} parent=5 // pred_fallthru
        _
      %p2042 = scmp.le.s32.totalorder 2, %s20
      // Predicated region
      $region81: #{diffeq_transformer_forward.5} parent=5 // pred_check
        %p2043 = pneg %p2042
      $region82: #{diffeq_transformer_forward.5} parent=5 // pred_check_branch
        %2045 = sbr.rel (%p2043) target = $region84
      $region83: #{diffeq_transformer_forward.5} parent=5 // pred_region
        %s2046 = ssub.s32 %s20, 2
        // Predicated region
        $region85: #{diffeq_transformer_forward.5} parent=83 // pred_check
          %p2047 = pneg %p306
        $region86: #{diffeq_transformer_forward.5} parent=83 // pred_check_branch
          %2049 = sbr.rel (%p2047) target = $region88
        $region87: #{diffeq_transformer_forward.5} parent=83 // pred_region
          %s2050 = smul.u32 2, %s26
          %p2051 = scmp.lt.s32.totalorder %s2050, 7
          %s2052 = scalar_select %p2051, %s2050, 7
          %s2053 = smul.addr %s2052, 8
          %s2054 = scalar_lea.vmem %s12, %s2053
        $region88: #{diffeq_transformer_forward.5} parent=83 // pred_fallthru
          _
      $region84: #{diffeq_transformer_forward.5} parent=5 // pred_fallthru
        _
    $region6: #{diffeq_transformer_forward.5} parent=1 // loop_footer
      %s24 = sadd.s32 1, %s20
    $region7: #{diffeq_transformer_forward.5} parent=1 // loop_footer_branch
      %19 = sbr.rel target = $region3
    $region8: #{diffeq_transformer_forward.5} parent=1 // loop_exit
      _
    %2055 = vsyncpa [#allocation3], 1
    %s2056 = scalar_lea.sflag [#allocation3], 1
    %2057 = vsyncpa %s2056, 1
    %2058 = vsyncpa [#allocation5], 1

// kernel: diffeq_transformer_forward.6
$region0: #{diffeq_transformer_forward.6}
  #allocation0 [shape = 'u32[]', space=smem, size = 0x4, offset = 0x4, fixed_abs, tag = 'smem constant byte address 0x4 - core index']
  #allocation1 [shape = 'u32[144,128]{1,0:T(1,128)}', space=vmem, size = 0x12000, scoped, tag = 'internal scratch']
  %s0 = inlined_call_operand.vmem [shape: f32[64,128], index: 0, kind: input, shape index: {}]
  %s1 = inlined_call_operand.vmem [shape: f32[128,512], index: 1, kind: input, shape index: {}]
  %s2 = inlined_call_operand.vmem [shape: f32[512,128], index: 2, kind: input, shape index: {}]
  %s3 = inlined_call_operand.vmem [shape: f32[1,128], index: 3, kind: input, shape index: {}]
  %s4 = inlined_call_operand.vmem [shape: f32[1,128], index: 4, kind: input, shape index: {}]
  %s5 = inlined_call_operand.vmem [shape: f32[1,128], index: 5, kind: input, shape index: {}]
  %s6 = inlined_call_operand.vmem [shape: f32[128,128], index: 6, kind: input, shape index: {}]
  %s7 = inlined_call_operand.vmem [shape: f32[1,128], index: 7, kind: input, shape index: {}]
  %s8 = inlined_call_operand.vmem [shape: f32[128,128], index: 8, kind: input, shape index: {}]
  %s9 = inlined_call_operand.vmem [shape: f32[1,128], index: 9, kind: input, shape index: {}]
  %s10 = inlined_call_operand.vmem [shape: f32[1,128], index: 10, kind: input, shape index: {}]
  %s11 = inlined_call_operand.vmem [shape: f32[1,128], index: 11, kind: input, shape index: {}]
  %s12 = inlined_call_operand.vmem [shape: f32[64,128], index: 12, kind: output, shape index: {}]
  %s13 = sld [smem:[#allocation0]]
  $region81: #{diffeq_transformer_forward.6} parent=0
    _
  %s15 = ssub.s32 1, %s13
  %s16 = scalar_select 0, %s15, %s13
  loop: start=0, step=1, limit=6
  $region2: #{diffeq_transformer_forward.6} parent=0 // loop_pre_header
    _
  $region3: #{diffeq_transformer_forward.6} parent=0 // loop_header
    %s18 = sphi 0, %s22
    %p19 = scmp.ge.s32.totalorder %s18, 6
    %s28 = sphi 0, %s30
    %s31 = sphi 0, %s28
    %s32 = sphi 0, %s31
    %s48 = sphi 0, %s32
    %s52 = sphi 0, %s52
    %s54 = sphi 0, %s52
    %s55 = sphi 0, %s54
    %s69 = sphi 0, %s55
    %s73 = sphi 0, %s73
    %s75 = sphi 0, %s73
    %s76 = sphi 0, %s75
    %s90 = sphi 0, %s76
    %s94 = sphi 0, %s94
    %s96 = sphi 0, %s94
    %s97 = sphi 0, %s96
    %s111 = sphi 0, %s97
    %s115 = sphi 0, %s115
    %s117 = sphi 0, %s115
    %s118 = sphi 0, %s117
    %s132 = sphi 0, %s118
    %s136 = sphi 0, %s136
    %s138 = sphi 0, %s136
    %s139 = sphi 0, %s138
    %s153 = sphi 0, %s139
    %s157 = sphi 0, %s157
    %s159 = sphi 0, %s157
    %s160 = sphi 0, %s159
    %s174 = sphi 0, %s160
    %s178 = sphi 0, %s178
    %s180 = sphi 0, %s178
    %s181 = sphi 0, %s180
    %s195 = sphi 0, %s181
    %s199 = sphi 0, %s199
    %s201 = sphi 0, %s199
    %s202 = sphi 0, %s201
    %s216 = sphi 0, %s202
    %s220 = sphi 0, %s220
    %s222 = sphi 0, %s220
    %s223 = sphi 0, %s222
    %s237 = sphi 0, %s223
    %s241 = sphi 0, %s241
    %s243 = sphi 0, %s241
    %s244 = sphi 0, %s243
    %s258 = sphi 0, %s244
    %s262 = sphi 0, %s262
    %s264 = sphi 0, %s262
    %s265 = sphi 0, %s264
    %s279 = sphi 0, %s265
    %s285 = sphi 0, %s287
    %s288 = sphi 0, %s285
    %s289 = sphi 0, %s288
    %s305 = sphi 0, %s289
  $region4: #{diffeq_transformer_forward.6} parent=0 // loop_header_branch
    %21 = sbr.rel (%p19) target = $region8
  $region5: #{diffeq_transformer_forward.6} parent=0 // loop_body
    %s23 = ssub.s32 %s18, 1
    %s24 = ssub.s32 %s18, 2
    %s25 = sadd.s32 %s18, 1
    %s26 = ssub.s32 %s18, %s25
    %p27 = scmp.eq.s32.totalorder %s26, 0
    %s29 = sadd.s32 %s28, 1
    %s30 = scalar_select %p27, %s28, %s29
    %p33 = pneg %p27
    %p34 = scmp.eq.s32.totalorder %s18, 3
    %p35 = por %p33, %p34
    %p36 = scmp.ne.s32.totalorder %s28, %s31
    %p37 = scmp.eq.s32.totalorder %s18, 0
    %p38 = por %p36, %p37
    %p39 = scmp.ne.s32.totalorder %s28, %s31
    %p40 = scmp.eq.s32.totalorder %s23, 3
    %p41 = por %p39, %p40
    %p42 = scmp.ne.s32.totalorder %s31, %s32
    %p43 = scmp.eq.s32.totalorder %s23, 0
    %p44 = por %p42, %p43
    %p45 = scmp.ne.s32.totalorder %s31, %s32
    %p46 = scmp.eq.s32.totalorder %s24, 3
    %p47 = por %p45, %p46
    %p49 = scmp.ne.s32.totalorder %s32, %s48
    %p50 = scmp.eq.s32.totalorder %s24, 0
    %p51 = por %p49, %p50
    %s53 = sadd.s32 %s52, 1
    %p56 = scmp.eq.s32.totalorder %s18, 3
    %p57 = scmp.ne.s32.totalorder %s52, %s54
    %p58 = scmp.eq.s32.totalorder %s18, 0
    %p59 = por %p57, %p58
    %p60 = scmp.ne.s32.totalorder %s52, %s54
    %p61 = scmp.eq.s32.totalorder %s23, 3
    %p62 = por %p60, %p61
    %p63 = scmp.ne.s32.totalorder %s54, %s55
    %p64 = scmp.eq.s32.totalorder %s23, 0
    %p65 = por %p63, %p64
    %p66 = scmp.ne.s32.totalorder %s54, %s55
    %p67 = scmp.eq.s32.totalorder %s24, 3
    %p68 = por %p66, %p67
    %p70 = scmp.ne.s32.totalorder %s55, %s69
    %p71 = scmp.eq.s32.totalorder %s24, 0
    %p72 = por %p70, %p71
    %s74 = sadd.s32 %s73, 1
    %p77 = scmp.eq.s32.totalorder %s18, 3
    %p78 = scmp.ne.s32.totalorder %s73, %s75
    %p79 = scmp.eq.s32.totalorder %s18, 0
    %p80 = por %p78, %p79
    %p81 = scmp.ne.s32.totalorder %s73, %s75
    %p82 = scmp.eq.s32.totalorder %s23, 3
    %p83 = por %p81, %p82
    %p84 = scmp.ne.s32.totalorder %s75, %s76
    %p85 = scmp.eq.s32.totalorder %s23, 0
    %p86 = por %p84, %p85
    %p87 = scmp.ne.s32.totalorder %s75, %s76
    %p88 = scmp.eq.s32.totalorder %s24, 3
    %p89 = por %p87, %p88
    %p91 = scmp.ne.s32.totalorder %s76, %s90
    %p92 = scmp.eq.s32.totalorder %s24, 0
    %p93 = por %p91, %p92
    %s95 = sadd.s32 %s94, 1
    %p98 = scmp.eq.s32.totalorder %s18, 3
    %p99 = scmp.ne.s32.totalorder %s94, %s96
    %p100 = scmp.eq.s32.totalorder %s18, 0
    %p101 = por %p99, %p100
    %p102 = scmp.ne.s32.totalorder %s94, %s96
    %p103 = scmp.eq.s32.totalorder %s23, 3
    %p104 = por %p102, %p103
    %p105 = scmp.ne.s32.totalorder %s96, %s97
    %p106 = scmp.eq.s32.totalorder %s23, 0
    %p107 = por %p105, %p106
    %p108 = scmp.ne.s32.totalorder %s96, %s97
    %p109 = scmp.eq.s32.totalorder %s24, 3
    %p110 = por %p108, %p109
    %p112 = scmp.ne.s32.totalorder %s97, %s111
    %p113 = scmp.eq.s32.totalorder %s24, 0
    %p114 = por %p112, %p113
    %s116 = sadd.s32 %s115, 1
    %p119 = scmp.eq.s32.totalorder %s18, 3
    %p120 = scmp.ne.s32.totalorder %s115, %s117
    %p121 = scmp.eq.s32.totalorder %s18, 0
    %p122 = por %p120, %p121
    %p123 = scmp.ne.s32.totalorder %s115, %s117
    %p124 = scmp.eq.s32.totalorder %s23, 3
    %p125 = por %p123, %p124
    %p126 = scmp.ne.s32.totalorder %s117, %s118
    %p127 = scmp.eq.s32.totalorder %s23, 0
    %p128 = por %p126, %p127
    %p129 = scmp.ne.s32.totalorder %s117, %s118
    %p130 = scmp.eq.s32.totalorder %s24, 3
    %p131 = por %p129, %p130
    %p133 = scmp.ne.s32.totalorder %s118, %s132
    %p134 = scmp.eq.s32.totalorder %s24, 0
    %p135 = por %p133, %p134
    %s137 = sadd.s32 %s136, 1
    %p140 = scmp.eq.s32.totalorder %s18, 3
    %p141 = scmp.ne.s32.totalorder %s136, %s138
    %p142 = scmp.eq.s32.totalorder %s18, 0
    %p143 = por %p141, %p142
    %p144 = scmp.ne.s32.totalorder %s136, %s138
    %p145 = scmp.eq.s32.totalorder %s23, 3
    %p146 = por %p144, %p145
    %p147 = scmp.ne.s32.totalorder %s138, %s139
    %p148 = scmp.eq.s32.totalorder %s23, 0
    %p149 = por %p147, %p148
    %p150 = scmp.ne.s32.totalorder %s138, %s139
    %p151 = scmp.eq.s32.totalorder %s24, 3
    %p152 = por %p150, %p151
    %p154 = scmp.ne.s32.totalorder %s139, %s153
    %p155 = scmp.eq.s32.totalorder %s24, 0
    %p156 = por %p154, %p155
    %s158 = sadd.s32 %s157, 1
    %p161 = scmp.eq.s32.totalorder %s18, 3
    %p162 = scmp.ne.s32.totalorder %s157, %s159
    %p163 = scmp.eq.s32.totalorder %s18, 0
    %p164 = por %p162, %p163
    %p165 = scmp.ne.s32.totalorder %s157, %s159
    %p166 = scmp.eq.s32.totalorder %s23, 3
    %p167 = por %p165, %p166
    %p168 = scmp.ne.s32.totalorder %s159, %s160
    %p169 = scmp.eq.s32.totalorder %s23, 0
    %p170 = por %p168, %p169
    %p171 = scmp.ne.s32.totalorder %s159, %s160
    %p172 = scmp.eq.s32.totalorder %s24, 3
    %p173 = por %p171, %p172
    %p175 = scmp.ne.s32.totalorder %s160, %s174
    %p176 = scmp.eq.s32.totalorder %s24, 0
    %p177 = por %p175, %p176
    %s179 = sadd.s32 %s178, 1
    %p182 = scmp.eq.s32.totalorder %s18, 3
    %p183 = scmp.ne.s32.totalorder %s178, %s180
    %p184 = scmp.eq.s32.totalorder %s18, 0
    %p185 = por %p183, %p184
    %p186 = scmp.ne.s32.totalorder %s178, %s180
    %p187 = scmp.eq.s32.totalorder %s23, 3
    %p188 = por %p186, %p187
    %p189 = scmp.ne.s32.totalorder %s180, %s181
    %p190 = scmp.eq.s32.totalorder %s23, 0
    %p191 = por %p189, %p190
    %p192 = scmp.ne.s32.totalorder %s180, %s181
    %p193 = scmp.eq.s32.totalorder %s24, 3
    %p194 = por %p192, %p193
    %p196 = scmp.ne.s32.totalorder %s181, %s195
    %p197 = scmp.eq.s32.totalorder %s24, 0
    %p198 = por %p196, %p197
    %s200 = sadd.s32 %s199, 1
    %p203 = scmp.eq.s32.totalorder %s18, 3
    %p204 = scmp.ne.s32.totalorder %s199, %s201
    %p205 = scmp.eq.s32.totalorder %s18, 0
    %p206 = por %p204, %p205
    %p207 = scmp.ne.s32.totalorder %s199, %s201
    %p208 = scmp.eq.s32.totalorder %s23, 3
    %p209 = por %p207, %p208
    %p210 = scmp.ne.s32.totalorder %s201, %s202
    %p211 = scmp.eq.s32.totalorder %s23, 0
    %p212 = por %p210, %p211
    %p213 = scmp.ne.s32.totalorder %s201, %s202
    %p214 = scmp.eq.s32.totalorder %s24, 3
    %p215 = por %p213, %p214
    %p217 = scmp.ne.s32.totalorder %s202, %s216
    %p218 = scmp.eq.s32.totalorder %s24, 0
    %p219 = por %p217, %p218
    %s221 = sadd.s32 %s220, 1
    %p224 = scmp.eq.s32.totalorder %s18, 3
    %p225 = scmp.ne.s32.totalorder %s220, %s222
    %p226 = scmp.eq.s32.totalorder %s18, 0
    %p227 = por %p225, %p226
    %p228 = scmp.ne.s32.totalorder %s220, %s222
    %p229 = scmp.eq.s32.totalorder %s23, 3
    %p230 = por %p228, %p229
    %p231 = scmp.ne.s32.totalorder %s222, %s223
    %p232 = scmp.eq.s32.totalorder %s23, 0
    %p233 = por %p231, %p232
    %p234 = scmp.ne.s32.totalorder %s222, %s223
    %p235 = scmp.eq.s32.totalorder %s24, 3
    %p236 = por %p234, %p235
    %p238 = scmp.ne.s32.totalorder %s223, %s237
    %p239 = scmp.eq.s32.totalorder %s24, 0
    %p240 = por %p238, %p239
    %s242 = sadd.s32 %s241, 1
    %p245 = scmp.eq.s32.totalorder %s18, 3
    %p246 = scmp.ne.s32.totalorder %s241, %s243
    %p247 = scmp.eq.s32.totalorder %s18, 0
    %p248 = por %p246, %p247
    %p249 = scmp.ne.s32.totalorder %s241, %s243
    %p250 = scmp.eq.s32.totalorder %s23, 3
    %p251 = por %p249, %p250
    %p252 = scmp.ne.s32.totalorder %s243, %s244
    %p253 = scmp.eq.s32.totalorder %s23, 0
    %p254 = por %p252, %p253
    %p255 = scmp.ne.s32.totalorder %s243, %s244
    %p256 = scmp.eq.s32.totalorder %s24, 3
    %p257 = por %p255, %p256
    %p259 = scmp.ne.s32.totalorder %s244, %s258
    %p260 = scmp.eq.s32.totalorder %s24, 0
    %p261 = por %p259, %p260
    %s263 = sadd.s32 %s262, 1
    %p266 = scmp.eq.s32.totalorder %s18, 3
    %p267 = scmp.ne.s32.totalorder %s262, %s264
    %p268 = scmp.eq.s32.totalorder %s18, 0
    %p269 = por %p267, %p268
    %p270 = scmp.ne.s32.totalorder %s262, %s264
    %p271 = scmp.eq.s32.totalorder %s23, 3
    %p272 = por %p270, %p271
    %p273 = scmp.ne.s32.totalorder %s264, %s265
    %p274 = scmp.eq.s32.totalorder %s23, 0
    %p275 = por %p273, %p274
    %p276 = scmp.ne.s32.totalorder %s264, %s265
    %p277 = scmp.eq.s32.totalorder %s24, 3
    %p278 = por %p276, %p277
    %p280 = scmp.ne.s32.totalorder %s265, %s279
    %p281 = scmp.eq.s32.totalorder %s24, 0
    %p282 = por %p280, %p281
    %s283 = ssub.s32 %s18, %s25
    %p284 = scmp.eq.s32.totalorder %s283, 0
    %s286 = sadd.s32 %s285, 1
    %s287 = scalar_select %p284, %s285, %s286
    %p290 = pneg %p284
    %p291 = scmp.eq.s32.totalorder %s18, 3
    %p292 = por %p290, %p291
    %p293 = scmp.ne.s32.totalorder %s285, %s288
    %p294 = scmp.eq.s32.totalorder %s18, 0
    %p295 = por %p293, %p294
    %p296 = scmp.ne.s32.totalorder %s285, %s288
    %p297 = scmp.eq.s32.totalorder %s23, 3
    %p298 = por %p296, %p297
    %p299 = scmp.ne.s32.totalorder %s288, %s289
    %p300 = scmp.eq.s32.totalorder %s23, 0
    %p301 = por %p299, %p300
    %p302 = scmp.ne.s32.totalorder %s288, %s289
    %p303 = scmp.eq.s32.totalorder %s24, 3
    %p304 = por %p302, %p303
    %p306 = scmp.ne.s32.totalorder %s289, %s305
    %p307 = scmp.eq.s32.totalorder %s24, 0
    %p308 = por %p306, %p307
    %p309 = scmp.le.s32.totalorder 1, %s18
    %p310 = scmp.lt.s32.totalorder %s18, 5
    %p311 = pnand %p309, %p310
    %p312 = pneg %p311
    // Predicated region
    $region9: #{diffeq_transformer_forward.6} parent=5 // pred_check
      _
    $region10: #{diffeq_transformer_forward.6} parent=5 // pred_check_branch
      %314 = sbr.rel (%p311) target = $region12
    $region11: #{diffeq_transformer_forward.6} parent=5 // pred_region
      %s315 = ssub.s32 %s18, 1
      // Predicated region
      $region13: #{diffeq_transformer_forward.6} parent=11 // pred_check
        %p316 = pneg %p65
      $region14: #{diffeq_transformer_forward.6} parent=11 // pred_check_branch
        %318 = sbr.rel (%p316) target = $region16
      $region15: #{diffeq_transformer_forward.6} parent=11 // pred_region
        _
      $region16: #{diffeq_transformer_forward.6} parent=11 // pred_fallthru
        _
      // Predicated region
      $region17: #{diffeq_transformer_forward.6} parent=11 // pred_check
        %p319 = pneg %p86
      $region18: #{diffeq_transformer_forward.6} parent=11 // pred_check_branch
        %321 = sbr.rel (%p319) target = $region20
      $region19: #{diffeq_transformer_forward.6} parent=11 // pred_region
        _
      $region20: #{diffeq_transformer_forward.6} parent=11 // pred_fallthru
        _
      // Predicated region
      $region21: #{diffeq_transformer_forward.6} parent=11 // pred_check
        %p322 = pneg %p107
      $region22: #{diffeq_transformer_forward.6} parent=11 // pred_check_branch
        %324 = sbr.rel (%p322) target = $region24
      $region23: #{diffeq_transformer_forward.6} parent=11 // pred_region
        _
      $region24: #{diffeq_transformer_forward.6} parent=11 // pred_fallthru
        _
      // Predicated region
      $region25: #{diffeq_transformer_forward.6} parent=11 // pred_check
        %p325 = pneg %p128
      $region26: #{diffeq_transformer_forward.6} parent=11 // pred_check_branch
        %327 = sbr.rel (%p325) target = $region28
      $region27: #{diffeq_transformer_forward.6} parent=11 // pred_region
        _
      $region28: #{diffeq_transformer_forward.6} parent=11 // pred_fallthru
        _
      // Predicated region
      $region29: #{diffeq_transformer_forward.6} parent=11 // pred_check
        %p328 = pneg %p149
      $region30: #{diffeq_transformer_forward.6} parent=11 // pred_check_branch
        %330 = sbr.rel (%p328) target = $region32
      $region31: #{diffeq_transformer_forward.6} parent=11 // pred_region
        _
      $region32: #{diffeq_transformer_forward.6} parent=11 // pred_fallthru
        _
      // Predicated region
      $region33: #{diffeq_transformer_forward.6} parent=11 // pred_check
        %p331 = pneg %p170
      $region34: #{diffeq_transformer_forward.6} parent=11 // pred_check_branch
        %333 = sbr.rel (%p331) target = $region36
      $region35: #{diffeq_transformer_forward.6} parent=11 // pred_region
        _
      $region36: #{diffeq_transformer_forward.6} parent=11 // pred_fallthru
        _
      // Predicated region
      $region37: #{diffeq_transformer_forward.6} parent=11 // pred_check
        %p334 = pneg %p191
      $region38: #{diffeq_transformer_forward.6} parent=11 // pred_check_branch
        %336 = sbr.rel (%p334) target = $region40
      $region39: #{diffeq_transformer_forward.6} parent=11 // pred_region
        _
      $region40: #{diffeq_transformer_forward.6} parent=11 // pred_fallthru
        _
      // Predicated region
      $region41: #{diffeq_transformer_forward.6} parent=11 // pred_check
        %p337 = pneg %p212
      $region42: #{diffeq_transformer_forward.6} parent=11 // pred_check_branch
        %339 = sbr.rel (%p337) target = $region44
      $region43: #{diffeq_transformer_forward.6} parent=11 // pred_region
        _
      $region44: #{diffeq_transformer_forward.6} parent=11 // pred_fallthru
        _
      // Predicated region
      $region45: #{diffeq_transformer_forward.6} parent=11 // pred_check
        %p340 = pneg %p233
      $region46: #{diffeq_transformer_forward.6} parent=11 // pred_check_branch
        %342 = sbr.rel (%p340) target = $region48
      $region47: #{diffeq_transformer_forward.6} parent=11 // pred_region
        _
      $region48: #{diffeq_transformer_forward.6} parent=11 // pred_fallthru
        _
      // Predicated region
      $region49: #{diffeq_transformer_forward.6} parent=11 // pred_check
        %p343 = pneg %p254
      $region50: #{diffeq_transformer_forward.6} parent=11 // pred_check_branch
        %345 = sbr.rel (%p343) target = $region52
      $region51: #{diffeq_transformer_forward.6} parent=11 // pred_region
        _
      $region52: #{diffeq_transformer_forward.6} parent=11 // pred_fallthru
        _
      // Predicated region
      $region53: #{diffeq_transformer_forward.6} parent=11 // pred_check
        %p346 = pneg %p275
      $region54: #{diffeq_transformer_forward.6} parent=11 // pred_check_branch
        %348 = sbr.rel (%p346) target = $region56
      $region55: #{diffeq_transformer_forward.6} parent=11 // pred_region
        _
      $region56: #{diffeq_transformer_forward.6} parent=11 // pred_fallthru
        _
    $region12: #{diffeq_transformer_forward.6} parent=5 // pred_fallthru
      _
    %p349 = scmp.lt.s32.totalorder %s18, 4
    // Predicated region
    $region57: #{diffeq_transformer_forward.6} parent=5 // pred_check
      %p350 = pneg %p349
    $region58: #{diffeq_transformer_forward.6} parent=5 // pred_check_branch
      %352 = sbr.rel (%p350) target = $region60
    $region59: #{diffeq_transformer_forward.6} parent=5 // pred_region
      // Predicated region
      $region61: #{diffeq_transformer_forward.6} parent=59 // pred_check
        %p353 = pneg %p38
      $region62: #{diffeq_transformer_forward.6} parent=59 // pred_check_branch
        %355 = sbr.rel (%p353) target = $region64
      $region63: #{diffeq_transformer_forward.6} parent=59 // pred_region
        %s356 = smul.u32 2, %s18
        %p357 = scmp.lt.s32.totalorder %s356, 7
        %s358 = scalar_select %p357, %s356, 7
        %s359 = smul.addr %s358, 8
        %s360 = scalar_lea.vmem %s0, %s359
        %s361 = smul.u32 2, %s18
      $region64: #{diffeq_transformer_forward.6} parent=59 // pred_fallthru
        _
    $region60: #{diffeq_transformer_forward.6} parent=5 // pred_fallthru
      _
    %p362 = scmp.le.s32.totalorder 1, %s18
    %p363 = scmp.lt.s32.totalorder %s18, 5
    %p364 = pnand %p362, %p363
    %p365 = pneg %p364
    // Predicated region
    $region65: #{diffeq_transformer_forward.6} parent=5 // pred_check
      _
    $region66: #{diffeq_transformer_forward.6} parent=5 // pred_check_branch
      %367 = sbr.rel (%p364) target = $region68
    $region67: #{diffeq_transformer_forward.6} parent=5 // pred_region
      %s368 = ssub.s32 %s18, 1
      %s369 = smul.u32 2, %s23
      %p370 = scmp.lt.s32.totalorder %s369, 7
      %s371 = scalar_select %p370, %s369, 7
      %s372 = smul.addr %s371, 8
      %s373 = scalar_lea.vmem %s0, %s372
      %p374 = pneg %p44
      %p375 = pneg %p41
      %p376 = pneg %p65
      %p377 = pneg %p62
      %p378 = pneg %p86
      %p379 = pneg %p83
      %p380 = pneg %p107
      %p381 = pneg %p104
      %p382 = pneg %p128
      %p383 = pneg %p125
      %p384 = pneg %p149
      %p385 = pneg %p146
      %p386 = pneg %p170
      %p387 = pneg %p167
      %p388 = pneg %p191
      %p389 = pneg %p188
      %p390 = pneg %p212
      %p391 = pneg %p209
      %p392 = pneg %p233
      %p393 = pneg %p230
      %p394 = pneg %p254
      %p395 = pneg %p251
      %p396 = pneg %p275
      %p397 = pneg %p272
      %p398 = pneg %p301
      %p399 = pneg %p298
      %s400 = smul.u32 2, %s23
      %p401 = scmp.lt.s32.totalorder %s400, 7
      %s402 = scalar_select %p401, %s400, 7
      %s403 = smul.addr %s402, 8
      %s404 = scalar_lea.vmem %s12, %s403
      %s405 = smul.u32 2, %s23
      %p406 = scmp.lt.s32.totalorder %s405, 7
      %s407 = scalar_select %p406, %s405, 7
      %s408 = smul.addr %s407, 8
      %s409 = scalar_lea.vmem %s0, %s408
      %s410 = smul.u32 2, %s23
      %s411 = smul.u32 2, %s23
      %p412 = scmp.lt.s32.totalorder %s411, 7
      %s413 = scalar_select %p412, %s411, 7
      %s414 = smul.addr %s413, 8
      %s415 = scalar_lea.vmem %s12, %s414
      %s416 = smul.u32 2, %s23
      %v417 = vld [vmem:[%s409] sm:$0xff]
      %v418 = vld [vmem:[%s409 + $0x8] sm:$0xff]
      %v419 = vld [vmem:[%s1] sm:$0xff]
      %v420 = vld [vmem:[%s1 + $0x8] sm:$0xff]
      %v421 = vld [vmem:[%s1 + $0x10] sm:$0xff]
      %v422 = vld [vmem:[%s1 + $0x18] sm:$0xff]
      %v423 = vld [vmem:[%s1 + $0x20] sm:$0xff]
      %v424 = vld [vmem:[%s1 + $0x28] sm:$0xff]
      %v425 = vld [vmem:[%s1 + $0x30] sm:$0xff]
      %v426 = vld [vmem:[%s1 + $0x38] sm:$0xff]
      %v427 = vld [vmem:[%s1 + $0x40] sm:$0xff]
      %v428 = vld [vmem:[%s1 + $0x48] sm:$0xff]
      %v429 = vld [vmem:[%s1 + $0x50] sm:$0xff]
      %v430 = vld [vmem:[%s1 + $0x58] sm:$0xff]
      %v431 = vld [vmem:[%s1 + $0x60] sm:$0xff]
      %v432 = vld [vmem:[%s1 + $0x68] sm:$0xff]
      %v433 = vld [vmem:[%s1 + $0x70] sm:$0xff]
      %v434 = vld [vmem:[%s1 + $0x78] sm:$0xff]
      %v435 = vld [vmem:[%s1 + $0x80] sm:$0xff]
      %v436 = vld [vmem:[%s1 + $0x88] sm:$0xff]
      %v437 = vld [vmem:[%s1 + $0x90] sm:$0xff]
      %v438 = vld [vmem:[%s1 + $0x98] sm:$0xff]
      %v439 = vld [vmem:[%s1 + $0xa0] sm:$0xff]
      %v440 = vld [vmem:[%s1 + $0xa8] sm:$0xff]
      %v441 = vld [vmem:[%s1 + $0xb0] sm:$0xff]
      %v442 = vld [vmem:[%s1 + $0xb8] sm:$0xff]
      %v443 = vld [vmem:[%s1 + $0xc0] sm:$0xff]
      %v444 = vld [vmem:[%s1 + $0xc8] sm:$0xff]
      %v445 = vld [vmem:[%s1 + $0xd0] sm:$0xff]
      %v446 = vld [vmem:[%s1 + $0xd8] sm:$0xff]
      %v447 = vld [vmem:[%s1 + $0xe0] sm:$0xff]
      %v448 = vld [vmem:[%s1 + $0xe8] sm:$0xff]
      %v449 = vld [vmem:[%s1 + $0xf0] sm:$0xff]
      %v450 = vld [vmem:[%s1 + $0xf8] sm:$0xff]
      %v451 = vld [vmem:[%s1 + $0x100] sm:$0xff]
      %v452 = vld [vmem:[%s1 + $0x108] sm:$0xff]
      %v453 = vld [vmem:[%s1 + $0x110] sm:$0xff]
      %v454 = vld [vmem:[%s1 + $0x118] sm:$0xff]
      %v455 = vld [vmem:[%s1 + $0x120] sm:$0xff]
      %v456 = vld [vmem:[%s1 + $0x128] sm:$0xff]
      %v457 = vld [vmem:[%s1 + $0x130] sm:$0xff]
      %v458 = vld [vmem:[%s1 + $0x138] sm:$0xff]
      %v459 = vld [vmem:[%s1 + $0x140] sm:$0xff]
      %v460 = vld [vmem:[%s1 + $0x148] sm:$0xff]
      %v461 = vld [vmem:[%s1 + $0x150] sm:$0xff]
      %v462 = vld [vmem:[%s1 + $0x158] sm:$0xff]
      %v463 = vld [vmem:[%s1 + $0x160] sm:$0xff]
      %v464 = vld [vmem:[%s1 + $0x168] sm:$0xff]
      %v465 = vld [vmem:[%s1 + $0x170] sm:$0xff]
      %v466 = vld [vmem:[%s1 + $0x178] sm:$0xff]
      %v467 = vld [vmem:[%s1 + $0x180] sm:$0xff]
      %v468 = vld [vmem:[%s1 + $0x188] sm:$0xff]
      %v469 = vld [vmem:[%s1 + $0x190] sm:$0xff]
      %v470 = vld [vmem:[%s1 + $0x198] sm:$0xff]
      %v471 = vld [vmem:[%s1 + $0x1a0] sm:$0xff]
      %v472 = vld [vmem:[%s1 + $0x1a8] sm:$0xff]
      %v473 = vld [vmem:[%s1 + $0x1b0] sm:$0xff]
      %v474 = vld [vmem:[%s1 + $0x1b8] sm:$0xff]
      %v475 = vld [vmem:[%s1 + $0x1c0] sm:$0xff]
      %v476 = vld [vmem:[%s1 + $0x1c8] sm:$0xff]
      %v477 = vld [vmem:[%s1 + $0x1d0] sm:$0xff]
      %v478 = vld [vmem:[%s1 + $0x1d8] sm:$0xff]
      %v479 = vld [vmem:[%s1 + $0x1e0] sm:$0xff]
      %v480 = vld [vmem:[%s1 + $0x1e8] sm:$0xff]
      %v481 = vld [vmem:[%s1 + $0x1f0] sm:$0xff]
      %v482 = vld [vmem:[%s1 + $0x1f8] sm:$0xff]
      %483 = vmatprep.subr.mxu0 %v420
      %484 = vmatpush1.msra.mxu0 %v419
      %485 = vmatprep.subr.mxu0 %v424
      %486 = vmatpush1.msra.mxu0 %v423
      %487 = vmatprep.subr.mxu0 %v428
      %488 = vmatpush1.msra.mxu0 %v427
      %489 = vmatprep.subr.mxu0 %v432
      %490 = vmatpush1.msra.mxu0 %v431
      %491 = vmatprep.subr.mxu0 %v436
      %492 = vmatpush1.msra.mxu0 %v435
      %493 = vmatprep.subr.mxu0 %v440
      %494 = vmatpush1.msra.mxu0 %v439
      %495 = vmatprep.subr.mxu0 %v444
      %496 = vmatpush1.msra.mxu0 %v443
      %497 = vmatprep.subr.mxu0 %v448
      %498 = vmatpush1.msra.mxu0 %v447
      %499 = vmatprep.subr.mxu0 %v452
      %500 = vmatpush1.msra.mxu0 %v451
      %501 = vmatprep.subr.mxu0 %v456
      %502 = vmatpush1.msra.mxu0 %v455
      %503 = vmatprep.subr.mxu0 %v460
      %504 = vmatpush1.msra.mxu0 %v459
      %505 = vmatprep.subr.mxu0 %v464
      %506 = vmatpush1.msra.mxu0 %v463
      %507 = vmatprep.subr.mxu0 %v468
      %508 = vmatpush1.msra.mxu0 %v467
      %509 = vmatprep.subr.mxu0 %v472
      %510 = vmatpush1.msra.mxu0 %v471
      %511 = vmatprep.subr.mxu0 %v476
      %512 = vmatpush1.msra.mxu0 %v475
      %513 = vmatprep.subr.mxu0 %v480
      %514 = vmatpush1.msra.mxu0 %v479
      %515 = vmatprep.subr.mxu0 0.0
      %516 = vmatpush1.msra.mxu0 0.0
      %517 = vmatprep.subr.mxu0 0.0
      %518 = vmatpush1.msra.mxu0 0.0
      %519 = vmatprep.subr.mxu0 0.0
      %520 = vmatpush1.msra.mxu0 0.0
      %521 = vmatprep.subr.mxu0 0.0
      %522 = vmatpush1.msra.mxu0 0.0
      %523 = vmatprep.subr.mxu0 0.0
      %524 = vmatpush1.msra.mxu0 0.0
      %525 = vmatprep.subr.mxu0 0.0
      %526 = vmatpush1.msra.mxu0 0.0
      %527 = vmatprep.subr.mxu0 0.0
      %528 = vmatpush1.msra.mxu0 0.0
      %529 = vmatprep.subr.mxu0 0.0
      %530 = vmatpush1.msra.mxu0 0.0
      %531 = vmatprep.subr.mxu0 0.0
      %532 = vmatpush1.msra.mxu0 0.0
      %533 = vmatprep.subr.mxu0 0.0
      %534 = vmatpush1.msra.mxu0 0.0
      %535 = vmatprep.subr.mxu0 0.0
      %536 = vmatpush1.msra.mxu0 0.0
      %537 = vmatprep.subr.mxu0 0.0
      %538 = vmatpush1.msra.mxu0 0.0
      %539 = vmatprep.subr.mxu0 0.0
      %540 = vmatpush1.msra.mxu0 0.0
      %541 = vmatprep.subr.mxu0 0.0
      %542 = vmatpush1.msra.mxu0 0.0
      %543 = vmatprep.subr.mxu0 0.0
      %544 = vmatpush1.msra.mxu0 0.0
      %545 = vmatprep.subr.mxu0 0.0
      %546 = vmatpush1.msra.mxu0 0.0
      %547 = vmatprep.mubr.f32.mxu0 0.0
      %548 = vmatmul.mubr.f32.gmra.mrb[0].mxu0 %v417
      %v549 = vpop.f32.mrb[0].mxu0
      %v550 = vadd.f32 0.0, %v549
      %v551 = vpop.f32.mrb[0].mxu0
      %v552 = vadd.f32 0.0, %v551
      %553 = vmatprep.mubr.f32.mxu0 0.0
      %554 = vmatmul.mubr.f32.gmra.mrb[0].mxu0 %v418
      %v555 = vpop.f32.mrb[0].mxu0
      %v556 = vadd.f32 0.0, %v555
      %v557 = vpop.f32.mrb[0].mxu0
      %v558 = vadd.f32 0.0, %v557
      %559 = vdwg.mxu0
      %560 = vmatprep.subr.mxu0 %v422
      %561 = vmatpush1.msra.mxu0 %v421
      %562 = vmatprep.subr.mxu0 %v426
      %563 = vmatpush1.msra.mxu0 %v425
      %564 = vmatprep.subr.mxu0 %v430
      %565 = vmatpush1.msra.mxu0 %v429
      %566 = vmatprep.subr.mxu0 %v434
      %567 = vmatpush1.msra.mxu0 %v433
      %568 = vmatprep.subr.mxu0 %v438
      %569 = vmatpush1.msra.mxu0 %v437
      %570 = vmatprep.subr.mxu0 %v442
      %571 = vmatpush1.msra.mxu0 %v441
      %572 = vmatprep.subr.mxu0 %v446
      %573 = vmatpush1.msra.mxu0 %v445
      %574 = vmatprep.subr.mxu0 %v450
      %575 = vmatpush1.msra.mxu0 %v449
      %576 = vmatprep.subr.mxu0 %v454
      %577 = vmatpush1.msra.mxu0 %v453
      %578 = vmatprep.subr.mxu0 %v458
      %579 = vmatpush1.msra.mxu0 %v457
      %580 = vmatprep.subr.mxu0 %v462
      %581 = vmatpush1.msra.mxu0 %v461
      %582 = vmatprep.subr.mxu0 %v466
      %583 = vmatpush1.msra.mxu0 %v465
      %584 = vmatprep.subr.mxu0 %v470
      %585 = vmatpush1.msra.mxu0 %v469
      %586 = vmatprep.subr.mxu0 %v474
      %587 = vmatpush1.msra.mxu0 %v473
      %588 = vmatprep.subr.mxu0 %v478
      %589 = vmatpush1.msra.mxu0 %v477
      %590 = vmatprep.subr.mxu0 %v482
      %591 = vmatpush1.msra.mxu0 %v481
      %592 = vmatprep.subr.mxu0 0.0
      %593 = vmatpush1.msra.mxu0 0.0
      %594 = vmatprep.subr.mxu0 0.0
      %595 = vmatpush1.msra.mxu0 0.0
      %596 = vmatprep.subr.mxu0 0.0
      %597 = vmatpush1.msra.mxu0 0.0
      %598 = vmatprep.subr.mxu0 0.0
      %599 = vmatpush1.msra.mxu0 0.0
      %600 = vmatprep.subr.mxu0 0.0
      %601 = vmatpush1.msra.mxu0 0.0
      %602 = vmatprep.subr.mxu0 0.0
      %603 = vmatpush1.msra.mxu0 0.0
      %604 = vmatprep.subr.mxu0 0.0
      %605 = vmatpush1.msra.mxu0 0.0
      %606 = vmatprep.subr.mxu0 0.0
      %607 = vmatpush1.msra.mxu0 0.0
      %608 = vmatprep.subr.mxu0 0.0
      %609 = vmatpush1.msra.mxu0 0.0
      %610 = vmatprep.subr.mxu0 0.0
      %611 = vmatpush1.msra.mxu0 0.0
      %612 = vmatprep.subr.mxu0 0.0
      %613 = vmatpush1.msra.mxu0 0.0
      %614 = vmatprep.subr.mxu0 0.0
      %615 = vmatpush1.msra.mxu0 0.0
      %616 = vmatprep.subr.mxu0 0.0
      %617 = vmatpush1.msra.mxu0 0.0
      %618 = vmatprep.subr.mxu0 0.0
      %619 = vmatpush1.msra.mxu0 0.0
      %620 = vmatprep.subr.mxu0 0.0
      %621 = vmatpush1.msra.mxu0 0.0
      %622 = vmatprep.subr.mxu0 0.0
      %623 = vmatpush1.msra.mxu0 0.0
      %624 = vmatprep.mubr.f32.mxu0 0.0
      %625 = vmatmul.mubr.f32.gmra.mrb[0].mxu0 %v417
      %v626 = vpop.f32.mrb[0].mxu0
      %v627 = vadd.f32 0.0, %v626
      %v628 = vpop.f32.mrb[0].mxu0
      %v629 = vadd.f32 0.0, %v628
      %630 = vmatprep.mubr.f32.mxu0 0.0
      %631 = vmatmul.mubr.f32.gmra.mrb[0].mxu0 %v418
      %v632 = vpop.f32.mrb[0].mxu0
      %v633 = vadd.f32 0.0, %v632
      %v634 = vpop.f32.mrb[0].mxu0
      %v635 = vadd.f32 0.0, %v634
      %636 = vdwg.mxu0
      %637 = vmatprep.subr.mxu0 0.0
      %638 = vmatpush1.xpose.msra.mxu0 %v417
      %639 = vmatprep.subr.mxu0 0.0
      %640 = vmatpush1.xpose.msra.mxu0 %v418
      %641 = vmatprep.subr.mxu0 0.0
      %642 = vmatpush1.xpose.msra.mxu0 0.0
      %643 = vmatprep.subr.mxu0 0.0
      %644 = vmatpush1.xpose.msra.mxu0 0.0
      %645 = vmatprep.subr.mxu0 0.0
      %646 = vmatpush1.xpose.msra.mxu0 0.0
      %647 = vmatprep.subr.mxu0 0.0
      %648 = vmatpush1.xpose.msra.mxu0 0.0
      %649 = vmatprep.subr.mxu0 0.0
      %650 = vmatpush1.xpose.msra.mxu0 0.0
      %651 = vmatprep.subr.mxu0 0.0
      %652 = vmatpush1.xpose.msra.mxu0 0.0
      %653 = vmatprep.subr.mxu0 0.0
      %654 = vmatpush1.xpose.msra.mxu0 0.0
      %655 = vmatprep.subr.mxu0 0.0
      %656 = vmatpush1.xpose.msra.mxu0 0.0
      %657 = vmatprep.subr.mxu0 0.0
      %658 = vmatpush1.xpose.msra.mxu0 0.0
      %659 = vmatprep.subr.mxu0 0.0
      %660 = vmatpush1.xpose.msra.mxu0 0.0
      %661 = vmatprep.subr.mxu0 0.0
      %662 = vmatpush1.xpose.msra.mxu0 0.0
      %663 = vmatprep.subr.mxu0 0.0
      %664 = vmatpush1.xpose.msra.mxu0 0.0
      %665 = vmatprep.subr.mxu0 0.0
      %666 = vmatpush1.xpose.msra.mxu0 0.0
      %667 = vmatprep.subr.mxu0 0.0
      %668 = vmatpush1.xpose.msra.mxu0 0.0
      %669 = vmatprep.subr.mxu0 0.0
      %670 = vmatpush1.xpose.msra.mxu0 0.0
      %671 = vmatprep.subr.mxu0 0.0
      %672 = vmatpush1.xpose.msra.mxu0 0.0
      %673 = vmatprep.subr.mxu0 0.0
      %674 = vmatpush1.xpose.msra.mxu0 0.0
      %675 = vmatprep.subr.mxu0 0.0
      %676 = vmatpush1.xpose.msra.mxu0 0.0
      %677 = vmatprep.subr.mxu0 0.0
      %678 = vmatpush1.xpose.msra.mxu0 0.0
      %679 = vmatprep.subr.mxu0 0.0
      %680 = vmatpush1.xpose.msra.mxu0 0.0
      %681 = vmatprep.subr.mxu0 0.0
      %682 = vmatpush1.xpose.msra.mxu0 0.0
      %683 = vmatprep.subr.mxu0 0.0
      %684 = vmatpush1.xpose.msra.mxu0 0.0
      %685 = vmatprep.subr.mxu0 0.0
      %686 = vmatpush1.xpose.msra.mxu0 0.0
      %687 = vmatprep.subr.mxu0 0.0
      %688 = vmatpush1.xpose.msra.mxu0 0.0
      %689 = vmatprep.subr.mxu0 0.0
      %690 = vmatpush1.xpose.msra.mxu0 0.0
      %691 = vmatprep.subr.mxu0 0.0
      %692 = vmatpush1.xpose.msra.mxu0 0.0
      %693 = vmatprep.subr.mxu0 0.0
      %694 = vmatpush1.xpose.msra.mxu0 0.0
      %695 = vmatprep.subr.mxu0 0.0
      %696 = vmatpush1.xpose.msra.mxu0 0.0
      %697 = vmatprep.subr.mxu0 0.0
      %698 = vmatpush1.xpose.msra.mxu0 0.0
      %699 = vmatprep.subr.mxu0 0.0
      %700 = vmatpush1.xpose.msra.mxu0 0.0
      %701 = vmatprep.mubr.f32.mxu0 0.0
      %702 = vmatmul.mubr.f32.gmra.mrb[0].mxu0 %v550
      %v703 = vpop.f32.mrb[0].mxu0
      %v704 = vadd.f32 0.0, %v703
      %v705 = vpop.f32.mrb[0].mxu0
      %706 = vmatprep.mubr.f32.mxu0 0.0
      %707 = vmatmul.mubr.f32.gmra.mrb[0].mxu0 %v556
      %v708 = vpop.f32.mrb[0].mxu0
      %v709 = vadd.f32 0.0, %v708
      %v710 = vpop.f32.mrb[0].mxu0
      %711 = vdwg.mxu0
      %v712 = vmul.f32 %v550, %v417
      %v713 = vmul.f32 %v556, %v418
      %714 = vadd.xlane.f32.xlu0 %v712
      %v715 = vpop.xlane.xlu0 %714
      %716 = vadd.xlane.f32.xlu0 %v713
      %v717 = vpop.xlane.xlu0 %716
      %v718 = vmul.f32 %v704, 2.0
      %v719 = vmul.f32 %v709, 2.0
      %v720 = vsub.f32 %v718, %v715
      %v721 = vsub.f32 %v719, %v717
      %722 = vxpose.xlu0.b32.start [1/16] %v715, 128
      %723 = vxpose.xlu0.b32.cont [2/16] %v717, 128
      %724 = vxpose.xlu0.b32.cont [3/16] 0.0, 128
      %725 = vxpose.xlu0.b32.cont [4/16] 0.0, 128
      %726 = vxpose.xlu0.b32.cont [5/16] 0.0, 128
      %727 = vxpose.xlu0.b32.cont [6/16] 0.0, 128
      %728 = vxpose.xlu0.b32.cont [7/16] 0.0, 128
      %729 = vxpose.xlu0.b32.cont [8/16] 0.0, 128
      %730 = vxpose.xlu0.b32.cont [9/16] 0.0, 128
      %731 = vxpose.xlu0.b32.cont [10/16] 0.0, 128
      %732 = vxpose.xlu0.b32.cont [11/16] 0.0, 128
      %733 = vxpose.xlu0.b32.cont [12/16] 0.0, 128
      %734 = vxpose.xlu0.b32.cont [13/16] 0.0, 128
      %735 = vxpose.xlu0.b32.cont [14/16] 0.0, 128
      %736 = vxpose.xlu0.b32.cont [15/16] 0.0, 128
      %737 = vxpose.xlu0.b32.end [16/16] 0.0, 128
      %v738 = vpop.trf.xlu0
      %v739 = vpop.trf.xlu0
      %v740 = vpop.trf.xlu0
      %v741 = vpop.trf.xlu0
      %v742 = vpop.trf.xlu0
      %v743 = vpop.trf.xlu0
      %v744 = vpop.trf.xlu0
      %v745 = vpop.trf.xlu0
      %v746 = vpop.trf.xlu0
      %v747 = vpop.trf.xlu0
      %v748 = vpop.trf.xlu0
      %v749 = vpop.trf.xlu0
      %v750 = vpop.trf.xlu0
      %v751 = vpop.trf.xlu0
      %v752 = vpop.trf.xlu0
      %v753 = vpop.trf.xlu0
      %v754 = vlaneseq
      %v755 = vshrl.u32 %v754, 7
      %v756 = vsub.s32 0, %v755
      %v757 = vrot.slane %v738, %v756
      %v758 = vsub.f32 %v720, %v757
      %v759 = vsub.f32 %v721, %v757
      %vm760 = vcmask 130048
      %v761 = vsel %vm760, %v758, -inf
      %762 = vmax.xlane.f32.xlu0 %v761
      %v763 = vpop.xlane.xlu0 %762
      %v764 = vsel %vm760, %v759, -inf
      %765 = vmax.xlane.f32.xlu0 %v764
      %v766 = vpop.xlane.xlu0 %765
      %v767 = vsub.f32 %v758, %v763
      %v768 = vsub.f32 %v759, %v766
      %v769 = vmul.f32 %v767, 1.442695
      %v770 = vpow.pop %v769
      %v771 = vmul.f32 %v768, 1.442695
      %v772 = vpow.pop %v771
      %v773 = vsel %vm760, %v770, 0.0
      %774 = vadd.xlane.f32.xlu0 %v773
      %v775 = vpop.xlane.xlu0 %774
      %v776 = vsel %vm760, %v772, 0.0
      %777 = vadd.xlane.f32.xlu0 %v776
      %v778 = vpop.xlane.xlu0 %777
      %v779 = vrcp.pop %v775
      %v780 = vrcp.pop %v778
      %v781 = vmul.f32 %v770, %v779
      %v782 = vmul.f32 %v772, %v780
      %v784 = vsel %vm760, %v781, 0
      %v787 = vsel %vm760, %v782, 0
      %789 = vmatprep.subr.mxu0 0.0
      %790 = vmatpush1.msra.mxu0 %v550
      %791 = vmatprep.subr.mxu0 0.0
      %792 = vmatpush1.msra.mxu0 %v556
      %793 = vmatprep.subr.mxu0 0.0
      %794 = vmatpush1.msra.mxu0 0.0
      %795 = vmatprep.subr.mxu0 0.0
      %796 = vmatpush1.msra.mxu0 0.0
      %797 = vmatprep.subr.mxu0 0.0
      %798 = vmatpush1.msra.mxu0 0.0
      %799 = vmatprep.subr.mxu0 0.0
      %800 = vmatpush1.msra.mxu0 0.0
      %801 = vmatprep.subr.mxu0 0.0
      %802 = vmatpush1.msra.mxu0 0.0
      %803 = vmatprep.subr.mxu0 0.0
      %804 = vmatpush1.msra.mxu0 0.0
      %805 = vmatprep.subr.mxu0 0.0
      %806 = vmatpush1.msra.mxu0 0.0
      %807 = vmatprep.subr.mxu0 0.0
      %808 = vmatpush1.msra.mxu0 0.0
      %809 = vmatprep.subr.mxu0 0.0
      %810 = vmatpush1.msra.mxu0 0.0
      %811 = vmatprep.subr.mxu0 0.0
      %812 = vmatpush1.msra.mxu0 0.0
      %813 = vmatprep.subr.mxu0 0.0
      %814 = vmatpush1.msra.mxu0 0.0
      %815 = vmatprep.subr.mxu0 0.0
      %816 = vmatpush1.msra.mxu0 0.0
      %817 = vmatprep.subr.mxu0 0.0
      %818 = vmatpush1.msra.mxu0 0.0
      %819 = vmatprep.subr.mxu0 0.0
      %820 = vmatpush1.msra.mxu0 0.0
      %821 = vmatprep.subr.mxu0 0.0
      %822 = vmatpush1.msra.mxu0 0.0
      %823 = vmatprep.subr.mxu0 0.0
      %824 = vmatpush1.msra.mxu0 0.0
      %825 = vmatprep.subr.mxu0 0.0
      %826 = vmatpush1.msra.mxu0 0.0
      %827 = vmatprep.subr.mxu0 0.0
      %828 = vmatpush1.msra.mxu0 0.0
      %829 = vmatprep.subr.mxu0 0.0
      %830 = vmatpush1.msra.mxu0 0.0
      %831 = vmatprep.subr.mxu0 0.0
      %832 = vmatpush1.msra.mxu0 0.0
      %833 = vmatprep.subr.mxu0 0.0
      %834 = vmatpush1.msra.mxu0 0.0
      %835 = vmatprep.subr.mxu0 0.0
      %836 = vmatpush1.msra.mxu0 0.0
      %837 = vmatprep.subr.mxu0 0.0
      %838 = vmatpush1.msra.mxu0 0.0
      %839 = vmatprep.subr.mxu0 0.0
      %840 = vmatpush1.msra.mxu0 0.0
      %841 = vmatprep.subr.mxu0 0.0
      %842 = vmatpush1.msra.mxu0 0.0
      %843 = vmatprep.subr.mxu0 0.0
      %844 = vmatpush1.msra.mxu0 0.0
      %845 = vmatprep.subr.mxu0 0.0
      %846 = vmatpush1.msra.mxu0 0.0
      %847 = vmatprep.subr.mxu0 0.0
      %848 = vmatpush1.msra.mxu0 0.0
      %849 = vmatprep.subr.mxu0 0.0
      %850 = vmatpush1.msra.mxu0 0.0
      %851 = vmatprep.subr.mxu0 0.0
      %852 = vmatpush1.msra.mxu0 0.0
      %853 = vmatprep.mubr.f32.mxu0 0.0
      %854 = vmatmul.mubr.f32.gmra.mrb[0].mxu0 %v784
      %v855 = vpop.f32.mrb[0].mxu0
      %v856 = vadd.f32 0.0, %v855
      %v857 = vpop.f32.mrb[0].mxu0
      %858 = vmatprep.mubr.f32.mxu0 0.0
      %859 = vmatmul.mubr.f32.gmra.mrb[0].mxu0 %v787
      %v860 = vpop.f32.mrb[0].mxu0
      %v861 = vadd.f32 0.0, %v860
      %v862 = vpop.f32.mrb[0].mxu0
      %863 = vdwg.mxu0
      %864 = vmatprep.subr.mxu0 0.0
      %865 = vmatpush1.xpose.msra.mxu0 %v417
      %866 = vmatprep.subr.mxu0 0.0
      %867 = vmatpush1.xpose.msra.mxu0 %v418
      %868 = vmatprep.subr.mxu0 0.0
      %869 = vmatpush1.xpose.msra.mxu0 0.0
      %870 = vmatprep.subr.mxu0 0.0
      %871 = vmatpush1.xpose.msra.mxu0 0.0
      %872 = vmatprep.subr.mxu0 0.0
      %873 = vmatpush1.xpose.msra.mxu0 0.0
      %874 = vmatprep.subr.mxu0 0.0
      %875 = vmatpush1.xpose.msra.mxu0 0.0
      %876 = vmatprep.subr.mxu0 0.0
      %877 = vmatpush1.xpose.msra.mxu0 0.0
      %878 = vmatprep.subr.mxu0 0.0
      %879 = vmatpush1.xpose.msra.mxu0 0.0
      %880 = vmatprep.subr.mxu0 0.0
      %881 = vmatpush1.xpose.msra.mxu0 0.0
      %882 = vmatprep.subr.mxu0 0.0
      %883 = vmatpush1.xpose.msra.mxu0 0.0
      %884 = vmatprep.subr.mxu0 0.0
      %885 = vmatpush1.xpose.msra.mxu0 0.0
      %886 = vmatprep.subr.mxu0 0.0
      %887 = vmatpush1.xpose.msra.mxu0 0.0
      %888 = vmatprep.subr.mxu0 0.0
      %889 = vmatpush1.xpose.msra.mxu0 0.0
      %890 = vmatprep.subr.mxu0 0.0
      %891 = vmatpush1.xpose.msra.mxu0 0.0
      %892 = vmatprep.subr.mxu0 0.0
      %893 = vmatpush1.xpose.msra.mxu0 0.0
      %894 = vmatprep.subr.mxu0 0.0
      %895 = vmatpush1.xpose.msra.mxu0 0.0
      %896 = vmatprep.subr.mxu0 0.0
      %897 = vmatpush1.xpose.msra.mxu0 0.0
      %898 = vmatprep.subr.mxu0 0.0
      %899 = vmatpush1.xpose.msra.mxu0 0.0
      %900 = vmatprep.subr.mxu0 0.0
      %901 = vmatpush1.xpose.msra.mxu0 0.0
      %902 = vmatprep.subr.mxu0 0.0
      %903 = vmatpush1.xpose.msra.mxu0 0.0
      %904 = vmatprep.subr.mxu0 0.0
      %905 = vmatpush1.xpose.msra.mxu0 0.0
      %906 = vmatprep.subr.mxu0 0.0
      %907 = vmatpush1.xpose.msra.mxu0 0.0
      %908 = vmatprep.subr.mxu0 0.0
      %909 = vmatpush1.xpose.msra.mxu0 0.0
      %910 = vmatprep.subr.mxu0 0.0
      %911 = vmatpush1.xpose.msra.mxu0 0.0
      %912 = vmatprep.subr.mxu0 0.0
      %913 = vmatpush1.xpose.msra.mxu0 0.0
      %914 = vmatprep.subr.mxu0 0.0
      %915 = vmatpush1.xpose.msra.mxu0 0.0
      %916 = vmatprep.subr.mxu0 0.0
      %917 = vmatpush1.xpose.msra.mxu0 0.0
      %918 = vmatprep.subr.mxu0 0.0
      %919 = vmatpush1.xpose.msra.mxu0 0.0
      %920 = vmatprep.subr.mxu0 0.0
      %921 = vmatpush1.xpose.msra.mxu0 0.0
      %922 = vmatprep.subr.mxu0 0.0
      %923 = vmatpush1.xpose.msra.mxu0 0.0
      %924 = vmatprep.subr.mxu0 0.0
      %925 = vmatpush1.xpose.msra.mxu0 0.0
      %926 = vmatprep.subr.mxu0 0.0
      %927 = vmatpush1.xpose.msra.mxu0 0.0
      %928 = vmatprep.mubr.f32.mxu0 0.0
      %929 = vmatmul.mubr.f32.gmra.mrb[0].mxu0 %v552
      %v930 = vpop.f32.mrb[0].mxu0
      %v931 = vadd.f32 0.0, %v930
      %v932 = vpop.f32.mrb[0].mxu0
      %933 = vmatprep.mubr.f32.mxu0 0.0
      %934 = vmatmul.mubr.f32.gmra.mrb[0].mxu0 %v558
      %v935 = vpop.f32.mrb[0].mxu0
      %v936 = vadd.f32 0.0, %v935
      %v937 = vpop.f32.mrb[0].mxu0
      %938 = vdwg.mxu0
      %v939 = vmul.f32 %v552, %v417
      %v940 = vmul.f32 %v558, %v418
      %941 = vadd.xlane.f32.xlu0 %v939
      %v942 = vpop.xlane.xlu0 %941
      %943 = vadd.xlane.f32.xlu0 %v940
      %v944 = vpop.xlane.xlu0 %943
      %v945 = vmul.f32 %v931, 2.0
      %v946 = vmul.f32 %v936, 2.0
      %v947 = vsub.f32 %v945, %v942
      %v948 = vsub.f32 %v946, %v944
      %949 = vxpose.xlu0.b32.start [1/16] %v942, 128
      %950 = vxpose.xlu0.b32.cont [2/16] %v944, 128
      %951 = vxpose.xlu0.b32.cont [3/16] 0.0, 128
      %952 = vxpose.xlu0.b32.cont [4/16] 0.0, 128
      %953 = vxpose.xlu0.b32.cont [5/16] 0.0, 128
      %954 = vxpose.xlu0.b32.cont [6/16] 0.0, 128
      %955 = vxpose.xlu0.b32.cont [7/16] 0.0, 128
      %956 = vxpose.xlu0.b32.cont [8/16] 0.0, 128
      %957 = vxpose.xlu0.b32.cont [9/16] 0.0, 128
      %958 = vxpose.xlu0.b32.cont [10/16] 0.0, 128
      %959 = vxpose.xlu0.b32.cont [11/16] 0.0, 128
      %960 = vxpose.xlu0.b32.cont [12/16] 0.0, 128
      %961 = vxpose.xlu0.b32.cont [13/16] 0.0, 128
      %962 = vxpose.xlu0.b32.cont [14/16] 0.0, 128
      %963 = vxpose.xlu0.b32.cont [15/16] 0.0, 128
      %964 = vxpose.xlu0.b32.end [16/16] 0.0, 128
      %v965 = vpop.trf.xlu0
      %v966 = vpop.trf.xlu0
      %v967 = vpop.trf.xlu0
      %v968 = vpop.trf.xlu0
      %v969 = vpop.trf.xlu0
      %v970 = vpop.trf.xlu0
      %v971 = vpop.trf.xlu0
      %v972 = vpop.trf.xlu0
      %v973 = vpop.trf.xlu0
      %v974 = vpop.trf.xlu0
      %v975 = vpop.trf.xlu0
      %v976 = vpop.trf.xlu0
      %v977 = vpop.trf.xlu0
      %v978 = vpop.trf.xlu0
      %v979 = vpop.trf.xlu0
      %v980 = vpop.trf.xlu0
      %v981 = vlaneseq
      %v982 = vshrl.u32 %v981, 7
      %v983 = vsub.s32 0, %v982
      %v984 = vrot.slane %v965, %v983
      %v985 = vsub.f32 %v947, %v984
      %v986 = vsub.f32 %v948, %v984
      %v987 = vsel %vm760, %v985, -inf
      %988 = vmax.xlane.f32.xlu0 %v987
      %v989 = vpop.xlane.xlu0 %988
      %v990 = vsel %vm760, %v986, -inf
      %991 = vmax.xlane.f32.xlu0 %v990
      %v992 = vpop.xlane.xlu0 %991
      %v993 = vsub.f32 %v985, %v989
      %v994 = vsub.f32 %v986, %v992
      %v995 = vmul.f32 %v993, 1.442695
      %v996 = vpow.pop %v995
      %v997 = vmul.f32 %v994, 1.442695
      %v998 = vpow.pop %v997
      %v999 = vsel %vm760, %v996, 0.0
      %1000 = vadd.xlane.f32.xlu0 %v999
      %v1001 = vpop.xlane.xlu0 %1000
      %v1002 = vsel %vm760, %v998, 0.0
      %1003 = vadd.xlane.f32.xlu0 %v1002
      %v1004 = vpop.xlane.xlu0 %1003
      %v1005 = vrcp.pop %v1001
      %v1006 = vrcp.pop %v1004
      %v1007 = vmul.f32 %v996, %v1005
      %v1008 = vmul.f32 %v998, %v1006
      %v1010 = vsel %vm760, %v1007, 0
      %v1013 = vsel %vm760, %v1008, 0
      %1015 = vmatprep.subr.mxu0 0.0
      %1016 = vmatpush1.msra.mxu0 %v552
      %1017 = vmatprep.subr.mxu0 0.0
      %1018 = vmatpush1.msra.mxu0 %v558
      %1019 = vmatprep.subr.mxu0 0.0
      %1020 = vmatpush1.msra.mxu0 0.0
      %1021 = vmatprep.subr.mxu0 0.0
      %1022 = vmatpush1.msra.mxu0 0.0
      %1023 = vmatprep.subr.mxu0 0.0
      %1024 = vmatpush1.msra.mxu0 0.0
      %1025 = vmatprep.subr.mxu0 0.0
      %1026 = vmatpush1.msra.mxu0 0.0
      %1027 = vmatprep.subr.mxu0 0.0
      %1028 = vmatpush1.msra.mxu0 0.0
      %1029 = vmatprep.subr.mxu0 0.0
      %1030 = vmatpush1.msra.mxu0 0.0
      %1031 = vmatprep.subr.mxu0 0.0
      %1032 = vmatpush1.msra.mxu0 0.0
      %1033 = vmatprep.subr.mxu0 0.0
      %1034 = vmatpush1.msra.mxu0 0.0
      %1035 = vmatprep.subr.mxu0 0.0
      %1036 = vmatpush1.msra.mxu0 0.0
      %1037 = vmatprep.subr.mxu0 0.0
      %1038 = vmatpush1.msra.mxu0 0.0
      %1039 = vmatprep.subr.mxu0 0.0
      %1040 = vmatpush1.msra.mxu0 0.0
      %1041 = vmatprep.subr.mxu0 0.0
      %1042 = vmatpush1.msra.mxu0 0.0
      %1043 = vmatprep.subr.mxu0 0.0
      %1044 = vmatpush1.msra.mxu0 0.0
      %1045 = vmatprep.subr.mxu0 0.0
      %1046 = vmatpush1.msra.mxu0 0.0
      %1047 = vmatprep.subr.mxu0 0.0
      %1048 = vmatpush1.msra.mxu0 0.0
      %1049 = vmatprep.subr.mxu0 0.0
      %1050 = vmatpush1.msra.mxu0 0.0
      %1051 = vmatprep.subr.mxu0 0.0
      %1052 = vmatpush1.msra.mxu0 0.0
      %1053 = vmatprep.subr.mxu0 0.0
      %1054 = vmatpush1.msra.mxu0 0.0
      %1055 = vmatprep.subr.mxu0 0.0
      %1056 = vmatpush1.msra.mxu0 0.0
      %1057 = vmatprep.subr.mxu0 0.0
      %1058 = vmatpush1.msra.mxu0 0.0
      %1059 = vmatprep.subr.mxu0 0.0
      %1060 = vmatpush1.msra.mxu0 0.0
      %1061 = vmatprep.subr.mxu0 0.0
      %1062 = vmatpush1.msra.mxu0 0.0
      %1063 = vmatprep.subr.mxu0 0.0
      %1064 = vmatpush1.msra.mxu0 0.0
      %1065 = vmatprep.subr.mxu0 0.0
      %1066 = vmatpush1.msra.mxu0 0.0
      %1067 = vmatprep.subr.mxu0 0.0
      %1068 = vmatpush1.msra.mxu0 0.0
      %1069 = vmatprep.subr.mxu0 0.0
      %1070 = vmatpush1.msra.mxu0 0.0
      %1071 = vmatprep.subr.mxu0 0.0
      %1072 = vmatpush1.msra.mxu0 0.0
      %1073 = vmatprep.subr.mxu0 0.0
      %1074 = vmatpush1.msra.mxu0 0.0
      %1075 = vmatprep.subr.mxu0 0.0
      %1076 = vmatpush1.msra.mxu0 0.0
      %1077 = vmatprep.subr.mxu0 0.0
      %1078 = vmatpush1.msra.mxu0 0.0
      %1079 = vmatprep.mubr.f32.mxu0 0.0
      %1080 = vmatmul.mubr.f32.gmra.mrb[0].mxu0 %v1010
      %v1081 = vpop.f32.mrb[0].mxu0
      %v1082 = vadd.f32 0.0, %v1081
      %v1083 = vpop.f32.mrb[0].mxu0
      %1084 = vmatprep.mubr.f32.mxu0 0.0
      %1085 = vmatmul.mubr.f32.gmra.mrb[0].mxu0 %v1013
      %v1086 = vpop.f32.mrb[0].mxu0
      %v1087 = vadd.f32 0.0, %v1086
      %v1088 = vpop.f32.mrb[0].mxu0
      %1089 = vdwg.mxu0
      %1090 = vmatprep.subr.mxu0 0.0
      %1091 = vmatpush1.xpose.msra.mxu0 %v417
      %1092 = vmatprep.subr.mxu0 0.0
      %1093 = vmatpush1.xpose.msra.mxu0 %v418
      %1094 = vmatprep.subr.mxu0 0.0
      %1095 = vmatpush1.xpose.msra.mxu0 0.0
      %1096 = vmatprep.subr.mxu0 0.0
      %1097 = vmatpush1.xpose.msra.mxu0 0.0
      %1098 = vmatprep.subr.mxu0 0.0
      %1099 = vmatpush1.xpose.msra.mxu0 0.0
      %1100 = vmatprep.subr.mxu0 0.0
      %1101 = vmatpush1.xpose.msra.mxu0 0.0
      %1102 = vmatprep.subr.mxu0 0.0
      %1103 = vmatpush1.xpose.msra.mxu0 0.0
      %1104 = vmatprep.subr.mxu0 0.0
      %1105 = vmatpush1.xpose.msra.mxu0 0.0
      %1106 = vmatprep.subr.mxu0 0.0
      %1107 = vmatpush1.xpose.msra.mxu0 0.0
      %1108 = vmatprep.subr.mxu0 0.0
      %1109 = vmatpush1.xpose.msra.mxu0 0.0
      %1110 = vmatprep.subr.mxu0 0.0
      %1111 = vmatpush1.xpose.msra.mxu0 0.0
      %1112 = vmatprep.subr.mxu0 0.0
      %1113 = vmatpush1.xpose.msra.mxu0 0.0
      %1114 = vmatprep.subr.mxu0 0.0
      %1115 = vmatpush1.xpose.msra.mxu0 0.0
      %1116 = vmatprep.subr.mxu0 0.0
      %1117 = vmatpush1.xpose.msra.mxu0 0.0
      %1118 = vmatprep.subr.mxu0 0.0
      %1119 = vmatpush1.xpose.msra.mxu0 0.0
      %1120 = vmatprep.subr.mxu0 0.0
      %1121 = vmatpush1.xpose.msra.mxu0 0.0
      %1122 = vmatprep.subr.mxu0 0.0
      %1123 = vmatpush1.xpose.msra.mxu0 0.0
      %1124 = vmatprep.subr.mxu0 0.0
      %1125 = vmatpush1.xpose.msra.mxu0 0.0
      %1126 = vmatprep.subr.mxu0 0.0
      %1127 = vmatpush1.xpose.msra.mxu0 0.0
      %1128 = vmatprep.subr.mxu0 0.0
      %1129 = vmatpush1.xpose.msra.mxu0 0.0
      %1130 = vmatprep.subr.mxu0 0.0
      %1131 = vmatpush1.xpose.msra.mxu0 0.0
      %1132 = vmatprep.subr.mxu0 0.0
      %1133 = vmatpush1.xpose.msra.mxu0 0.0
      %1134 = vmatprep.subr.mxu0 0.0
      %1135 = vmatpush1.xpose.msra.mxu0 0.0
      %1136 = vmatprep.subr.mxu0 0.0
      %1137 = vmatpush1.xpose.msra.mxu0 0.0
      %1138 = vmatprep.subr.mxu0 0.0
      %1139 = vmatpush1.xpose.msra.mxu0 0.0
      %1140 = vmatprep.subr.mxu0 0.0
      %1141 = vmatpush1.xpose.msra.mxu0 0.0
      %1142 = vmatprep.subr.mxu0 0.0
      %1143 = vmatpush1.xpose.msra.mxu0 0.0
      %1144 = vmatprep.subr.mxu0 0.0
      %1145 = vmatpush1.xpose.msra.mxu0 0.0
      %1146 = vmatprep.subr.mxu0 0.0
      %1147 = vmatpush1.xpose.msra.mxu0 0.0
      %1148 = vmatprep.subr.mxu0 0.0
      %1149 = vmatpush1.xpose.msra.mxu0 0.0
      %1150 = vmatprep.subr.mxu0 0.0
      %1151 = vmatpush1.xpose.msra.mxu0 0.0
      %1152 = vmatprep.subr.mxu0 0.0
      %1153 = vmatpush1.xpose.msra.mxu0 0.0
      %1154 = vmatprep.mubr.f32.mxu0 0.0
      %1155 = vmatmul.mubr.f32.gmra.mrb[0].mxu0 %v627
      %v1156 = vpop.f32.mrb[0].mxu0
      %v1157 = vadd.f32 0.0, %v1156
      %v1158 = vpop.f32.mrb[0].mxu0
      %1159 = vmatprep.mubr.f32.mxu0 0.0
      %1160 = vmatmul.mubr.f32.gmra.mrb[0].mxu0 %v633
      %v1161 = vpop.f32.mrb[0].mxu0
      %v1162 = vadd.f32 0.0, %v1161
      %v1163 = vpop.f32.mrb[0].mxu0
      %1164 = vdwg.mxu0
      %v1165 = vmul.f32 %v627, %v417
      %v1166 = vmul.f32 %v633, %v418
      %1167 = vadd.xlane.f32.xlu0 %v1165
      %v1168 = vpop.xlane.xlu0 %1167
      %1169 = vadd.xlane.f32.xlu0 %v1166
      %v1170 = vpop.xlane.xlu0 %1169
      %v1171 = vmul.f32 %v1157, 2.0
      %v1172 = vmul.f32 %v1162, 2.0
      %v1173 = vsub.f32 %v1171, %v1168
      %v1174 = vsub.f32 %v1172, %v1170
      %1175 = vxpose.xlu0.b32.start [1/16] %v1168, 128
      %1176 = vxpose.xlu0.b32.cont [2/16] %v1170, 128
      %1177 = vxpose.xlu0.b32.cont [3/16] 0.0, 128
      %1178 = vxpose.xlu0.b32.cont [4/16] 0.0, 128
      %1179 = vxpose.xlu0.b32.cont [5/16] 0.0, 128
      %1180 = vxpose.xlu0.b32.cont [6/16] 0.0, 128
      %1181 = vxpose.xlu0.b32.cont [7/16] 0.0, 128
      %1182 = vxpose.xlu0.b32.cont [8/16] 0.0, 128
      %1183 = vxpose.xlu0.b32.cont [9/16] 0.0, 128
      %1184 = vxpose.xlu0.b32.cont [10/16] 0.0, 128
      %1185 = vxpose.xlu0.b32.cont [11/16] 0.0, 128
      %1186 = vxpose.xlu0.b32.cont [12/16] 0.0, 128
      %1187 = vxpose.xlu0.b32.cont [13/16] 0.0, 128
      %1188 = vxpose.xlu0.b32.cont [14/16] 0.0, 128
      %1189 = vxpose.xlu0.b32.cont [15/16] 0.0, 128
      %1190 = vxpose.xlu0.b32.end [16/16] 0.0, 128
      %v1191 = vpop.trf.xlu0
      %v1192 = vpop.trf.xlu0
      %v1193 = vpop.trf.xlu0
      %v1194 = vpop.trf.xlu0
      %v1195 = vpop.trf.xlu0
      %v1196 = vpop.trf.xlu0
      %v1197 = vpop.trf.xlu0
      %v1198 = vpop.trf.xlu0
      %v1199 = vpop.trf.xlu0
      %v1200 = vpop.trf.xlu0
      %v1201 = vpop.trf.xlu0
      %v1202 = vpop.trf.xlu0
      %v1203 = vpop.trf.xlu0
      %v1204 = vpop.trf.xlu0
      %v1205 = vpop.trf.xlu0
      %v1206 = vpop.trf.xlu0
      %v1207 = vlaneseq
      %v1208 = vshrl.u32 %v1207, 7
      %v1209 = vsub.s32 0, %v1208
      %v1210 = vrot.slane %v1191, %v1209
      %v1211 = vsub.f32 %v1173, %v1210
      %v1212 = vsub.f32 %v1174, %v1210
      %v1213 = vsel %vm760, %v1211, -inf
      %1214 = vmax.xlane.f32.xlu0 %v1213
      %v1215 = vpop.xlane.xlu0 %1214
      %v1216 = vsel %vm760, %v1212, -inf
      %1217 = vmax.xlane.f32.xlu0 %v1216
      %v1218 = vpop.xlane.xlu0 %1217
      %v1219 = vsub.f32 %v1211, %v1215
      %v1220 = vsub.f32 %v1212, %v1218
      %v1221 = vmul.f32 %v1219, 1.442695
      %v1222 = vpow.pop %v1221
      %v1223 = vmul.f32 %v1220, 1.442695
      %v1224 = vpow.pop %v1223
      %v1225 = vsel %vm760, %v1222, 0.0
      %1226 = vadd.xlane.f32.xlu0 %v1225
      %v1227 = vpop.xlane.xlu0 %1226
      %v1228 = vsel %vm760, %v1224, 0.0
      %1229 = vadd.xlane.f32.xlu0 %v1228
      %v1230 = vpop.xlane.xlu0 %1229
      %v1231 = vrcp.pop %v1227
      %v1232 = vrcp.pop %v1230
      %v1233 = vmul.f32 %v1222, %v1231
      %v1234 = vmul.f32 %v1224, %v1232
      %v1236 = vsel %vm760, %v1233, 0
      %v1239 = vsel %vm760, %v1234, 0
      %1241 = vmatprep.subr.mxu0 0.0
      %1242 = vmatpush1.msra.mxu0 %v627
      %1243 = vmatprep.subr.mxu0 0.0
      %1244 = vmatpush1.msra.mxu0 %v633
      %1245 = vmatprep.subr.mxu0 0.0
      %1246 = vmatpush1.msra.mxu0 0.0
      %1247 = vmatprep.subr.mxu0 0.0
      %1248 = vmatpush1.msra.mxu0 0.0
      %1249 = vmatprep.subr.mxu0 0.0
      %1250 = vmatpush1.msra.mxu0 0.0
      %1251 = vmatprep.subr.mxu0 0.0
      %1252 = vmatpush1.msra.mxu0 0.0
      %1253 = vmatprep.subr.mxu0 0.0
      %1254 = vmatpush1.msra.mxu0 0.0
      %1255 = vmatprep.subr.mxu0 0.0
      %1256 = vmatpush1.msra.mxu0 0.0
      %1257 = vmatprep.subr.mxu0 0.0
      %1258 = vmatpush1.msra.mxu0 0.0
      %1259 = vmatprep.subr.mxu0 0.0
      %1260 = vmatpush1.msra.mxu0 0.0
      %1261 = vmatprep.subr.mxu0 0.0
      %1262 = vmatpush1.msra.mxu0 0.0
      %1263 = vmatprep.subr.mxu0 0.0
      %1264 = vmatpush1.msra.mxu0 0.0
      %1265 = vmatprep.subr.mxu0 0.0
      %1266 = vmatpush1.msra.mxu0 0.0
      %1267 = vmatprep.subr.mxu0 0.0
      %1268 = vmatpush1.msra.mxu0 0.0
      %1269 = vmatprep.subr.mxu0 0.0
      %1270 = vmatpush1.msra.mxu0 0.0
      %1271 = vmatprep.subr.mxu0 0.0
      %1272 = vmatpush1.msra.mxu0 0.0
      %1273 = vmatprep.subr.mxu0 0.0
      %1274 = vmatpush1.msra.mxu0 0.0
      %1275 = vmatprep.subr.mxu0 0.0
      %1276 = vmatpush1.msra.mxu0 0.0
      %1277 = vmatprep.subr.mxu0 0.0
      %1278 = vmatpush1.msra.mxu0 0.0
      %1279 = vmatprep.subr.mxu0 0.0
      %1280 = vmatpush1.msra.mxu0 0.0
      %1281 = vmatprep.subr.mxu0 0.0
      %1282 = vmatpush1.msra.mxu0 0.0
      %1283 = vmatprep.subr.mxu0 0.0
      %1284 = vmatpush1.msra.mxu0 0.0
      %1285 = vmatprep.subr.mxu0 0.0
      %1286 = vmatpush1.msra.mxu0 0.0
      %1287 = vmatprep.subr.mxu0 0.0
      %1288 = vmatpush1.msra.mxu0 0.0
      %1289 = vmatprep.subr.mxu0 0.0
      %1290 = vmatpush1.msra.mxu0 0.0
      %1291 = vmatprep.subr.mxu0 0.0
      %1292 = vmatpush1.msra.mxu0 0.0
      %1293 = vmatprep.subr.mxu0 0.0
      %1294 = vmatpush1.msra.mxu0 0.0
      %1295 = vmatprep.subr.mxu0 0.0
      %1296 = vmatpush1.msra.mxu0 0.0
      %1297 = vmatprep.subr.mxu0 0.0
      %1298 = vmatpush1.msra.mxu0 0.0
      %1299 = vmatprep.subr.mxu0 0.0
      %1300 = vmatpush1.msra.mxu0 0.0
      %1301 = vmatprep.subr.mxu0 0.0
      %1302 = vmatpush1.msra.mxu0 0.0
      %1303 = vmatprep.subr.mxu0 0.0
      %1304 = vmatpush1.msra.mxu0 0.0
      %1305 = vmatprep.mubr.f32.mxu0 0.0
      %1306 = vmatmul.mubr.f32.gmra.mrb[0].mxu0 %v1236
      %v1307 = vpop.f32.mrb[0].mxu0
      %v1308 = vadd.f32 0.0, %v1307
      %v1309 = vpop.f32.mrb[0].mxu0
      %1310 = vmatprep.mubr.f32.mxu0 0.0
      %1311 = vmatmul.mubr.f32.gmra.mrb[0].mxu0 %v1239
      %v1312 = vpop.f32.mrb[0].mxu0
      %v1313 = vadd.f32 0.0, %v1312
      %v1314 = vpop.f32.mrb[0].mxu0
      %1315 = vdwg.mxu0
      %1316 = vmatprep.subr.mxu0 0.0
      %1317 = vmatpush1.xpose.msra.mxu0 %v417
      %1318 = vmatprep.subr.mxu0 0.0
      %1319 = vmatpush1.xpose.msra.mxu0 %v418
      %1320 = vmatprep.subr.mxu0 0.0
      %1321 = vmatpush1.xpose.msra.mxu0 0.0
      %1322 = vmatprep.subr.mxu0 0.0
      %1323 = vmatpush1.xpose.msra.mxu0 0.0
      %1324 = vmatprep.subr.mxu0 0.0
      %1325 = vmatpush1.xpose.msra.mxu0 0.0
      %1326 = vmatprep.subr.mxu0 0.0
      %1327 = vmatpush1.xpose.msra.mxu0 0.0
      %1328 = vmatprep.subr.mxu0 0.0
      %1329 = vmatpush1.xpose.msra.mxu0 0.0
      %1330 = vmatprep.subr.mxu0 0.0
      %1331 = vmatpush1.xpose.msra.mxu0 0.0
      %1332 = vmatprep.subr.mxu0 0.0
      %1333 = vmatpush1.xpose.msra.mxu0 0.0
      %1334 = vmatprep.subr.mxu0 0.0
      %1335 = vmatpush1.xpose.msra.mxu0 0.0
      %1336 = vmatprep.subr.mxu0 0.0
      %1337 = vmatpush1.xpose.msra.mxu0 0.0
      %1338 = vmatprep.subr.mxu0 0.0
      %1339 = vmatpush1.xpose.msra.mxu0 0.0
      %1340 = vmatprep.subr.mxu0 0.0
      %1341 = vmatpush1.xpose.msra.mxu0 0.0
      %1342 = vmatprep.subr.mxu0 0.0
      %1343 = vmatpush1.xpose.msra.mxu0 0.0
      %1344 = vmatprep.subr.mxu0 0.0
      %1345 = vmatpush1.xpose.msra.mxu0 0.0
      %1346 = vmatprep.subr.mxu0 0.0
      %1347 = vmatpush1.xpose.msra.mxu0 0.0
      %1348 = vmatprep.subr.mxu0 0.0
      %1349 = vmatpush1.xpose.msra.mxu0 0.0
      %1350 = vmatprep.subr.mxu0 0.0
      %1351 = vmatpush1.xpose.msra.mxu0 0.0
      %1352 = vmatprep.subr.mxu0 0.0
      %1353 = vmatpush1.xpose.msra.mxu0 0.0
      %1354 = vmatprep.subr.mxu0 0.0
      %1355 = vmatpush1.xpose.msra.mxu0 0.0
      %1356 = vmatprep.subr.mxu0 0.0
      %1357 = vmatpush1.xpose.msra.mxu0 0.0
      %1358 = vmatprep.subr.mxu0 0.0
      %1359 = vmatpush1.xpose.msra.mxu0 0.0
      %1360 = vmatprep.subr.mxu0 0.0
      %1361 = vmatpush1.xpose.msra.mxu0 0.0
      %1362 = vmatprep.subr.mxu0 0.0
      %1363 = vmatpush1.xpose.msra.mxu0 0.0
      %1364 = vmatprep.subr.mxu0 0.0
      %1365 = vmatpush1.xpose.msra.mxu0 0.0
      %1366 = vmatprep.subr.mxu0 0.0
      %1367 = vmatpush1.xpose.msra.mxu0 0.0
      %1368 = vmatprep.subr.mxu0 0.0
      %1369 = vmatpush1.xpose.msra.mxu0 0.0
      %1370 = vmatprep.subr.mxu0 0.0
      %1371 = vmatpush1.xpose.msra.mxu0 0.0
      %1372 = vmatprep.subr.mxu0 0.0
      %1373 = vmatpush1.xpose.msra.mxu0 0.0
      %1374 = vmatprep.subr.mxu0 0.0
      %1375 = vmatpush1.xpose.msra.mxu0 0.0
      %1376 = vmatprep.subr.mxu0 0.0
      %1377 = vmatpush1.xpose.msra.mxu0 0.0
      %1378 = vmatprep.subr.mxu0 0.0
      %1379 = vmatpush1.xpose.msra.mxu0 0.0
      %1380 = vmatprep.mubr.f32.mxu0 0.0
      %1381 = vmatmul.mubr.f32.gmra.mrb[0].mxu0 %v629
      %v1382 = vpop.f32.mrb[0].mxu0
      %v1383 = vadd.f32 0.0, %v1382
      %v1384 = vpop.f32.mrb[0].mxu0
      %1385 = vmatprep.mubr.f32.mxu0 0.0
      %1386 = vmatmul.mubr.f32.gmra.mrb[0].mxu0 %v635
      %v1387 = vpop.f32.mrb[0].mxu0
      %v1388 = vadd.f32 0.0, %v1387
      %v1389 = vpop.f32.mrb[0].mxu0
      %1390 = vdwg.mxu0
      %v1391 = vmul.f32 %v629, %v417
      %v1392 = vmul.f32 %v635, %v418
      %1393 = vadd.xlane.f32.xlu0 %v1391
      %v1394 = vpop.xlane.xlu0 %1393
      %1395 = vadd.xlane.f32.xlu0 %v1392
      %v1396 = vpop.xlane.xlu0 %1395
      %v1397 = vmul.f32 %v1383, 2.0
      %v1398 = vmul.f32 %v1388, 2.0
      %v1399 = vsub.f32 %v1397, %v1394
      %v1400 = vsub.f32 %v1398, %v1396
      %1401 = vxpose.xlu0.b32.start [1/16] %v1394, 128
      %1402 = vxpose.xlu0.b32.cont [2/16] %v1396, 128
      %1403 = vxpose.xlu0.b32.cont [3/16] 0.0, 128
      %1404 = vxpose.xlu0.b32.cont [4/16] 0.0, 128
      %1405 = vxpose.xlu0.b32.cont [5/16] 0.0, 128
      %1406 = vxpose.xlu0.b32.cont [6/16] 0.0, 128
      %1407 = vxpose.xlu0.b32.cont [7/16] 0.0, 128
      %1408 = vxpose.xlu0.b32.cont [8/16] 0.0, 128
      %1409 = vxpose.xlu0.b32.cont [9/16] 0.0, 128
      %1410 = vxpose.xlu0.b32.cont [10/16] 0.0, 128
      %1411 = vxpose.xlu0.b32.cont [11/16] 0.0, 128
      %1412 = vxpose.xlu0.b32.cont [12/16] 0.0, 128
      %1413 = vxpose.xlu0.b32.cont [13/16] 0.0, 128
      %1414 = vxpose.xlu0.b32.cont [14/16] 0.0, 128
      %1415 = vxpose.xlu0.b32.cont [15/16] 0.0, 128
      %1416 = vxpose.xlu0.b32.end [16/16] 0.0, 128
      %v1417 = vpop.trf.xlu0
      %v1418 = vpop.trf.xlu0
      %v1419 = vpop.trf.xlu0
      %v1420 = vpop.trf.xlu0
      %v1421 = vpop.trf.xlu0
      %v1422 = vpop.trf.xlu0
      %v1423 = vpop.trf.xlu0
      %v1424 = vpop.trf.xlu0
      %v1425 = vpop.trf.xlu0
      %v1426 = vpop.trf.xlu0
      %v1427 = vpop.trf.xlu0
      %v1428 = vpop.trf.xlu0
      %v1429 = vpop.trf.xlu0
      %v1430 = vpop.trf.xlu0
      %v1431 = vpop.trf.xlu0
      %v1432 = vpop.trf.xlu0
      %v1433 = vlaneseq
      %v1434 = vshrl.u32 %v1433, 7
      %v1435 = vsub.s32 0, %v1434
      %v1436 = vrot.slane %v1417, %v1435
      %v1437 = vsub.f32 %v1399, %v1436
      %v1438 = vsub.f32 %v1400, %v1436
      %v1439 = vsel %vm760, %v1437, -inf
      %1440 = vmax.xlane.f32.xlu0 %v1439
      %v1441 = vpop.xlane.xlu0 %1440
      %v1442 = vsel %vm760, %v1438, -inf
      %1443 = vmax.xlane.f32.xlu0 %v1442
      %v1444 = vpop.xlane.xlu0 %1443
      %v1445 = vsub.f32 %v1437, %v1441
      %v1446 = vsub.f32 %v1438, %v1444
      %v1447 = vmul.f32 %v1445, 1.442695
      %v1448 = vpow.pop %v1447
      %v1449 = vmul.f32 %v1446, 1.442695
      %v1450 = vpow.pop %v1449
      %v1451 = vsel %vm760, %v1448, 0.0
      %1452 = vadd.xlane.f32.xlu0 %v1451
      %v1453 = vpop.xlane.xlu0 %1452
      %v1454 = vsel %vm760, %v1450, 0.0
      %1455 = vadd.xlane.f32.xlu0 %v1454
      %v1456 = vpop.xlane.xlu0 %1455
      %v1457 = vrcp.pop %v1453
      %v1458 = vrcp.pop %v1456
      %v1459 = vmul.f32 %v1448, %v1457
      %v1460 = vmul.f32 %v1450, %v1458
      %v1462 = vsel %vm760, %v1459, 0
      %v1465 = vsel %vm760, %v1460, 0
      %1467 = vmatprep.subr.mxu0 0.0
      %1468 = vmatpush1.msra.mxu0 %v629
      %1469 = vmatprep.subr.mxu0 0.0
      %1470 = vmatpush1.msra.mxu0 %v635
      %1471 = vmatprep.subr.mxu0 0.0
      %1472 = vmatpush1.msra.mxu0 0.0
      %1473 = vmatprep.subr.mxu0 0.0
      %1474 = vmatpush1.msra.mxu0 0.0
      %1475 = vmatprep.subr.mxu0 0.0
      %1476 = vmatpush1.msra.mxu0 0.0
      %1477 = vmatprep.subr.mxu0 0.0
      %1478 = vmatpush1.msra.mxu0 0.0
      %1479 = vmatprep.subr.mxu0 0.0
      %1480 = vmatpush1.msra.mxu0 0.0
      %1481 = vmatprep.subr.mxu0 0.0
      %1482 = vmatpush1.msra.mxu0 0.0
      %1483 = vmatprep.subr.mxu0 0.0
      %1484 = vmatpush1.msra.mxu0 0.0
      %1485 = vmatprep.subr.mxu0 0.0
      %1486 = vmatpush1.msra.mxu0 0.0
      %1487 = vmatprep.subr.mxu0 0.0
      %1488 = vmatpush1.msra.mxu0 0.0
      %1489 = vmatprep.subr.mxu0 0.0
      %1490 = vmatpush1.msra.mxu0 0.0
      %1491 = vmatprep.subr.mxu0 0.0
      %1492 = vmatpush1.msra.mxu0 0.0
      %1493 = vmatprep.subr.mxu0 0.0
      %1494 = vmatpush1.msra.mxu0 0.0
      %1495 = vmatprep.subr.mxu0 0.0
      %1496 = vmatpush1.msra.mxu0 0.0
      %1497 = vmatprep.subr.mxu0 0.0
      %1498 = vmatpush1.msra.mxu0 0.0
      %1499 = vmatprep.subr.mxu0 0.0
      %1500 = vmatpush1.msra.mxu0 0.0
      %1501 = vmatprep.subr.mxu0 0.0
      %1502 = vmatpush1.msra.mxu0 0.0
      %1503 = vmatprep.subr.mxu0 0.0
      %1504 = vmatpush1.msra.mxu0 0.0
      %1505 = vmatprep.subr.mxu0 0.0
      %1506 = vmatpush1.msra.mxu0 0.0
      %1507 = vmatprep.subr.mxu0 0.0
      %1508 = vmatpush1.msra.mxu0 0.0
      %1509 = vmatprep.subr.mxu0 0.0
      %1510 = vmatpush1.msra.mxu0 0.0
      %1511 = vmatprep.subr.mxu0 0.0
      %1512 = vmatpush1.msra.mxu0 0.0
      %1513 = vmatprep.subr.mxu0 0.0
      %1514 = vmatpush1.msra.mxu0 0.0
      %1515 = vmatprep.subr.mxu0 0.0
      %1516 = vmatpush1.msra.mxu0 0.0
      %1517 = vmatprep.subr.mxu0 0.0
      %1518 = vmatpush1.msra.mxu0 0.0
      %1519 = vmatprep.subr.mxu0 0.0
      %1520 = vmatpush1.msra.mxu0 0.0
      %1521 = vmatprep.subr.mxu0 0.0
      %1522 = vmatpush1.msra.mxu0 0.0
      %1523 = vmatprep.subr.mxu0 0.0
      %1524 = vmatpush1.msra.mxu0 0.0
      %1525 = vmatprep.subr.mxu0 0.0
      %1526 = vmatpush1.msra.mxu0 0.0
      %1527 = vmatprep.subr.mxu0 0.0
      %1528 = vmatpush1.msra.mxu0 0.0
      %1529 = vmatprep.subr.mxu0 0.0
      %1530 = vmatpush1.msra.mxu0 0.0
      %1531 = vmatprep.mubr.f32.mxu0 0.0
      %1532 = vmatmul.mubr.f32.gmra.mrb[0].mxu0 %v1462
      %v1533 = vpop.f32.mrb[0].mxu0
      %v1534 = vadd.f32 0.0, %v1533
      %v1535 = vpop.f32.mrb[0].mxu0
      %1536 = vmatprep.mubr.f32.mxu0 0.0
      %1537 = vmatmul.mubr.f32.gmra.mrb[0].mxu0 %v1465
      %v1538 = vpop.f32.mrb[0].mxu0
      %v1539 = vadd.f32 0.0, %v1538
      %v1540 = vpop.f32.mrb[0].mxu0
      %1541 = vdwg.mxu0
      %v1542 = vld [vmem:[%s2] sm:$0xff]
      %v1543 = vld [vmem:[%s2 + $0x8] sm:$0xff]
      %v1544 = vld [vmem:[%s2 + $0x10] sm:$0xff]
      %v1545 = vld [vmem:[%s2 + $0x18] sm:$0xff]
      %v1546 = vld [vmem:[%s2 + $0x20] sm:$0xff]
      %v1547 = vld [vmem:[%s2 + $0x28] sm:$0xff]
      %v1548 = vld [vmem:[%s2 + $0x30] sm:$0xff]
      %v1549 = vld [vmem:[%s2 + $0x38] sm:$0xff]
      %v1550 = vld [vmem:[%s2 + $0x40] sm:$0xff]
      %v1551 = vld [vmem:[%s2 + $0x48] sm:$0xff]
      %v1552 = vld [vmem:[%s2 + $0x50] sm:$0xff]
      %v1553 = vld [vmem:[%s2 + $0x58] sm:$0xff]
      %v1554 = vld [vmem:[%s2 + $0x60] sm:$0xff]
      %v1555 = vld [vmem:[%s2 + $0x68] sm:$0xff]
      %v1556 = vld [vmem:[%s2 + $0x70] sm:$0xff]
      %v1557 = vld [vmem:[%s2 + $0x78] sm:$0xff]
      %v1558 = vld [vmem:[%s2 + $0x80] sm:$0xff]
      %v1559 = vld [vmem:[%s2 + $0x88] sm:$0xff]
      %v1560 = vld [vmem:[%s2 + $0x90] sm:$0xff]
      %v1561 = vld [vmem:[%s2 + $0x98] sm:$0xff]
      %v1562 = vld [vmem:[%s2 + $0xa0] sm:$0xff]
      %v1563 = vld [vmem:[%s2 + $0xa8] sm:$0xff]
      %v1564 = vld [vmem:[%s2 + $0xb0] sm:$0xff]
      %v1565 = vld [vmem:[%s2 + $0xb8] sm:$0xff]
      %v1566 = vld [vmem:[%s2 + $0xc0] sm:$0xff]
      %v1567 = vld [vmem:[%s2 + $0xc8] sm:$0xff]
      %v1568 = vld [vmem:[%s2 + $0xd0] sm:$0xff]
      %v1569 = vld [vmem:[%s2 + $0xd8] sm:$0xff]
      %v1570 = vld [vmem:[%s2 + $0xe0] sm:$0xff]
      %v1571 = vld [vmem:[%s2 + $0xe8] sm:$0xff]
      %v1572 = vld [vmem:[%s2 + $0xf0] sm:$0xff]
      %v1573 = vld [vmem:[%s2 + $0xf8] sm:$0xff]
      %v1574 = vld [vmem:[%s2 + $0x100] sm:$0xff]
      %v1575 = vld [vmem:[%s2 + $0x108] sm:$0xff]
      %v1576 = vld [vmem:[%s2 + $0x110] sm:$0xff]
      %v1577 = vld [vmem:[%s2 + $0x118] sm:$0xff]
      %v1578 = vld [vmem:[%s2 + $0x120] sm:$0xff]
      %v1579 = vld [vmem:[%s2 + $0x128] sm:$0xff]
      %v1580 = vld [vmem:[%s2 + $0x130] sm:$0xff]
      %v1581 = vld [vmem:[%s2 + $0x138] sm:$0xff]
      %v1582 = vld [vmem:[%s2 + $0x140] sm:$0xff]
      %v1583 = vld [vmem:[%s2 + $0x148] sm:$0xff]
      %v1584 = vld [vmem:[%s2 + $0x150] sm:$0xff]
      %v1585 = vld [vmem:[%s2 + $0x158] sm:$0xff]
      %v1586 = vld [vmem:[%s2 + $0x160] sm:$0xff]
      %v1587 = vld [vmem:[%s2 + $0x168] sm:$0xff]
      %v1588 = vld [vmem:[%s2 + $0x170] sm:$0xff]
      %v1589 = vld [vmem:[%s2 + $0x178] sm:$0xff]
      %v1590 = vld [vmem:[%s2 + $0x180] sm:$0xff]
      %v1591 = vld [vmem:[%s2 + $0x188] sm:$0xff]
      %v1592 = vld [vmem:[%s2 + $0x190] sm:$0xff]
      %v1593 = vld [vmem:[%s2 + $0x198] sm:$0xff]
      %v1594 = vld [vmem:[%s2 + $0x1a0] sm:$0xff]
      %v1595 = vld [vmem:[%s2 + $0x1a8] sm:$0xff]
      %v1596 = vld [vmem:[%s2 + $0x1b0] sm:$0xff]
      %v1597 = vld [vmem:[%s2 + $0x1b8] sm:$0xff]
      %v1598 = vld [vmem:[%s2 + $0x1c0] sm:$0xff]
      %v1599 = vld [vmem:[%s2 + $0x1c8] sm:$0xff]
      %v1600 = vld [vmem:[%s2 + $0x1d0] sm:$0xff]
      %v1601 = vld [vmem:[%s2 + $0x1d8] sm:$0xff]
      %v1602 = vld [vmem:[%s2 + $0x1e0] sm:$0xff]
      %v1603 = vld [vmem:[%s2 + $0x1e8] sm:$0xff]
      %v1604 = vld [vmem:[%s2 + $0x1f0] sm:$0xff]
      %v1605 = vld [vmem:[%s2 + $0x1f8] sm:$0xff]
      %v1606 = vld [vmem:[%s3] sm:$0x1]
      %v1608 = vlaneseq
      %v1609 = vshrl.u32 %v1608, 7
      %v1610 = vsub.s32 0, %v1609
      %v1611 = vrot.slane %v1606, %v1610
      %1613 = vmatprep.subr.mxu0 0.0
      %1614 = vmatpush1.msra.mxu0 %v1542
      %1615 = vmatprep.subr.mxu0 0.0
      %1616 = vmatpush1.msra.mxu0 %v1543
      %1617 = vmatprep.subr.mxu0 0.0
      %1618 = vmatpush1.msra.mxu0 %v1544
      %1619 = vmatprep.subr.mxu0 0.0
      %1620 = vmatpush1.msra.mxu0 %v1545
      %1621 = vmatprep.subr.mxu0 0.0
      %1622 = vmatpush1.msra.mxu0 %v1546
      %1623 = vmatprep.subr.mxu0 0.0
      %1624 = vmatpush1.msra.mxu0 %v1547
      %1625 = vmatprep.subr.mxu0 0.0
      %1626 = vmatpush1.msra.mxu0 %v1548
      %1627 = vmatprep.subr.mxu0 0.0
      %1628 = vmatpush1.msra.mxu0 %v1549
      %1629 = vmatprep.subr.mxu0 0.0
      %1630 = vmatpush1.msra.mxu0 %v1550
      %1631 = vmatprep.subr.mxu0 0.0
      %1632 = vmatpush1.msra.mxu0 %v1551
      %1633 = vmatprep.subr.mxu0 0.0
      %1634 = vmatpush1.msra.mxu0 %v1552
      %1635 = vmatprep.subr.mxu0 0.0
      %1636 = vmatpush1.msra.mxu0 %v1553
      %1637 = vmatprep.subr.mxu0 0.0
      %1638 = vmatpush1.msra.mxu0 %v1554
      %1639 = vmatprep.subr.mxu0 0.0
      %1640 = vmatpush1.msra.mxu0 %v1555
      %1641 = vmatprep.subr.mxu0 0.0
      %1642 = vmatpush1.msra.mxu0 %v1556
      %1643 = vmatprep.subr.mxu0 0.0
      %1644 = vmatpush1.msra.mxu0 %v1557
      %1645 = vmatprep.subr.mxu0 0.0
      %1646 = vmatpush1.msra.mxu0 %v1558
      %1647 = vmatprep.subr.mxu0 0.0
      %1648 = vmatpush1.msra.mxu0 %v1559
      %1649 = vmatprep.subr.mxu0 0.0
      %1650 = vmatpush1.msra.mxu0 %v1560
      %1651 = vmatprep.subr.mxu0 0.0
      %1652 = vmatpush1.msra.mxu0 %v1561
      %1653 = vmatprep.subr.mxu0 0.0
      %1654 = vmatpush1.msra.mxu0 %v1562
      %1655 = vmatprep.subr.mxu0 0.0
      %1656 = vmatpush1.msra.mxu0 %v1563
      %1657 = vmatprep.subr.mxu0 0.0
      %1658 = vmatpush1.msra.mxu0 %v1564
      %1659 = vmatprep.subr.mxu0 0.0
      %1660 = vmatpush1.msra.mxu0 %v1565
      %1661 = vmatprep.subr.mxu0 0.0
      %1662 = vmatpush1.msra.mxu0 %v1566
      %1663 = vmatprep.subr.mxu0 0.0
      %1664 = vmatpush1.msra.mxu0 %v1567
      %1665 = vmatprep.subr.mxu0 0.0
      %1666 = vmatpush1.msra.mxu0 %v1568
      %1667 = vmatprep.subr.mxu0 0.0
      %1668 = vmatpush1.msra.mxu0 %v1569
      %1669 = vmatprep.subr.mxu0 0.0
      %1670 = vmatpush1.msra.mxu0 %v1570
      %1671 = vmatprep.subr.mxu0 0.0
      %1672 = vmatpush1.msra.mxu0 %v1571
      %1673 = vmatprep.subr.mxu0 0.0
      %1674 = vmatpush1.msra.mxu0 %v1572
      %1675 = vmatprep.subr.mxu0 0.0
      %1676 = vmatpush1.msra.mxu0 %v1573
      %1677 = vmatprep.mubr.f32.mxu0 %v1082
      %1678 = vmatmul.mubr.f32.gmra.mrb[0].mxu0 %v856
      %v1679 = vpop.f32.mrb[0].mxu0
      %v1680 = vadd.f32 %v1611, %v1679
      %v1681 = vpop.f32.mrb[0].mxu0
      %1682 = vmatprep.mubr.f32.mxu0 %v1087
      %1683 = vmatmul.mubr.f32.gmra.mrb[0].mxu0 %v861
      %v1684 = vpop.f32.mrb[0].mxu0
      %v1685 = vadd.f32 %v1611, %v1684
      %v1686 = vpop.f32.mrb[0].mxu0
      %1687 = vdwg.mxu0
      %1688 = vmatprep.subr.mxu0 0.0
      %1689 = vmatpush1.msra.mxu0 %v1574
      %1690 = vmatprep.subr.mxu0 0.0
      %1691 = vmatpush1.msra.mxu0 %v1575
      %1692 = vmatprep.subr.mxu0 0.0
      %1693 = vmatpush1.msra.mxu0 %v1576
      %1694 = vmatprep.subr.mxu0 0.0
      %1695 = vmatpush1.msra.mxu0 %v1577
      %1696 = vmatprep.subr.mxu0 0.0
      %1697 = vmatpush1.msra.mxu0 %v1578
      %1698 = vmatprep.subr.mxu0 0.0
      %1699 = vmatpush1.msra.mxu0 %v1579
      %1700 = vmatprep.subr.mxu0 0.0
      %1701 = vmatpush1.msra.mxu0 %v1580
      %1702 = vmatprep.subr.mxu0 0.0
      %1703 = vmatpush1.msra.mxu0 %v1581
      %1704 = vmatprep.subr.mxu0 0.0
      %1705 = vmatpush1.msra.mxu0 %v1582
      %1706 = vmatprep.subr.mxu0 0.0
      %1707 = vmatpush1.msra.mxu0 %v1583
      %1708 = vmatprep.subr.mxu0 0.0
      %1709 = vmatpush1.msra.mxu0 %v1584
      %1710 = vmatprep.subr.mxu0 0.0
      %1711 = vmatpush1.msra.mxu0 %v1585
      %1712 = vmatprep.subr.mxu0 0.0
      %1713 = vmatpush1.msra.mxu0 %v1586
      %1714 = vmatprep.subr.mxu0 0.0
      %1715 = vmatpush1.msra.mxu0 %v1587
      %1716 = vmatprep.subr.mxu0 0.0
      %1717 = vmatpush1.msra.mxu0 %v1588
      %1718 = vmatprep.subr.mxu0 0.0
      %1719 = vmatpush1.msra.mxu0 %v1589
      %1720 = vmatprep.subr.mxu0 0.0
      %1721 = vmatpush1.msra.mxu0 %v1590
      %1722 = vmatprep.subr.mxu0 0.0
      %1723 = vmatpush1.msra.mxu0 %v1591
      %1724 = vmatprep.subr.mxu0 0.0
      %1725 = vmatpush1.msra.mxu0 %v1592
      %1726 = vmatprep.subr.mxu0 0.0
      %1727 = vmatpush1.msra.mxu0 %v1593
      %1728 = vmatprep.subr.mxu0 0.0
      %1729 = vmatpush1.msra.mxu0 %v1594
      %1730 = vmatprep.subr.mxu0 0.0
      %1731 = vmatpush1.msra.mxu0 %v1595
      %1732 = vmatprep.subr.mxu0 0.0
      %1733 = vmatpush1.msra.mxu0 %v1596
      %1734 = vmatprep.subr.mxu0 0.0
      %1735 = vmatpush1.msra.mxu0 %v1597
      %1736 = vmatprep.subr.mxu0 0.0
      %1737 = vmatpush1.msra.mxu0 %v1598
      %1738 = vmatprep.subr.mxu0 0.0
      %1739 = vmatpush1.msra.mxu0 %v1599
      %1740 = vmatprep.subr.mxu0 0.0
      %1741 = vmatpush1.msra.mxu0 %v1600
      %1742 = vmatprep.subr.mxu0 0.0
      %1743 = vmatpush1.msra.mxu0 %v1601
      %1744 = vmatprep.subr.mxu0 0.0
      %1745 = vmatpush1.msra.mxu0 %v1602
      %1746 = vmatprep.subr.mxu0 0.0
      %1747 = vmatpush1.msra.mxu0 %v1603
      %1748 = vmatprep.subr.mxu0 0.0
      %1749 = vmatpush1.msra.mxu0 %v1604
      %1750 = vmatprep.subr.mxu0 0.0
      %1751 = vmatpush1.msra.mxu0 %v1605
      %1752 = vmatprep.mubr.f32.mxu0 %v1534
      %1753 = vmatmul.mubr.f32.gmra.mrb[0].mxu0 %v1308
      %v1754 = vpop.f32.mrb[0].mxu0
      %v1755 = vadd.f32 %v1680, %v1754
      %v1756 = vpop.f32.mrb[0].mxu0
      %1757 = vmatprep.mubr.f32.mxu0 %v1539
      %1758 = vmatmul.mubr.f32.gmra.mrb[0].mxu0 %v1313
      %v1759 = vpop.f32.mrb[0].mxu0
      %v1760 = vadd.f32 %v1685, %v1759
      %v1761 = vpop.f32.mrb[0].mxu0
      %1762 = vdwg.mxu0
      %v1763 = vadd.f32 %v417, %v1755
      %v1764 = vadd.f32 %v418, %v1760
      %v1765 = vld [vmem:[%s5] sm:$0x1]
      %v1767 = vlaneseq
      %v1768 = vshrl.u32 %v1767, 7
      %v1769 = vsub.s32 0, %v1768
      %v1770 = vrot.slane %v1765, %v1769
      %v1772 = vadd.f32 %v1763, %v1770
      %v1773 = vadd.f32 %v1764, %v1770
      %v1774 = vld [vmem:[%s4] sm:$0x1]
      %v1776 = vlaneseq
      %v1777 = vshrl.u32 %v1776, 7
      %v1778 = vsub.s32 0, %v1777
      %v1779 = vrot.slane %v1774, %v1778
      %v1781 = vmul.f32 %v1772, %v1779
      %v1782 = vmul.f32 %v1773, %v1779
      %v1783 = vld [vmem:[%s6] sm:$0xff]
      %v1784 = vld [vmem:[%s6 + $0x8] sm:$0xff]
      %v1785 = vld [vmem:[%s6 + $0x10] sm:$0xff]
      %v1786 = vld [vmem:[%s6 + $0x18] sm:$0xff]
      %v1787 = vld [vmem:[%s6 + $0x20] sm:$0xff]
      %v1788 = vld [vmem:[%s6 + $0x28] sm:$0xff]
      %v1789 = vld [vmem:[%s6 + $0x30] sm:$0xff]
      %v1790 = vld [vmem:[%s6 + $0x38] sm:$0xff]
      %v1791 = vld [vmem:[%s6 + $0x40] sm:$0xff]
      %v1792 = vld [vmem:[%s6 + $0x48] sm:$0xff]
      %v1793 = vld [vmem:[%s6 + $0x50] sm:$0xff]
      %v1794 = vld [vmem:[%s6 + $0x58] sm:$0xff]
      %v1795 = vld [vmem:[%s6 + $0x60] sm:$0xff]
      %v1796 = vld [vmem:[%s6 + $0x68] sm:$0xff]
      %v1797 = vld [vmem:[%s6 + $0x70] sm:$0xff]
      %v1798 = vld [vmem:[%s6 + $0x78] sm:$0xff]
      %v1799 = vld [vmem:[%s7] sm:$0x1]
      %v1801 = vlaneseq
      %v1802 = vshrl.u32 %v1801, 7
      %v1803 = vsub.s32 0, %v1802
      %v1804 = vrot.slane %v1799, %v1803
      %1806 = vmatprep.subr.mxu0 0.0
      %1807 = vmatpush1.msra.mxu0 %v1783
      %1808 = vmatprep.subr.mxu0 0.0
      %1809 = vmatpush1.msra.mxu0 %v1784
      %1810 = vmatprep.subr.mxu0 0.0
      %1811 = vmatpush1.msra.mxu0 %v1785
      %1812 = vmatprep.subr.mxu0 0.0
      %1813 = vmatpush1.msra.mxu0 %v1786
      %1814 = vmatprep.subr.mxu0 0.0
      %1815 = vmatpush1.msra.mxu0 %v1787
      %1816 = vmatprep.subr.mxu0 0.0
      %1817 = vmatpush1.msra.mxu0 %v1788
      %1818 = vmatprep.subr.mxu0 0.0
      %1819 = vmatpush1.msra.mxu0 %v1789
      %1820 = vmatprep.subr.mxu0 0.0
      %1821 = vmatpush1.msra.mxu0 %v1790
      %1822 = vmatprep.subr.mxu0 0.0
      %1823 = vmatpush1.msra.mxu0 %v1791
      %1824 = vmatprep.subr.mxu0 0.0
      %1825 = vmatpush1.msra.mxu0 %v1792
      %1826 = vmatprep.subr.mxu0 0.0
      %1827 = vmatpush1.msra.mxu0 %v1793
      %1828 = vmatprep.subr.mxu0 0.0
      %1829 = vmatpush1.msra.mxu0 %v1794
      %1830 = vmatprep.subr.mxu0 0.0
      %1831 = vmatpush1.msra.mxu0 %v1795
      %1832 = vmatprep.subr.mxu0 0.0
      %1833 = vmatpush1.msra.mxu0 %v1796
      %1834 = vmatprep.subr.mxu0 0.0
      %1835 = vmatpush1.msra.mxu0 %v1797
      %1836 = vmatprep.subr.mxu0 0.0
      %1837 = vmatpush1.msra.mxu0 %v1798
      %1838 = vmatprep.subr.mxu0 0.0
      %1839 = vmatpush1.msra.mxu0 0.0
      %1840 = vmatprep.subr.mxu0 0.0
      %1841 = vmatpush1.msra.mxu0 0.0
      %1842 = vmatprep.subr.mxu0 0.0
      %1843 = vmatpush1.msra.mxu0 0.0
      %1844 = vmatprep.subr.mxu0 0.0
      %1845 = vmatpush1.msra.mxu0 0.0
      %1846 = vmatprep.subr.mxu0 0.0
      %1847 = vmatpush1.msra.mxu0 0.0
      %1848 = vmatprep.subr.mxu0 0.0
      %1849 = vmatpush1.msra.mxu0 0.0
      %1850 = vmatprep.subr.mxu0 0.0
      %1851 = vmatpush1.msra.mxu0 0.0
      %1852 = vmatprep.subr.mxu0 0.0
      %1853 = vmatpush1.msra.mxu0 0.0
      %1854 = vmatprep.subr.mxu0 0.0
      %1855 = vmatpush1.msra.mxu0 0.0
      %1856 = vmatprep.subr.mxu0 0.0
      %1857 = vmatpush1.msra.mxu0 0.0
      %1858 = vmatprep.subr.mxu0 0.0
      %1859 = vmatpush1.msra.mxu0 0.0
      %1860 = vmatprep.subr.mxu0 0.0
      %1861 = vmatpush1.msra.mxu0 0.0
      %1862 = vmatprep.subr.mxu0 0.0
      %1863 = vmatpush1.msra.mxu0 0.0
      %1864 = vmatprep.subr.mxu0 0.0
      %1865 = vmatpush1.msra.mxu0 0.0
      %1866 = vmatprep.subr.mxu0 0.0
      %1867 = vmatpush1.msra.mxu0 0.0
      %1868 = vmatprep.subr.mxu0 0.0
      %1869 = vmatpush1.msra.mxu0 0.0
      %1870 = vmatprep.mubr.f32.mxu0 0.0
      %1871 = vmatmul.mubr.f32.gmra.mrb[0].mxu0 %v1781
      %v1872 = vpop.f32.mrb[0].mxu0
      %v1873 = vadd.f32 %v1804, %v1872
      %v1874 = vpop.f32.mrb[0].mxu0
      %1875 = vmatprep.mubr.f32.mxu0 0.0
      %1876 = vmatmul.mubr.f32.gmra.mrb[0].mxu0 %v1782
      %v1877 = vpop.f32.mrb[0].mxu0
      %v1878 = vadd.f32 %v1804, %v1877
      %v1879 = vpop.f32.mrb[0].mxu0
      %1880 = vdwg.mxu0
      %v1881 = vmax.f32 %v1873, 0.0
      %v1882 = vmax.f32 %v1878, 0.0
      %v1883 = vld [vmem:[%s8] sm:$0xff]
      %v1884 = vld [vmem:[%s8 + $0x8] sm:$0xff]
      %v1885 = vld [vmem:[%s8 + $0x10] sm:$0xff]
      %v1886 = vld [vmem:[%s8 + $0x18] sm:$0xff]
      %v1887 = vld [vmem:[%s8 + $0x20] sm:$0xff]
      %v1888 = vld [vmem:[%s8 + $0x28] sm:$0xff]
      %v1889 = vld [vmem:[%s8 + $0x30] sm:$0xff]
      %v1890 = vld [vmem:[%s8 + $0x38] sm:$0xff]
      %v1891 = vld [vmem:[%s8 + $0x40] sm:$0xff]
      %v1892 = vld [vmem:[%s8 + $0x48] sm:$0xff]
      %v1893 = vld [vmem:[%s8 + $0x50] sm:$0xff]
      %v1894 = vld [vmem:[%s8 + $0x58] sm:$0xff]
      %v1895 = vld [vmem:[%s8 + $0x60] sm:$0xff]
      %v1896 = vld [vmem:[%s8 + $0x68] sm:$0xff]
      %v1897 = vld [vmem:[%s8 + $0x70] sm:$0xff]
      %v1898 = vld [vmem:[%s8 + $0x78] sm:$0xff]
      %v1899 = vld [vmem:[%s9] sm:$0x1]
      %v1901 = vlaneseq
      %v1902 = vshrl.u32 %v1901, 7
      %v1903 = vsub.s32 0, %v1902
      %v1904 = vrot.slane %v1899, %v1903
      %1906 = vmatprep.subr.mxu0 0.0
      %1907 = vmatpush1.msra.mxu0 %v1883
      %1908 = vmatprep.subr.mxu0 0.0
      %1909 = vmatpush1.msra.mxu0 %v1884
      %1910 = vmatprep.subr.mxu0 0.0
      %1911 = vmatpush1.msra.mxu0 %v1885
      %1912 = vmatprep.subr.mxu0 0.0
      %1913 = vmatpush1.msra.mxu0 %v1886
      %1914 = vmatprep.subr.mxu0 0.0
      %1915 = vmatpush1.msra.mxu0 %v1887
      %1916 = vmatprep.subr.mxu0 0.0
      %1917 = vmatpush1.msra.mxu0 %v1888
      %1918 = vmatprep.subr.mxu0 0.0
      %1919 = vmatpush1.msra.mxu0 %v1889
      %1920 = vmatprep.subr.mxu0 0.0
      %1921 = vmatpush1.msra.mxu0 %v1890
      %1922 = vmatprep.subr.mxu0 0.0
      %1923 = vmatpush1.msra.mxu0 %v1891
      %1924 = vmatprep.subr.mxu0 0.0
      %1925 = vmatpush1.msra.mxu0 %v1892
      %1926 = vmatprep.subr.mxu0 0.0
      %1927 = vmatpush1.msra.mxu0 %v1893
      %1928 = vmatprep.subr.mxu0 0.0
      %1929 = vmatpush1.msra.mxu0 %v1894
      %1930 = vmatprep.subr.mxu0 0.0
      %1931 = vmatpush1.msra.mxu0 %v1895
      %1932 = vmatprep.subr.mxu0 0.0
      %1933 = vmatpush1.msra.mxu0 %v1896
      %1934 = vmatprep.subr.mxu0 0.0
      %1935 = vmatpush1.msra.mxu0 %v1897
      %1936 = vmatprep.subr.mxu0 0.0
      %1937 = vmatpush1.msra.mxu0 %v1898
      %1938 = vmatprep.subr.mxu0 0.0
      %1939 = vmatpush1.msra.mxu0 0.0
      %1940 = vmatprep.subr.mxu0 0.0
      %1941 = vmatpush1.msra.mxu0 0.0
      %1942 = vmatprep.subr.mxu0 0.0
      %1943 = vmatpush1.msra.mxu0 0.0
      %1944 = vmatprep.subr.mxu0 0.0
      %1945 = vmatpush1.msra.mxu0 0.0
      %1946 = vmatprep.subr.mxu0 0.0
      %1947 = vmatpush1.msra.mxu0 0.0
      %1948 = vmatprep.subr.mxu0 0.0
      %1949 = vmatpush1.msra.mxu0 0.0
      %1950 = vmatprep.subr.mxu0 0.0
      %1951 = vmatpush1.msra.mxu0 0.0
      %1952 = vmatprep.subr.mxu0 0.0
      %1953 = vmatpush1.msra.mxu0 0.0
      %1954 = vmatprep.subr.mxu0 0.0
      %1955 = vmatpush1.msra.mxu0 0.0
      %1956 = vmatprep.subr.mxu0 0.0
      %1957 = vmatpush1.msra.mxu0 0.0
      %1958 = vmatprep.subr.mxu0 0.0
      %1959 = vmatpush1.msra.mxu0 0.0
      %1960 = vmatprep.subr.mxu0 0.0
      %1961 = vmatpush1.msra.mxu0 0.0
      %1962 = vmatprep.subr.mxu0 0.0
      %1963 = vmatpush1.msra.mxu0 0.0
      %1964 = vmatprep.subr.mxu0 0.0
      %1965 = vmatpush1.msra.mxu0 0.0
      %1966 = vmatprep.subr.mxu0 0.0
      %1967 = vmatpush1.msra.mxu0 0.0
      %1968 = vmatprep.subr.mxu0 0.0
      %1969 = vmatpush1.msra.mxu0 0.0
      %1970 = vmatprep.mubr.f32.mxu0 0.0
      %1971 = vmatmul.mubr.f32.gmra.mrb[0].mxu0 %v1881
      %v1972 = vpop.f32.mrb[0].mxu0
      %v1973 = vadd.f32 %v1904, %v1972
      %v1974 = vpop.f32.mrb[0].mxu0
      %1975 = vmatprep.mubr.f32.mxu0 0.0
      %1976 = vmatmul.mubr.f32.gmra.mrb[0].mxu0 %v1882
      %v1977 = vpop.f32.mrb[0].mxu0
      %v1978 = vadd.f32 %v1904, %v1977
      %v1979 = vpop.f32.mrb[0].mxu0
      %1980 = vdwg.mxu0
      %v1981 = vadd.f32 %v1781, %v1973
      %v1982 = vadd.f32 %v1782, %v1978
      %v1983 = vld [vmem:[%s11] sm:$0x1]
      %v1985 = vlaneseq
      %v1986 = vshrl.u32 %v1985, 7
      %v1987 = vsub.s32 0, %v1986
      %v1988 = vrot.slane %v1983, %v1987
      %v1990 = vadd.f32 %v1981, %v1988
      %v1991 = vadd.f32 %v1982, %v1988
      %v1992 = vld [vmem:[%s10] sm:$0x1]
      %v1994 = vlaneseq
      %v1995 = vshrl.u32 %v1994, 7
      %v1996 = vsub.s32 0, %v1995
      %v1997 = vrot.slane %v1992, %v1996
      %v1999 = vmul.f32 %v1990, %v1997
      %v2000 = vmul.f32 %v1991, %v1997
      %2001 = vst [vmem:[%s415] sm:$0xff] %v1999
      %2002 = vst [vmem:[%s415 + $0x8] sm:$0xff] %v2000
      %s2003 = smul.u32 2, %s23
      %p2004 = scmp.lt.s32.totalorder %s2003, 7
      %s2005 = scalar_select %p2004, %s2003, 7
      %s2006 = smul.addr %s2005, 8
      %s2007 = scalar_lea.vmem %s12, %s2006
      // Predicated region
      $region69: #{diffeq_transformer_forward.6} parent=67 // pred_check
        %p2008 = pneg %p298
      $region70: #{diffeq_transformer_forward.6} parent=67 // pred_check_branch
        %2010 = sbr.rel (%p2008) target = $region72
      $region71: #{diffeq_transformer_forward.6} parent=67 // pred_region
        %s2011 = smul.u32 2, %s23
      $region72: #{diffeq_transformer_forward.6} parent=67 // pred_fallthru
        _
    $region68: #{diffeq_transformer_forward.6} parent=5 // pred_fallthru
      _
    %p2012 = scmp.le.s32.totalorder 2, %s18
    // Predicated region
    $region73: #{diffeq_transformer_forward.6} parent=5 // pred_check
      %p2013 = pneg %p2012
    $region74: #{diffeq_transformer_forward.6} parent=5 // pred_check_branch
      %2015 = sbr.rel (%p2013) target = $region76
    $region75: #{diffeq_transformer_forward.6} parent=5 // pred_region
      %s2016 = ssub.s32 %s18, 2
      // Predicated region
      $region77: #{diffeq_transformer_forward.6} parent=75 // pred_check
        %p2017 = pneg %p304
      $region78: #{diffeq_transformer_forward.6} parent=75 // pred_check_branch
        %2019 = sbr.rel (%p2017) target = $region80
      $region79: #{diffeq_transformer_forward.6} parent=75 // pred_region
        %s2020 = smul.u32 2, %s24
        %p2021 = scmp.lt.s32.totalorder %s2020, 7
        %s2022 = scalar_select %p2021, %s2020, 7
        %s2023 = smul.addr %s2022, 8
        %s2024 = scalar_lea.vmem %s12, %s2023
      $region80: #{diffeq_transformer_forward.6} parent=75 // pred_fallthru
        _
    $region76: #{diffeq_transformer_forward.6} parent=5 // pred_fallthru
      _
  $region6: #{diffeq_transformer_forward.6} parent=0 // loop_footer
    %s22 = sadd.s32 1, %s18
  $region7: #{diffeq_transformer_forward.6} parent=0 // loop_footer_branch
    %17 = sbr.rel target = $region3
  $region8: #{diffeq_transformer_forward.6} parent=0 // loop_exit
    _

</llo_original>
